<compile_context>
chip_gen: v5e
topology: v5e:2x2
jax: 0.10.0
libtpu: 0.0.40
codegen_flags: <defaults>
</compile_context>

<pallas_src>
import functools

import jax
import jax.numpy as jnp
from jax.experimental import pallas as pl
from jax.experimental.pallas import tpu as pltpu

IMAGENET_MEAN = (0.485, 0.456, 0.406)
IMAGENET_STD = (0.229, 0.224, 0.225)


def _interp_matrix(out_size: int, in_size: int) -> jnp.ndarray:
    """R (out, in): 1-D bilinear interpolation matrix, align_corners=True."""
    if out_size == 1:
        src = jnp.zeros((1,), jnp.float32)
    else:
        src = jnp.arange(out_size, dtype=jnp.float32) * (
            (in_size - 1) / (out_size - 1))
    i0 = jnp.clip(jnp.floor(src), 0, in_size - 1).astype(jnp.int32)
    i1 = jnp.minimum(i0 + 1, in_size - 1)
    w1 = src - i0.astype(jnp.float32)
    w0 = 1.0 - w1
    cols = jnp.arange(in_size, dtype=jnp.int32)
    return (w0[:, None] * (cols[None, :] == i0[:, None]).astype(jnp.float32)
            + w1[:, None] * (cols[None, :] == i1[:, None]).astype(jnp.float32))


def _pick_band(h0: int) -> int:
    """Output-row band height (production tiling); whole image at small sizes."""
    if h0 >= 256 and h0 % 128 == 0:
        return 128
    return h0


# --------------------------- fused forward kernel ----------------------------
def _fused_kernel(x_ref, rwpre_ref, rhpre_ref, bpre_ref, m_ref, rs_ref,
                  cbias_ref, rwpostt_ref, o_ref, *, n_cls, wp):
    f32 = jnp.float32
    bf16 = jnp.bfloat16
    ncwp = n_cls * wp

    # Preprocess: width resize + /255 + 1/std folded into rwpre (bf16 MXU),
    # then height resize; -mean/std bias added once in f32.
    t = jnp.dot(x_ref[...], rwpre_ref[...], preferred_element_type=f32)   # (H0, Wp*C)
    pre = (jnp.dot(rhpre_ref[...], t.astype(bf16), preferred_element_type=f32)
           + bpre_ref[...])                                               # (Hp, Wp*C)

    # 3x3 conv (base model): width taps + channel mixing folded into one banded
    # matrix with the three kh taps concatenated along N (single wide MXU
    # issue); height taps + resize-back (RS_kh) applied to static N-slices.
    q = jnp.dot(pre.astype(bf16), m_ref[...], preferred_element_type=f32)  # (Hp, 3*Wp*NC)
    qb = q.astype(bf16)
    acc = jnp.dot(rs_ref[0], qb[:, 0:ncwp], preferred_element_type=f32)
    for kh in range(1, 3):                                                # static unroll
        acc += jnp.dot(rs_ref[kh], qb[:, kh * ncwp:(kh + 1) * ncwp],
                       preferred_element_type=f32)
    acc += cbias_ref[...]                                                 # (band, Wp*NC)

    # Per-class width resize-back via static class-block slices against ONE
    # shared (Wp, W0) matrix (kept f32 for argmax tie fidelity), then argmax
    # with strict '>' (torch first-max tie-break).
    rwt = rwpostt_ref[...]
    best = jnp.dot(acc[:, 0:wp], rwt, preferred_element_type=f32)         # (band, W0)
    idx = jnp.zeros(best.shape, jnp.int32)
    for n in range(1, n_cls):                                             # static unroll
        z = jnp.dot(acc[:, n * wp:(n + 1) * wp], rwt, preferred_element_type=f32)
        better = z > best
        best = jnp.where(better, z, best)
        idx = jnp.where(better, n, idx)
    o_ref[...] = idx


# ------------------------------ Wrapper model --------------------------------
class EquiSegModelPallas:
    """Pallas port of EquiSegModel with a synthetic 3x3-conv base model."""

    def __init__(self, conv_w, conv_b, img_size=(16, 32)):
        self.conv_w = jnp.asarray(conv_w, jnp.float32)   # (NC, 3, 3, 3)
        self.conv_b = jnp.asarray(conv_b, jnp.float32)   # (NC,)
        self.img_size = img_size
        self._const_cache = {}

    # Constants are built once per (h0, w0, c, is_float) -- eagerly, outside the
    # kernel -- and cached; under jit they become closure constants in HBM.
    def _constants(self, h0, w0, c, is_float):
        key = (h0, w0, c, bool(is_float))
        if key in self._const_cache:
            return self._const_cache[key]

        hp, wp = self.img_size
        nc = self.conv_w.shape[0]
        scale = 1.0 if is_float else 1.0 / 255.0          # x.float()/255 branch
        mean = jnp.asarray(IMAGENET_MEAN, jnp.float32)
        std = jnp.asarray(IMAGENET_STD, jnp.float32)

        # Preprocess: width resize + channel de-interleave with scale/std folded
        # in; height resize; fused normalization bias (channel-planar blocks).
        rw_pre = _interp_matrix(wp, w0)                                   # (Wp, W0)
        rwpre_big = jnp.einsum('cd,jw->wcdj', jnp.diag(scale / std),
                               rw_pre).reshape(w0 * c, c * wp).astype(jnp.bfloat16)
        rh_pre = _interp_matrix(hp, h0).astype(jnp.bfloat16)              # (Hp, H0)
        bpre = jnp.repeat(-mean / std, wp)[None, :]                       # (1, Wp*C) f32

        # Conv: M_kh folds the three width taps + channel mixing (banded
        # blocks); the three kh slabs are concatenated along N for one wide
        # matmul.  RS_kh = Rh_post @ shift(kh) folds the height taps and the
        # bilinear resize back to H0.
        bands = jnp.stack([jnp.eye(wp, k=1 - kw, dtype=jnp.float32)
                           for kw in range(3)])                           # (3, Wp, Wp)
        m_all = jnp.einsum('nchk,kab->hcanb', self.conv_w,
                           bands).reshape(3, c * wp, nc * wp)
        m_cat = jnp.concatenate([m_all[0], m_all[1], m_all[2]],
                                axis=-1).astype(jnp.bfloat16)             # (Wp*C, 3*Wp*NC)
        rh_post = _interp_matrix(h0, hp)                                  # (H0, Hp)
        shifts = jnp.stack([jnp.eye(hp, k=kh - 1, dtype=jnp.float32)
                            for kh in range(3)])                          # (3, Hp, Hp)
        rs_all = jnp.einsum('oi,kij->koj', rh_post,
                            shifts).astype(jnp.bfloat16)                  # (3, H0, Hp)
        cbias = jnp.repeat(self.conv_b, wp)[None, :]                      # (1, Wp*NC) f32

        # Postprocess: ONE shared per-class width resize matrix (f32).
        rw_post_t = _interp_matrix(w0, wp).T                              # (Wp, W0)

        consts = (rwpre_big, rh_pre, bpre, m_cat, rs_all, cbias, rw_post_t)
        self._const_cache[key] = consts
        return consts

    def __call__(self, image_hwc):
        h0, w0, c = image_hwc.shape
        hp, wp = self.img_size
        nc = self.conv_w.shape[0]
        is_float = jnp.issubdtype(image_hwc.dtype, jnp.floating)

        # Flatten HWC -> (H0, W0*C): a pure view (no transpose HBM round-trip).
        # Pixels travel as bf16 (exact for uint8 0..255) straight into the MXU.
        x2d = image_hwc.reshape(h0, w0 * c).astype(jnp.bfloat16)

        (rwpre_big, rh_pre, bpre, m_cat, rs_all, cbias,
         rw_post_t) = self._constants(h0, w0, c, is_float)

        band_h = _pick_band(h0)
        n_bands = h0 // band_h

        def full(shape):
            return pl.BlockSpec(shape, lambda b, _s=shape: (0,) * len(_s))

        in_specs = [
            full((h0, w0 * c)),                                   # x2d
            full((w0 * c, c * wp)),                               # rwpre_big
            full((hp, h0)),                                       # rh_pre
            full((1, c * wp)),                                    # bpre
            full((c * wp, 3 * nc * wp)),                          # m_cat
            pl.BlockSpec((3, band_h, hp), lambda b: (0, b, 0)),   # rs_all (banded)
            full((1, nc * wp)),                                   # cbias
            full((wp, w0)),                                       # rw_post_t
        ]
        out_spec = pl.BlockSpec((band_h, w0), lambda b: (b, 0))

        flops = 2 * (h0 * (w0 * c) * (wp * c)
                     + hp * h0 * (wp * c)
                     + hp * (wp * c) * (3 * nc * wp)
                     + 3 * h0 * hp * (nc * wp)
                     + nc * h0 * wp * w0)
        bytes_accessed = (x2d.size * 2 + rwpre_big.size * 2 + rh_pre.size * 2
                          + bpre.size * 4 + m_cat.size * 2 + rs_all.size * 2
                          + cbias.size * 4 + rw_post_t.size * 4 + h0 * w0 * 4)
        cost = pl.CostEstimate(flops=int(flops), transcendentals=0,
                               bytes_accessed=int(bytes_accessed))
        vmem_limit = int(min(64 << 20, max(32 << 20, 4 * bytes_accessed)))

        return pl.pallas_call(
            functools.partial(_fused_kernel, n_cls=nc, wp=wp),
            out_shape=jax.ShapeDtypeStruct((h0, w0), jnp.int32),
            grid_spec=pltpu.PrefetchScalarGridSpec(
                num_scalar_prefetch=0,
                grid=(n_bands,),
                in_specs=in_specs,
                out_specs=out_spec),
            compiler_params=pltpu.CompilerParams(
                dimension_semantics=("parallel",),
                vmem_limit_bytes=vmem_limit),
            cost_estimate=cost,
        )(x2d, rwpre_big, rh_pre, bpre, m_cat, rs_all, cbias, rw_post_t)


if __name__ == "__main__":
    key = jax.random.PRNGKey(0)
    k_img, k_w, k_b = jax.random.split(key, 3)

    NUM_CLASSES = 8
    conv_w = 0.1 * jax.random.normal(k_w, (NUM_CLASSES, 3, 3, 3), jnp.float32)
    conv_b = 0.01 * jax.random.normal(k_b, (NUM_CLASSES,), jnp.float32)

    model = EquiSegModelPallas(conv_w, conv_b, img_size=(16, 32))
    fwd = jax.jit(model.__call__)

    # HWC uint8 image (exercises the .float()/255 branch), small shapes.
    image = jax.random.randint(k_img, (12, 24, 3), 0, 256,
                               dtype=jnp.int32).astype(jnp.uint8)

    seg = jax.block_until_ready(fwd(image))
    assert seg.shape == (12, 24) and seg.dtype == jnp.int32
    assert int(seg.min()) >= 0 and int(seg.max()) < NUM_CLASSES
    print("KERNEL_OK")
</pallas_src>

<mosaic_0001>
module attributes {stable_mosaic.version = 11 : i64} {
  func.func @_fused_kernel(%arg0: i32, %arg1: memref<12x72xbf16, #tpu.memory_space<vmem>>, %arg2: memref<72x96xbf16, #tpu.memory_space<vmem>>, %arg3: memref<16x12xbf16, #tpu.memory_space<vmem>>, %arg4: memref<1x96xf32, #tpu.memory_space<vmem>>, %arg5: memref<96x768xbf16, #tpu.memory_space<vmem>>, %arg6: memref<3x12x16xbf16, #tpu.memory_space<vmem>>, %arg7: memref<1x256xf32, #tpu.memory_space<vmem>>, %arg8: memref<32x24xf32, #tpu.memory_space<vmem>>, %arg9: memref<12x24xi32, #tpu.memory_space<vmem>>) attributes {dimension_semantics = [#tpu.dimension_semantics<parallel>], iteration_bounds = array<i64: 1>, scalar_prefetch = 0 : i64, scratch_operands = 0 : i64, tpu.core_type = #tpu.core_type<tc>, window_params = [{pipeline_mode = #tpu.pipeline_mode<synchronous>, transform_indices = @transform_0, window_bounds = array<i64: 12, 72>}, {pipeline_mode = #tpu.pipeline_mode<synchronous>, transform_indices = @transform_1, window_bounds = array<i64: 72, 96>}, {pipeline_mode = #tpu.pipeline_mode<synchronous>, transform_indices = @transform_2, window_bounds = array<i64: 16, 12>}, {pipeline_mode = #tpu.pipeline_mode<synchronous>, transform_indices = @transform_3, window_bounds = array<i64: 1, 96>}, {pipeline_mode = #tpu.pipeline_mode<synchronous>, transform_indices = @transform_4, window_bounds = array<i64: 96, 768>}, {transform_indices = @transform_5, window_bounds = array<i64: 3, 12, 16>}, {pipeline_mode = #tpu.pipeline_mode<synchronous>, transform_indices = @transform_6, window_bounds = array<i64: 1, 256>}, {pipeline_mode = #tpu.pipeline_mode<synchronous>, transform_indices = @transform_7, window_bounds = array<i64: 32, 24>}, {transform_indices = @transform_8, window_bounds = array<i64: 12, 24>}]} {
    %c0 = arith.constant 0 : index
    %c0_0 = arith.constant 0 : index
    %0 = vector.load %arg1[%c0, %c0_0] : memref<12x72xbf16, #tpu.memory_space<vmem>>, vector<12x72xbf16>
    %c0_1 = arith.constant 0 : index
    %c0_2 = arith.constant 0 : index
    %1 = vector.load %arg2[%c0_1, %c0_2] : memref<72x96xbf16, #tpu.memory_space<vmem>>, vector<72x96xbf16>
    %cst = arith.constant dense<0.000000e+00> : vector<12x96xf32>
    %2 = tpu.matmul %0, %1, %cst {dimension_numbers = #tpu.dot_dimension_numbers<[1], [0], [0], [1], [0, 0, 1, 1], [], []>} : vector<12x72xbf16>, vector<72x96xbf16>, vector<12x96xf32> -> vector<12x96xf32>
    %c0_3 = arith.constant 0 : index
    %c0_4 = arith.constant 0 : index
    %3 = vector.load %arg3[%c0_3, %c0_4] : memref<16x12xbf16, #tpu.memory_space<vmem>>, vector<16x12xbf16>
    %4 = arith.truncf %2 : vector<12x96xf32> to vector<12x96xbf16>
    %cst_5 = arith.constant dense<0.000000e+00> : vector<16x96xf32>
    %5 = tpu.matmul %3, %4, %cst_5 {dimension_numbers = #tpu.dot_dimension_numbers<[1], [0], [0], [1], [0, 0, 1, 1], [], []>} : vector<16x12xbf16>, vector<12x96xbf16>, vector<16x96xf32> -> vector<16x96xf32>
    %c0_6 = arith.constant 0 : index
    %c0_7 = arith.constant 0 : index
    %6 = vector.load %arg4[%c0_6, %c0_7] : memref<1x96xf32, #tpu.memory_space<vmem>>, vector<1x96xf32>
    %7 = vector.broadcast %6 : vector<1x96xf32> to vector<16x96xf32>
    %8 = arith.addf %5, %7 : vector<16x96xf32>
    %9 = arith.truncf %8 : vector<16x96xf32> to vector<16x96xbf16>
    %c0_8 = arith.constant 0 : index
    %c0_9 = arith.constant 0 : index
    %10 = vector.load %arg5[%c0_8, %c0_9] : memref<96x768xbf16, #tpu.memory_space<vmem>>, vector<96x768xbf16>
    %cst_10 = arith.constant dense<0.000000e+00> : vector<16x768xf32>
    %11 = tpu.matmul %9, %10, %cst_10 {dimension_numbers = #tpu.dot_dimension_numbers<[1], [0], [0], [1], [0, 0, 1, 1], [], []>} : vector<16x96xbf16>, vector<96x768xbf16>, vector<16x768xf32> -> vector<16x768xf32>
    %12 = arith.truncf %11 : vector<16x768xf32> to vector<16x768xbf16>
    %c0_11 = arith.constant 0 : index
    %c0_12 = arith.constant 0 : index
    %c0_13 = arith.constant 0 : index
    %13 = vector.load %arg6[%c0_11, %c0_12, %c0_13] : memref<3x12x16xbf16, #tpu.memory_space<vmem>>, vector<1x12x16xbf16>
    %14 = vector.shape_cast %13 : vector<1x12x16xbf16> to vector<12x16xbf16>
    %15 = vector.extract_strided_slice %12 {offsets = [0, 0], sizes = [16, 256], strides = [1, 1]} : vector<16x768xbf16> to vector<16x256xbf16>
    %cst_14 = arith.constant dense<0.000000e+00> : vector<12x256xf32>
    %16 = tpu.matmul %14, %15, %cst_14 {dimension_numbers = #tpu.dot_dimension_numbers<[1], [0], [0], [1], [0, 0, 1, 1], [], []>} : vector<12x16xbf16>, vector<16x256xbf16>, vector<12x256xf32> -> vector<12x256xf32>
    %c1 = arith.constant 1 : index
    %c0_15 = arith.constant 0 : index
    %c0_16 = arith.constant 0 : index
    %17 = vector.load %arg6[%c1, %c0_15, %c0_16] : memref<3x12x16xbf16, #tpu.memory_space<vmem>>, vector<1x12x16xbf16>
    %18 = vector.shape_cast %17 : vector<1x12x16xbf16> to vector<12x16xbf16>
    %19 = vector.extract_strided_slice %12 {offsets = [0, 256], sizes = [16, 256], strides = [1, 1]} : vector<16x768xbf16> to vector<16x256xbf16>
    %cst_17 = arith.constant dense<0.000000e+00> : vector<12x256xf32>
    %20 = tpu.matmul %18, %19, %cst_17 {dimension_numbers = #tpu.dot_dimension_numbers<[1], [0], [0], [1], [0, 0, 1, 1], [], []>} : vector<12x16xbf16>, vector<16x256xbf16>, vector<12x256xf32> -> vector<12x256xf32>
    %21 = arith.addf %16, %20 : vector<12x256xf32>
    %c2 = arith.constant 2 : index
    %c0_18 = arith.constant 0 : index
    %c0_19 = arith.constant 0 : index
    %22 = vector.load %arg6[%c2, %c0_18, %c0_19] : memref<3x12x16xbf16, #tpu.memory_space<vmem>>, vector<1x12x16xbf16>
    %23 = vector.shape_cast %22 : vector<1x12x16xbf16> to vector<12x16xbf16>
    %24 = vector.extract_strided_slice %12 {offsets = [0, 512], sizes = [16, 256], strides = [1, 1]} : vector<16x768xbf16> to vector<16x256xbf16>
    %cst_20 = arith.constant dense<0.000000e+00> : vector<12x256xf32>
    %25 = tpu.matmul %23, %24, %cst_20 {dimension_numbers = #tpu.dot_dimension_numbers<[1], [0], [0], [1], [0, 0, 1, 1], [], []>} : vector<12x16xbf16>, vector<16x256xbf16>, vector<12x256xf32> -> vector<12x256xf32>
    %26 = arith.addf %21, %25 : vector<12x256xf32>
    %c0_21 = arith.constant 0 : index
    %c0_22 = arith.constant 0 : index
    %27 = vector.load %arg7[%c0_21, %c0_22] : memref<1x256xf32, #tpu.memory_space<vmem>>, vector<1x256xf32>
    %28 = vector.broadcast %27 : vector<1x256xf32> to vector<12x256xf32>
    %29 = arith.addf %26, %28 : vector<12x256xf32>
    %c0_23 = arith.constant 0 : index
    %c0_24 = arith.constant 0 : index
    %30 = vector.load %arg8[%c0_23, %c0_24] : memref<32x24xf32, #tpu.memory_space<vmem>>, vector<32x24xf32>
    %31 = vector.extract_strided_slice %29 {offsets = [0, 0], sizes = [12, 32], strides = [1, 1]} : vector<12x256xf32> to vector<12x32xf32>
    %cst_25 = arith.constant dense<0.000000e+00> : vector<12x24xf32>
    %32 = tpu.matmul %31, %30, %cst_25 {dimension_numbers = #tpu.dot_dimension_numbers<[1], [0], [0], [1], [0, 0, 1, 1], [], []>} : vector<12x32xf32>, vector<32x24xf32>, vector<12x24xf32> -> vector<12x24xf32>
    %c0_i32 = arith.constant 0 : i32
    %33 = vector.broadcast %c0_i32 : i32 to vector<12x24xi32>
    %34 = vector.extract_strided_slice %29 {offsets = [0, 32], sizes = [12, 32], strides = [1, 1]} : vector<12x256xf32> to vector<12x32xf32>
    %cst_26 = arith.constant dense<0.000000e+00> : vector<12x24xf32>
    %35 = tpu.matmul %34, %30, %cst_26 {dimension_numbers = #tpu.dot_dimension_numbers<[1], [0], [0], [1], [0, 0, 1, 1], [], []>} : vector<12x32xf32>, vector<32x24xf32>, vector<12x24xf32> -> vector<12x24xf32>
    %36 = arith.cmpf ogt, %35, %32 : vector<12x24xf32>
    %37 = arith.select %36, %35, %32 : vector<12x24xi1>, vector<12x24xf32>
    %c1_i32 = arith.constant 1 : i32
    %38 = vector.broadcast %c1_i32 : i32 to vector<12x24xi32>
    %39 = arith.select %36, %38, %33 : vector<12x24xi1>, vector<12x24xi32>
    %40 = vector.extract_strided_slice %29 {offsets = [0, 64], sizes = [12, 32], strides = [1, 1]} : vector<12x256xf32> to vector<12x32xf32>
    %cst_27 = arith.constant dense<0.000000e+00> : vector<12x24xf32>
    %41 = tpu.matmul %40, %30, %cst_27 {dimension_numbers = #tpu.dot_dimension_numbers<[1], [0], [0], [1], [0, 0, 1, 1], [], []>} : vector<12x32xf32>, vector<32x24xf32>, vector<12x24xf32> -> vector<12x24xf32>
    %42 = arith.cmpf ogt, %41, %37 : vector<12x24xf32>
    %43 = arith.select %42, %41, %37 : vector<12x24xi1>, vector<12x24xf32>
    %c2_i32 = arith.constant 2 : i32
    %44 = vector.broadcast %c2_i32 : i32 to vector<12x24xi32>
    %45 = arith.select %42, %44, %39 : vector<12x24xi1>, vector<12x24xi32>
    %46 = vector.extract_strided_slice %29 {offsets = [0, 96], sizes = [12, 32], strides = [1, 1]} : vector<12x256xf32> to vector<12x32xf32>
    %cst_28 = arith.constant dense<0.000000e+00> : vector<12x24xf32>
    %47 = tpu.matmul %46, %30, %cst_28 {dimension_numbers = #tpu.dot_dimension_numbers<[1], [0], [0], [1], [0, 0, 1, 1], [], []>} : vector<12x32xf32>, vector<32x24xf32>, vector<12x24xf32> -> vector<12x24xf32>
    %48 = arith.cmpf ogt, %47, %43 : vector<12x24xf32>
    %49 = arith.select %48, %47, %43 : vector<12x24xi1>, vector<12x24xf32>
    %c3_i32 = arith.constant 3 : i32
    %50 = vector.broadcast %c3_i32 : i32 to vector<12x24xi32>
    %51 = arith.select %48, %50, %45 : vector<12x24xi1>, vector<12x24xi32>
    %52 = vector.extract_strided_slice %29 {offsets = [0, 128], sizes = [12, 32], strides = [1, 1]} : vector<12x256xf32> to vector<12x32xf32>
    %cst_29 = arith.constant dense<0.000000e+00> : vector<12x24xf32>
    %53 = tpu.matmul %52, %30, %cst_29 {dimension_numbers = #tpu.dot_dimension_numbers<[1], [0], [0], [1], [0, 0, 1, 1], [], []>} : vector<12x32xf32>, vector<32x24xf32>, vector<12x24xf32> -> vector<12x24xf32>
    %54 = arith.cmpf ogt, %53, %49 : vector<12x24xf32>
    %55 = arith.select %54, %53, %49 : vector<12x24xi1>, vector<12x24xf32>
    %c4_i32 = arith.constant 4 : i32
    %56 = vector.broadcast %c4_i32 : i32 to vector<12x24xi32>
    %57 = arith.select %54, %56, %51 : vector<12x24xi1>, vector<12x24xi32>
    %58 = vector.extract_strided_slice %29 {offsets = [0, 160], sizes = [12, 32], strides = [1, 1]} : vector<12x256xf32> to vector<12x32xf32>
    %cst_30 = arith.constant dense<0.000000e+00> : vector<12x24xf32>
    %59 = tpu.matmul %58, %30, %cst_30 {dimension_numbers = #tpu.dot_dimension_numbers<[1], [0], [0], [1], [0, 0, 1, 1], [], []>} : vector<12x32xf32>, vector<32x24xf32>, vector<12x24xf32> -> vector<12x24xf32>
    %60 = arith.cmpf ogt, %59, %55 : vector<12x24xf32>
    %61 = arith.select %60, %59, %55 : vector<12x24xi1>, vector<12x24xf32>
    %c5_i32 = arith.constant 5 : i32
    %62 = vector.broadcast %c5_i32 : i32 to vector<12x24xi32>
    %63 = arith.select %60, %62, %57 : vector<12x24xi1>, vector<12x24xi32>
    %64 = vector.extract_strided_slice %29 {offsets = [0, 192], sizes = [12, 32], strides = [1, 1]} : vector<12x256xf32> to vector<12x32xf32>
    %cst_31 = arith.constant dense<0.000000e+00> : vector<12x24xf32>
    %65 = tpu.matmul %64, %30, %cst_31 {dimension_numbers = #tpu.dot_dimension_numbers<[1], [0], [0], [1], [0, 0, 1, 1], [], []>} : vector<12x32xf32>, vector<32x24xf32>, vector<12x24xf32> -> vector<12x24xf32>
    %66 = arith.cmpf ogt, %65, %61 : vector<12x24xf32>
    %67 = arith.select %66, %65, %61 : vector<12x24xi1>, vector<12x24xf32>
    %c6_i32 = arith.constant 6 : i32
    %68 = vector.broadcast %c6_i32 : i32 to vector<12x24xi32>
    %69 = arith.select %66, %68, %63 : vector<12x24xi1>, vector<12x24xi32>
    %70 = vector.extract_strided_slice %29 {offsets = [0, 224], sizes = [12, 32], strides = [1, 1]} : vector<12x256xf32> to vector<12x32xf32>
    %cst_32 = arith.constant dense<0.000000e+00> : vector<12x24xf32>
    %71 = tpu.matmul %70, %30, %cst_32 {dimension_numbers = #tpu.dot_dimension_numbers<[1], [0], [0], [1], [0, 0, 1, 1], [], []>} : vector<12x32xf32>, vector<32x24xf32>, vector<12x24xf32> -> vector<12x24xf32>
    %72 = arith.cmpf ogt, %71, %67 : vector<12x24xf32>
    %c7_i32 = arith.constant 7 : i32
    %73 = vector.broadcast %c7_i32 : i32 to vector<12x24xi32>
    %74 = arith.select %72, %73, %69 : vector<12x24xi1>, vector<12x24xi32>
    %c0_33 = arith.constant 0 : index
    %c0_34 = arith.constant 0 : index
    %75 = vector.load %arg9[%c0_33, %c0_34] : memref<12x24xi32, #tpu.memory_space<vmem>>, vector<12x24xi32>
    tpu.vector_store %arg9[%c0_33, %c0_34], %74 {strides = array<i32>} : memref<12x24xi32, #tpu.memory_space<vmem>>, vector<12x24xi32>,
    return
  }
  func.func @transform_0(%arg0: i32) -> (i32, i32) {
    %c0_i32 = arith.constant 0 : i32
    %c0_i32_0 = arith.constant 0 : i32
    %c0_i32_1 = arith.constant 0 : i32
    return %c0_i32, %c0_i32_0 : i32, i32
  }
  func.func @transform_1(%arg0: i32) -> (i32, i32) {
    %c0_i32 = arith.constant 0 : i32
    %c0_i32_0 = arith.constant 0 : i32
    %c0_i32_1 = arith.constant 0 : i32
    return %c0_i32, %c0_i32_0 : i32, i32
  }
  func.func @transform_2(%arg0: i32) -> (i32, i32) {
    %c0_i32 = arith.constant 0 : i32
    %c0_i32_0 = arith.constant 0 : i32
    %c0_i32_1 = arith.constant 0 : i32
    return %c0_i32, %c0_i32_0 : i32, i32
  }
  func.func @transform_3(%arg0: i32) -> (i32, i32) {
    %c0_i32 = arith.constant 0 : i32
    %c0_i32_0 = arith.constant 0 : i32
    %c0_i32_1 = arith.constant 0 : i32
    return %c0_i32, %c0_i32_0 : i32, i32
  }
  func.func @transform_4(%arg0: i32) -> (i32, i32) {
    %c0_i32 = arith.constant 0 : i32
    %c0_i32_0 = arith.constant 0 : i32
    %c0_i32_1 = arith.constant 0 : i32
    return %c0_i32, %c0_i32_0 : i32, i32
  }
  func.func @transform_5(%arg0: i32) -> (i32, i32, i32) {
    %c0_i32 = arith.constant 0 : i32
    %c0_i32_0 = arith.constant 0 : i32
    %c0_i32_1 = arith.constant 0 : i32
    return %c0_i32, %arg0, %c0_i32_0 : i32, i32, i32
  }
  func.func @transform_6(%arg0: i32) -> (i32, i32) {
    %c0_i32 = arith.constant 0 : i32
    %c0_i32_0 = arith.constant 0 : i32
    %c0_i32_1 = arith.constant 0 : i32
    return %c0_i32, %c0_i32_0 : i32, i32
  }
  func.func @transform_7(%arg0: i32) -> (i32, i32) {
    %c0_i32 = arith.constant 0 : i32
    %c0_i32_0 = arith.constant 0 : i32
    %c0_i32_1 = arith.constant 0 : i32
    return %c0_i32, %c0_i32_0 : i32, i32
  }
  func.func @transform_8(%arg0: i32) -> (i32, i32) {
    %c0_i32 = arith.constant 0 : i32
    %c0_i32_0 = arith.constant 0 : i32
    return %arg0, %c0_i32 : i32, i32
  }
}

</mosaic_0001>

<llo_original>
// kernel: squeeze.2
$region0: #{squeeze.2}
  %s0 = inlined_call_operand.vmem [shape: bf16[1,3,32,8,32], index: 0, kind: input, shape index: {}]
  %s1 = inlined_call_operand.vmem [shape: bf16[96,256], index: 1, kind: output, shape index: {}]
  $region1: #{squeeze.2} parent=0
    #allocation0 [shape = 'u8[98304]{0}', space=vmem, size = 0x18000, scoped, tag = 'scoped mem for output reshape']
    #allocation1 [shape = 'u8[393216]{0}', space=vmem, size = 0x60000, scoped, tag = 'scoped mem for input reshape']
    %s3 = ssub.s32 256, 1
    %s4 = scalar_lea.vmem %s0, 380
    %s5 = sshrl.u32 %s3, 1
    %s6 = sor.u32 %s3, %s5
    %s7 = sand.u32 %s6, 85
    %s8 = sshrl.u32 %s7, 1
    %s9 = sor.u32 %s7, %s8
    %s10 = sand.u32 51, %s9
    %s11 = sshrl.u32 %s10, 2
    %s12 = sor.u32 %s10, %s11
    %s13 = sand.u32 15, %s12
    %v14 = vld [vmem:[%s4] sm:%s13]
    %v15 = vunpack.c.l.bf16 %v14
    %v16 = vunpack.c.h.bf16 %v14
    %s17 = scalar_lea.vmem [#allocation1], 760
    %18 = vst [vmem:[%s17] sm:%s3] %v15
    %s19 = scalar_lea.vmem %s0, 376
    %s20 = sshrl.u32 %s3, 1
    %s21 = sor.u32 %s3, %s20
    %s22 = sand.u32 %s21, 85
    %s23 = sshrl.u32 %s22, 1
    %s24 = sor.u32 %s22, %s23
    %s25 = sand.u32 51, %s24
    %s26 = sshrl.u32 %s25, 2
    %s27 = sor.u32 %s25, %s26
    %s28 = sand.u32 15, %s27
    %v29 = vld [vmem:[%s19] sm:%s28]
    %v30 = vunpack.c.l.bf16 %v29
    %v31 = vunpack.c.h.bf16 %v29
    %s32 = scalar_lea.vmem [#allocation1], 752
    %33 = vst [vmem:[%s32] sm:%s3] %v30
    %s34 = scalar_lea.vmem %s0, 372
    %s35 = sshrl.u32 %s3, 1
    %s36 = sor.u32 %s3, %s35
    %s37 = sand.u32 %s36, 85
    %s38 = sshrl.u32 %s37, 1
    %s39 = sor.u32 %s37, %s38
    %s40 = sand.u32 51, %s39
    %s41 = sshrl.u32 %s40, 2
    %s42 = sor.u32 %s40, %s41
    %s43 = sand.u32 15, %s42
    %v44 = vld [vmem:[%s34] sm:%s43]
    %v45 = vunpack.c.l.bf16 %v44
    %v46 = vunpack.c.h.bf16 %v44
    %s47 = scalar_lea.vmem [#allocation1], 744
    %48 = vst [vmem:[%s47] sm:%s3] %v45
    %s49 = scalar_lea.vmem %s0, 368
    %s50 = sshrl.u32 %s3, 1
    %s51 = sor.u32 %s3, %s50
    %s52 = sand.u32 %s51, 85
    %s53 = sshrl.u32 %s52, 1
    %s54 = sor.u32 %s52, %s53
    %s55 = sand.u32 51, %s54
    %s56 = sshrl.u32 %s55, 2
    %s57 = sor.u32 %s55, %s56
    %s58 = sand.u32 15, %s57
    %v59 = vld [vmem:[%s49] sm:%s58]
    %v60 = vunpack.c.l.bf16 %v59
    %v61 = vunpack.c.h.bf16 %v59
    %s62 = scalar_lea.vmem [#allocation1], 736
    %63 = vst [vmem:[%s62] sm:%s3] %v60
    %s64 = scalar_lea.vmem %s0, 364
    %s65 = sshrl.u32 %s3, 1
    %s66 = sor.u32 %s3, %s65
    %s67 = sand.u32 %s66, 85
    %s68 = sshrl.u32 %s67, 1
    %s69 = sor.u32 %s67, %s68
    %s70 = sand.u32 51, %s69
    %s71 = sshrl.u32 %s70, 2
    %s72 = sor.u32 %s70, %s71
    %s73 = sand.u32 15, %s72
    %v74 = vld [vmem:[%s64] sm:%s73]
    %v75 = vunpack.c.l.bf16 %v74
    %v76 = vunpack.c.h.bf16 %v74
    %s77 = scalar_lea.vmem [#allocation1], 728
    %78 = vst [vmem:[%s77] sm:%s3] %v75
    %s79 = scalar_lea.vmem %s0, 360
    %s80 = sshrl.u32 %s3, 1
    %s81 = sor.u32 %s3, %s80
    %s82 = sand.u32 %s81, 85
    %s83 = sshrl.u32 %s82, 1
    %s84 = sor.u32 %s82, %s83
    %s85 = sand.u32 51, %s84
    %s86 = sshrl.u32 %s85, 2
    %s87 = sor.u32 %s85, %s86
    %s88 = sand.u32 15, %s87
    %v89 = vld [vmem:[%s79] sm:%s88]
    %v90 = vunpack.c.l.bf16 %v89
    %v91 = vunpack.c.h.bf16 %v89
    %s92 = scalar_lea.vmem [#allocation1], 720
    %93 = vst [vmem:[%s92] sm:%s3] %v90
    %s94 = scalar_lea.vmem %s0, 356
    %s95 = sshrl.u32 %s3, 1
    %s96 = sor.u32 %s3, %s95
    %s97 = sand.u32 %s96, 85
    %s98 = sshrl.u32 %s97, 1
    %s99 = sor.u32 %s97, %s98
    %s100 = sand.u32 51, %s99
    %s101 = sshrl.u32 %s100, 2
    %s102 = sor.u32 %s100, %s101
    %s103 = sand.u32 15, %s102
    %v104 = vld [vmem:[%s94] sm:%s103]
    %v105 = vunpack.c.l.bf16 %v104
    %v106 = vunpack.c.h.bf16 %v104
    %s107 = scalar_lea.vmem [#allocation1], 712
    %108 = vst [vmem:[%s107] sm:%s3] %v105
    %s109 = scalar_lea.vmem %s0, 352
    %s110 = sshrl.u32 %s3, 1
    %s111 = sor.u32 %s3, %s110
    %s112 = sand.u32 %s111, 85
    %s113 = sshrl.u32 %s112, 1
    %s114 = sor.u32 %s112, %s113
    %s115 = sand.u32 51, %s114
    %s116 = sshrl.u32 %s115, 2
    %s117 = sor.u32 %s115, %s116
    %s118 = sand.u32 15, %s117
    %v119 = vld [vmem:[%s109] sm:%s118]
    %v120 = vunpack.c.l.bf16 %v119
    %v121 = vunpack.c.h.bf16 %v119
    %s122 = scalar_lea.vmem [#allocation1], 704
    %123 = vst [vmem:[%s122] sm:%s3] %v120
    %s124 = scalar_lea.vmem %s0, 348
    %s125 = sshrl.u32 %s3, 1
    %s126 = sor.u32 %s3, %s125
    %s127 = sand.u32 %s126, 85
    %s128 = sshrl.u32 %s127, 1
    %s129 = sor.u32 %s127, %s128
    %s130 = sand.u32 51, %s129
    %s131 = sshrl.u32 %s130, 2
    %s132 = sor.u32 %s130, %s131
    %s133 = sand.u32 15, %s132
    %v134 = vld [vmem:[%s124] sm:%s133]
    %v135 = vunpack.c.l.bf16 %v134
    %v136 = vunpack.c.h.bf16 %v134
    %s137 = scalar_lea.vmem [#allocation1], 696
    %138 = vst [vmem:[%s137] sm:%s3] %v135
    %s139 = scalar_lea.vmem %s0, 344
    %s140 = sshrl.u32 %s3, 1
    %s141 = sor.u32 %s3, %s140
    %s142 = sand.u32 %s141, 85
    %s143 = sshrl.u32 %s142, 1
    %s144 = sor.u32 %s142, %s143
    %s145 = sand.u32 51, %s144
    %s146 = sshrl.u32 %s145, 2
    %s147 = sor.u32 %s145, %s146
    %s148 = sand.u32 15, %s147
    %v149 = vld [vmem:[%s139] sm:%s148]
    %v150 = vunpack.c.l.bf16 %v149
    %v151 = vunpack.c.h.bf16 %v149
    %s152 = scalar_lea.vmem [#allocation1], 688
    %153 = vst [vmem:[%s152] sm:%s3] %v150
    %s154 = scalar_lea.vmem %s0, 340
    %s155 = sshrl.u32 %s3, 1
    %s156 = sor.u32 %s3, %s155
    %s157 = sand.u32 %s156, 85
    %s158 = sshrl.u32 %s157, 1
    %s159 = sor.u32 %s157, %s158
    %s160 = sand.u32 51, %s159
    %s161 = sshrl.u32 %s160, 2
    %s162 = sor.u32 %s160, %s161
    %s163 = sand.u32 15, %s162
    %v164 = vld [vmem:[%s154] sm:%s163]
    %v165 = vunpack.c.l.bf16 %v164
    %v166 = vunpack.c.h.bf16 %v164
    %s167 = scalar_lea.vmem [#allocation1], 680
    %168 = vst [vmem:[%s167] sm:%s3] %v165
    %s169 = scalar_lea.vmem %s0, 336
    %s170 = sshrl.u32 %s3, 1
    %s171 = sor.u32 %s3, %s170
    %s172 = sand.u32 %s171, 85
    %s173 = sshrl.u32 %s172, 1
    %s174 = sor.u32 %s172, %s173
    %s175 = sand.u32 51, %s174
    %s176 = sshrl.u32 %s175, 2
    %s177 = sor.u32 %s175, %s176
    %s178 = sand.u32 15, %s177
    %v179 = vld [vmem:[%s169] sm:%s178]
    %v180 = vunpack.c.l.bf16 %v179
    %v181 = vunpack.c.h.bf16 %v179
    %s182 = scalar_lea.vmem [#allocation1], 672
    %183 = vst [vmem:[%s182] sm:%s3] %v180
    %s184 = scalar_lea.vmem %s0, 332
    %s185 = sshrl.u32 %s3, 1
    %s186 = sor.u32 %s3, %s185
    %s187 = sand.u32 %s186, 85
    %s188 = sshrl.u32 %s187, 1
    %s189 = sor.u32 %s187, %s188
    %s190 = sand.u32 51, %s189
    %s191 = sshrl.u32 %s190, 2
    %s192 = sor.u32 %s190, %s191
    %s193 = sand.u32 15, %s192
    %v194 = vld [vmem:[%s184] sm:%s193]
    %v195 = vunpack.c.l.bf16 %v194
    %v196 = vunpack.c.h.bf16 %v194
    %s197 = scalar_lea.vmem [#allocation1], 664
    %198 = vst [vmem:[%s197] sm:%s3] %v195
    %s199 = scalar_lea.vmem %s0, 328
    %s200 = sshrl.u32 %s3, 1
    %s201 = sor.u32 %s3, %s200
    %s202 = sand.u32 %s201, 85
    %s203 = sshrl.u32 %s202, 1
    %s204 = sor.u32 %s202, %s203
    %s205 = sand.u32 51, %s204
    %s206 = sshrl.u32 %s205, 2
    %s207 = sor.u32 %s205, %s206
    %s208 = sand.u32 15, %s207
    %v209 = vld [vmem:[%s199] sm:%s208]
    %v210 = vunpack.c.l.bf16 %v209
    %v211 = vunpack.c.h.bf16 %v209
    %s212 = scalar_lea.vmem [#allocation1], 656
    %213 = vst [vmem:[%s212] sm:%s3] %v210
    %s214 = scalar_lea.vmem %s0, 324
    %s215 = sshrl.u32 %s3, 1
    %s216 = sor.u32 %s3, %s215
    %s217 = sand.u32 %s216, 85
    %s218 = sshrl.u32 %s217, 1
    %s219 = sor.u32 %s217, %s218
    %s220 = sand.u32 51, %s219
    %s221 = sshrl.u32 %s220, 2
    %s222 = sor.u32 %s220, %s221
    %s223 = sand.u32 15, %s222
    %v224 = vld [vmem:[%s214] sm:%s223]
    %v225 = vunpack.c.l.bf16 %v224
    %v226 = vunpack.c.h.bf16 %v224
    %s227 = scalar_lea.vmem [#allocation1], 648
    %228 = vst [vmem:[%s227] sm:%s3] %v225
    %s229 = scalar_lea.vmem %s0, 320
    %s230 = sshrl.u32 %s3, 1
    %s231 = sor.u32 %s3, %s230
    %s232 = sand.u32 %s231, 85
    %s233 = sshrl.u32 %s232, 1
    %s234 = sor.u32 %s232, %s233
    %s235 = sand.u32 51, %s234
    %s236 = sshrl.u32 %s235, 2
    %s237 = sor.u32 %s235, %s236
    %s238 = sand.u32 15, %s237
    %v239 = vld [vmem:[%s229] sm:%s238]
    %v240 = vunpack.c.l.bf16 %v239
    %v241 = vunpack.c.h.bf16 %v239
    %s242 = scalar_lea.vmem [#allocation1], 640
    %243 = vst [vmem:[%s242] sm:%s3] %v240
    %s244 = scalar_lea.vmem %s0, 316
    %s245 = sshrl.u32 %s3, 1
    %s246 = sor.u32 %s3, %s245
    %s247 = sand.u32 %s246, 85
    %s248 = sshrl.u32 %s247, 1
    %s249 = sor.u32 %s247, %s248
    %s250 = sand.u32 51, %s249
    %s251 = sshrl.u32 %s250, 2
    %s252 = sor.u32 %s250, %s251
    %s253 = sand.u32 15, %s252
    %v254 = vld [vmem:[%s244] sm:%s253]
    %v255 = vunpack.c.l.bf16 %v254
    %v256 = vunpack.c.h.bf16 %v254
    %s257 = scalar_lea.vmem [#allocation1], 632
    %258 = vst [vmem:[%s257] sm:%s3] %v255
    %s259 = scalar_lea.vmem %s0, 312
    %s260 = sshrl.u32 %s3, 1
    %s261 = sor.u32 %s3, %s260
    %s262 = sand.u32 %s261, 85
    %s263 = sshrl.u32 %s262, 1
    %s264 = sor.u32 %s262, %s263
    %s265 = sand.u32 51, %s264
    %s266 = sshrl.u32 %s265, 2
    %s267 = sor.u32 %s265, %s266
    %s268 = sand.u32 15, %s267
    %v269 = vld [vmem:[%s259] sm:%s268]
    %v270 = vunpack.c.l.bf16 %v269
    %v271 = vunpack.c.h.bf16 %v269
    %s272 = scalar_lea.vmem [#allocation1], 624
    %273 = vst [vmem:[%s272] sm:%s3] %v270
    %s274 = scalar_lea.vmem %s0, 308
    %s275 = sshrl.u32 %s3, 1
    %s276 = sor.u32 %s3, %s275
    %s277 = sand.u32 %s276, 85
    %s278 = sshrl.u32 %s277, 1
    %s279 = sor.u32 %s277, %s278
    %s280 = sand.u32 51, %s279
    %s281 = sshrl.u32 %s280, 2
    %s282 = sor.u32 %s280, %s281
    %s283 = sand.u32 15, %s282
    %v284 = vld [vmem:[%s274] sm:%s283]
    %v285 = vunpack.c.l.bf16 %v284
    %v286 = vunpack.c.h.bf16 %v284
    %s287 = scalar_lea.vmem [#allocation1], 616
    %288 = vst [vmem:[%s287] sm:%s3] %v285
    %s289 = scalar_lea.vmem %s0, 304
    %s290 = sshrl.u32 %s3, 1
    %s291 = sor.u32 %s3, %s290
    %s292 = sand.u32 %s291, 85
    %s293 = sshrl.u32 %s292, 1
    %s294 = sor.u32 %s292, %s293
    %s295 = sand.u32 51, %s294
    %s296 = sshrl.u32 %s295, 2
    %s297 = sor.u32 %s295, %s296
    %s298 = sand.u32 15, %s297
    %v299 = vld [vmem:[%s289] sm:%s298]
    %v300 = vunpack.c.l.bf16 %v299
    %v301 = vunpack.c.h.bf16 %v299
    %s302 = scalar_lea.vmem [#allocation1], 608
    %303 = vst [vmem:[%s302] sm:%s3] %v300
    %s304 = scalar_lea.vmem %s0, 300
    %s305 = sshrl.u32 %s3, 1
    %s306 = sor.u32 %s3, %s305
    %s307 = sand.u32 %s306, 85
    %s308 = sshrl.u32 %s307, 1
    %s309 = sor.u32 %s307, %s308
    %s310 = sand.u32 51, %s309
    %s311 = sshrl.u32 %s310, 2
    %s312 = sor.u32 %s310, %s311
    %s313 = sand.u32 15, %s312
    %v314 = vld [vmem:[%s304] sm:%s313]
    %v315 = vunpack.c.l.bf16 %v314
    %v316 = vunpack.c.h.bf16 %v314
    %s317 = scalar_lea.vmem [#allocation1], 600
    %318 = vst [vmem:[%s317] sm:%s3] %v315
    %s319 = scalar_lea.vmem %s0, 296
    %s320 = sshrl.u32 %s3, 1
    %s321 = sor.u32 %s3, %s320
    %s322 = sand.u32 %s321, 85
    %s323 = sshrl.u32 %s322, 1
    %s324 = sor.u32 %s322, %s323
    %s325 = sand.u32 51, %s324
    %s326 = sshrl.u32 %s325, 2
    %s327 = sor.u32 %s325, %s326
    %s328 = sand.u32 15, %s327
    %v329 = vld [vmem:[%s319] sm:%s328]
    %v330 = vunpack.c.l.bf16 %v329
    %v331 = vunpack.c.h.bf16 %v329
    %s332 = scalar_lea.vmem [#allocation1], 592
    %333 = vst [vmem:[%s332] sm:%s3] %v330
    %s334 = scalar_lea.vmem %s0, 292
    %s335 = sshrl.u32 %s3, 1
    %s336 = sor.u32 %s3, %s335
    %s337 = sand.u32 %s336, 85
    %s338 = sshrl.u32 %s337, 1
    %s339 = sor.u32 %s337, %s338
    %s340 = sand.u32 51, %s339
    %s341 = sshrl.u32 %s340, 2
    %s342 = sor.u32 %s340, %s341
    %s343 = sand.u32 15, %s342
    %v344 = vld [vmem:[%s334] sm:%s343]
    %v345 = vunpack.c.l.bf16 %v344
    %v346 = vunpack.c.h.bf16 %v344
    %s347 = scalar_lea.vmem [#allocation1], 584
    %348 = vst [vmem:[%s347] sm:%s3] %v345
    %s349 = scalar_lea.vmem %s0, 288
    %s350 = sshrl.u32 %s3, 1
    %s351 = sor.u32 %s3, %s350
    %s352 = sand.u32 %s351, 85
    %s353 = sshrl.u32 %s352, 1
    %s354 = sor.u32 %s352, %s353
    %s355 = sand.u32 51, %s354
    %s356 = sshrl.u32 %s355, 2
    %s357 = sor.u32 %s355, %s356
    %s358 = sand.u32 15, %s357
    %v359 = vld [vmem:[%s349] sm:%s358]
    %v360 = vunpack.c.l.bf16 %v359
    %v361 = vunpack.c.h.bf16 %v359
    %s362 = scalar_lea.vmem [#allocation1], 576
    %363 = vst [vmem:[%s362] sm:%s3] %v360
    %s364 = scalar_lea.vmem %s0, 284
    %s365 = sshrl.u32 %s3, 1
    %s366 = sor.u32 %s3, %s365
    %s367 = sand.u32 %s366, 85
    %s368 = sshrl.u32 %s367, 1
    %s369 = sor.u32 %s367, %s368
    %s370 = sand.u32 51, %s369
    %s371 = sshrl.u32 %s370, 2
    %s372 = sor.u32 %s370, %s371
    %s373 = sand.u32 15, %s372
    %v374 = vld [vmem:[%s364] sm:%s373]
    %v375 = vunpack.c.l.bf16 %v374
    %v376 = vunpack.c.h.bf16 %v374
    %s377 = scalar_lea.vmem [#allocation1], 568
    %378 = vst [vmem:[%s377] sm:%s3] %v375
    %s379 = scalar_lea.vmem %s0, 280
    %s380 = sshrl.u32 %s3, 1
    %s381 = sor.u32 %s3, %s380
    %s382 = sand.u32 %s381, 85
    %s383 = sshrl.u32 %s382, 1
    %s384 = sor.u32 %s382, %s383
    %s385 = sand.u32 51, %s384
    %s386 = sshrl.u32 %s385, 2
    %s387 = sor.u32 %s385, %s386
    %s388 = sand.u32 15, %s387
    %v389 = vld [vmem:[%s379] sm:%s388]
    %v390 = vunpack.c.l.bf16 %v389
    %v391 = vunpack.c.h.bf16 %v389
    %s392 = scalar_lea.vmem [#allocation1], 560
    %393 = vst [vmem:[%s392] sm:%s3] %v390
    %s394 = scalar_lea.vmem %s0, 276
    %s395 = sshrl.u32 %s3, 1
    %s396 = sor.u32 %s3, %s395
    %s397 = sand.u32 %s396, 85
    %s398 = sshrl.u32 %s397, 1
    %s399 = sor.u32 %s397, %s398
    %s400 = sand.u32 51, %s399
    %s401 = sshrl.u32 %s400, 2
    %s402 = sor.u32 %s400, %s401
    %s403 = sand.u32 15, %s402
    %v404 = vld [vmem:[%s394] sm:%s403]
    %v405 = vunpack.c.l.bf16 %v404
    %v406 = vunpack.c.h.bf16 %v404
    %s407 = scalar_lea.vmem [#allocation1], 552
    %408 = vst [vmem:[%s407] sm:%s3] %v405
    %s409 = scalar_lea.vmem %s0, 272
    %s410 = sshrl.u32 %s3, 1
    %s411 = sor.u32 %s3, %s410
    %s412 = sand.u32 %s411, 85
    %s413 = sshrl.u32 %s412, 1
    %s414 = sor.u32 %s412, %s413
    %s415 = sand.u32 51, %s414
    %s416 = sshrl.u32 %s415, 2
    %s417 = sor.u32 %s415, %s416
    %s418 = sand.u32 15, %s417
    %v419 = vld [vmem:[%s409] sm:%s418]
    %v420 = vunpack.c.l.bf16 %v419
    %v421 = vunpack.c.h.bf16 %v419
    %s422 = scalar_lea.vmem [#allocation1], 544
    %423 = vst [vmem:[%s422] sm:%s3] %v420
    %s424 = scalar_lea.vmem %s0, 268
    %s425 = sshrl.u32 %s3, 1
    %s426 = sor.u32 %s3, %s425
    %s427 = sand.u32 %s426, 85
    %s428 = sshrl.u32 %s427, 1
    %s429 = sor.u32 %s427, %s428
    %s430 = sand.u32 51, %s429
    %s431 = sshrl.u32 %s430, 2
    %s432 = sor.u32 %s430, %s431
    %s433 = sand.u32 15, %s432
    %v434 = vld [vmem:[%s424] sm:%s433]
    %v435 = vunpack.c.l.bf16 %v434
    %v436 = vunpack.c.h.bf16 %v434
    %s437 = scalar_lea.vmem [#allocation1], 536
    %438 = vst [vmem:[%s437] sm:%s3] %v435
    %s439 = scalar_lea.vmem %s0, 264
    %s440 = sshrl.u32 %s3, 1
    %s441 = sor.u32 %s3, %s440
    %s442 = sand.u32 %s441, 85
    %s443 = sshrl.u32 %s442, 1
    %s444 = sor.u32 %s442, %s443
    %s445 = sand.u32 51, %s444
    %s446 = sshrl.u32 %s445, 2
    %s447 = sor.u32 %s445, %s446
    %s448 = sand.u32 15, %s447
    %v449 = vld [vmem:[%s439] sm:%s448]
    %v450 = vunpack.c.l.bf16 %v449
    %v451 = vunpack.c.h.bf16 %v449
    %s452 = scalar_lea.vmem [#allocation1], 528
    %453 = vst [vmem:[%s452] sm:%s3] %v450
    %s454 = scalar_lea.vmem %s0, 260
    %s455 = sshrl.u32 %s3, 1
    %s456 = sor.u32 %s3, %s455
    %s457 = sand.u32 %s456, 85
    %s458 = sshrl.u32 %s457, 1
    %s459 = sor.u32 %s457, %s458
    %s460 = sand.u32 51, %s459
    %s461 = sshrl.u32 %s460, 2
    %s462 = sor.u32 %s460, %s461
    %s463 = sand.u32 15, %s462
    %v464 = vld [vmem:[%s454] sm:%s463]
    %v465 = vunpack.c.l.bf16 %v464
    %v466 = vunpack.c.h.bf16 %v464
    %s467 = scalar_lea.vmem [#allocation1], 520
    %468 = vst [vmem:[%s467] sm:%s3] %v465
    %s469 = scalar_lea.vmem %s0, 256
    %s470 = sshrl.u32 %s3, 1
    %s471 = sor.u32 %s3, %s470
    %s472 = sand.u32 %s471, 85
    %s473 = sshrl.u32 %s472, 1
    %s474 = sor.u32 %s472, %s473
    %s475 = sand.u32 51, %s474
    %s476 = sshrl.u32 %s475, 2
    %s477 = sor.u32 %s475, %s476
    %s478 = sand.u32 15, %s477
    %v479 = vld [vmem:[%s469] sm:%s478]
    %v480 = vunpack.c.l.bf16 %v479
    %v481 = vunpack.c.h.bf16 %v479
    %s482 = scalar_lea.vmem [#allocation1], 512
    %483 = vst [vmem:[%s482] sm:%s3] %v480
    %s484 = scalar_lea.vmem %s0, 252
    %s485 = sshrl.u32 %s3, 1
    %s486 = sor.u32 %s3, %s485
    %s487 = sand.u32 %s486, 85
    %s488 = sshrl.u32 %s487, 1
    %s489 = sor.u32 %s487, %s488
    %s490 = sand.u32 51, %s489
    %s491 = sshrl.u32 %s490, 2
    %s492 = sor.u32 %s490, %s491
    %s493 = sand.u32 15, %s492
    %v494 = vld [vmem:[%s484] sm:%s493]
    %v495 = vunpack.c.l.bf16 %v494
    %v496 = vunpack.c.h.bf16 %v494
    %s497 = scalar_lea.vmem [#allocation1], 504
    %498 = vst [vmem:[%s497] sm:%s3] %v495
    %s499 = scalar_lea.vmem %s0, 248
    %s500 = sshrl.u32 %s3, 1
    %s501 = sor.u32 %s3, %s500
    %s502 = sand.u32 %s501, 85
    %s503 = sshrl.u32 %s502, 1
    %s504 = sor.u32 %s502, %s503
    %s505 = sand.u32 51, %s504
    %s506 = sshrl.u32 %s505, 2
    %s507 = sor.u32 %s505, %s506
    %s508 = sand.u32 15, %s507
    %v509 = vld [vmem:[%s499] sm:%s508]
    %v510 = vunpack.c.l.bf16 %v509
    %v511 = vunpack.c.h.bf16 %v509
    %s512 = scalar_lea.vmem [#allocation1], 496
    %513 = vst [vmem:[%s512] sm:%s3] %v510
    %s514 = scalar_lea.vmem %s0, 244
    %s515 = sshrl.u32 %s3, 1
    %s516 = sor.u32 %s3, %s515
    %s517 = sand.u32 %s516, 85
    %s518 = sshrl.u32 %s517, 1
    %s519 = sor.u32 %s517, %s518
    %s520 = sand.u32 51, %s519
    %s521 = sshrl.u32 %s520, 2
    %s522 = sor.u32 %s520, %s521
    %s523 = sand.u32 15, %s522
    %v524 = vld [vmem:[%s514] sm:%s523]
    %v525 = vunpack.c.l.bf16 %v524
    %v526 = vunpack.c.h.bf16 %v524
    %s527 = scalar_lea.vmem [#allocation1], 488
    %528 = vst [vmem:[%s527] sm:%s3] %v525
    %s529 = scalar_lea.vmem %s0, 240
    %s530 = sshrl.u32 %s3, 1
    %s531 = sor.u32 %s3, %s530
    %s532 = sand.u32 %s531, 85
    %s533 = sshrl.u32 %s532, 1
    %s534 = sor.u32 %s532, %s533
    %s535 = sand.u32 51, %s534
    %s536 = sshrl.u32 %s535, 2
    %s537 = sor.u32 %s535, %s536
    %s538 = sand.u32 15, %s537
    %v539 = vld [vmem:[%s529] sm:%s538]
    %v540 = vunpack.c.l.bf16 %v539
    %v541 = vunpack.c.h.bf16 %v539
    %s542 = scalar_lea.vmem [#allocation1], 480
    %543 = vst [vmem:[%s542] sm:%s3] %v540
    %s544 = scalar_lea.vmem %s0, 236
    %s545 = sshrl.u32 %s3, 1
    %s546 = sor.u32 %s3, %s545
    %s547 = sand.u32 %s546, 85
    %s548 = sshrl.u32 %s547, 1
    %s549 = sor.u32 %s547, %s548
    %s550 = sand.u32 51, %s549
    %s551 = sshrl.u32 %s550, 2
    %s552 = sor.u32 %s550, %s551
    %s553 = sand.u32 15, %s552
    %v554 = vld [vmem:[%s544] sm:%s553]
    %v555 = vunpack.c.l.bf16 %v554
    %v556 = vunpack.c.h.bf16 %v554
    %s557 = scalar_lea.vmem [#allocation1], 472
    %558 = vst [vmem:[%s557] sm:%s3] %v555
    %s559 = scalar_lea.vmem %s0, 232
    %s560 = sshrl.u32 %s3, 1
    %s561 = sor.u32 %s3, %s560
    %s562 = sand.u32 %s561, 85
    %s563 = sshrl.u32 %s562, 1
    %s564 = sor.u32 %s562, %s563
    %s565 = sand.u32 51, %s564
    %s566 = sshrl.u32 %s565, 2
    %s567 = sor.u32 %s565, %s566
    %s568 = sand.u32 15, %s567
    %v569 = vld [vmem:[%s559] sm:%s568]
    %v570 = vunpack.c.l.bf16 %v569
    %v571 = vunpack.c.h.bf16 %v569
    %s572 = scalar_lea.vmem [#allocation1], 464
    %573 = vst [vmem:[%s572] sm:%s3] %v570
    %s574 = scalar_lea.vmem %s0, 228
    %s575 = sshrl.u32 %s3, 1
    %s576 = sor.u32 %s3, %s575
    %s577 = sand.u32 %s576, 85
    %s578 = sshrl.u32 %s577, 1
    %s579 = sor.u32 %s577, %s578
    %s580 = sand.u32 51, %s579
    %s581 = sshrl.u32 %s580, 2
    %s582 = sor.u32 %s580, %s581
    %s583 = sand.u32 15, %s582
    %v584 = vld [vmem:[%s574] sm:%s583]
    %v585 = vunpack.c.l.bf16 %v584
    %v586 = vunpack.c.h.bf16 %v584
    %s587 = scalar_lea.vmem [#allocation1], 456
    %588 = vst [vmem:[%s587] sm:%s3] %v585
    %s589 = scalar_lea.vmem %s0, 224
    %s590 = sshrl.u32 %s3, 1
    %s591 = sor.u32 %s3, %s590
    %s592 = sand.u32 %s591, 85
    %s593 = sshrl.u32 %s592, 1
    %s594 = sor.u32 %s592, %s593
    %s595 = sand.u32 51, %s594
    %s596 = sshrl.u32 %s595, 2
    %s597 = sor.u32 %s595, %s596
    %s598 = sand.u32 15, %s597
    %v599 = vld [vmem:[%s589] sm:%s598]
    %v600 = vunpack.c.l.bf16 %v599
    %v601 = vunpack.c.h.bf16 %v599
    %s602 = scalar_lea.vmem [#allocation1], 448
    %603 = vst [vmem:[%s602] sm:%s3] %v600
    %s604 = scalar_lea.vmem %s0, 220
    %s605 = sshrl.u32 %s3, 1
    %s606 = sor.u32 %s3, %s605
    %s607 = sand.u32 %s606, 85
    %s608 = sshrl.u32 %s607, 1
    %s609 = sor.u32 %s607, %s608
    %s610 = sand.u32 51, %s609
    %s611 = sshrl.u32 %s610, 2
    %s612 = sor.u32 %s610, %s611
    %s613 = sand.u32 15, %s612
    %v614 = vld [vmem:[%s604] sm:%s613]
    %v615 = vunpack.c.l.bf16 %v614
    %v616 = vunpack.c.h.bf16 %v614
    %s617 = scalar_lea.vmem [#allocation1], 440
    %618 = vst [vmem:[%s617] sm:%s3] %v615
    %s619 = scalar_lea.vmem %s0, 216
    %s620 = sshrl.u32 %s3, 1
    %s621 = sor.u32 %s3, %s620
    %s622 = sand.u32 %s621, 85
    %s623 = sshrl.u32 %s622, 1
    %s624 = sor.u32 %s622, %s623
    %s625 = sand.u32 51, %s624
    %s626 = sshrl.u32 %s625, 2
    %s627 = sor.u32 %s625, %s626
    %s628 = sand.u32 15, %s627
    %v629 = vld [vmem:[%s619] sm:%s628]
    %v630 = vunpack.c.l.bf16 %v629
    %v631 = vunpack.c.h.bf16 %v629
    %s632 = scalar_lea.vmem [#allocation1], 432
    %633 = vst [vmem:[%s632] sm:%s3] %v630
    %s634 = scalar_lea.vmem %s0, 212
    %s635 = sshrl.u32 %s3, 1
    %s636 = sor.u32 %s3, %s635
    %s637 = sand.u32 %s636, 85
    %s638 = sshrl.u32 %s637, 1
    %s639 = sor.u32 %s637, %s638
    %s640 = sand.u32 51, %s639
    %s641 = sshrl.u32 %s640, 2
    %s642 = sor.u32 %s640, %s641
    %s643 = sand.u32 15, %s642
    %v644 = vld [vmem:[%s634] sm:%s643]
    %v645 = vunpack.c.l.bf16 %v644
    %v646 = vunpack.c.h.bf16 %v644
    %s647 = scalar_lea.vmem [#allocation1], 424
    %648 = vst [vmem:[%s647] sm:%s3] %v645
    %s649 = scalar_lea.vmem %s0, 208
    %s650 = sshrl.u32 %s3, 1
    %s651 = sor.u32 %s3, %s650
    %s652 = sand.u32 %s651, 85
    %s653 = sshrl.u32 %s652, 1
    %s654 = sor.u32 %s652, %s653
    %s655 = sand.u32 51, %s654
    %s656 = sshrl.u32 %s655, 2
    %s657 = sor.u32 %s655, %s656
    %s658 = sand.u32 15, %s657
    %v659 = vld [vmem:[%s649] sm:%s658]
    %v660 = vunpack.c.l.bf16 %v659
    %v661 = vunpack.c.h.bf16 %v659
    %s662 = scalar_lea.vmem [#allocation1], 416
    %663 = vst [vmem:[%s662] sm:%s3] %v660
    %s664 = scalar_lea.vmem %s0, 204
    %s665 = sshrl.u32 %s3, 1
    %s666 = sor.u32 %s3, %s665
    %s667 = sand.u32 %s666, 85
    %s668 = sshrl.u32 %s667, 1
    %s669 = sor.u32 %s667, %s668
    %s670 = sand.u32 51, %s669
    %s671 = sshrl.u32 %s670, 2
    %s672 = sor.u32 %s670, %s671
    %s673 = sand.u32 15, %s672
    %v674 = vld [vmem:[%s664] sm:%s673]
    %v675 = vunpack.c.l.bf16 %v674
    %v676 = vunpack.c.h.bf16 %v674
    %s677 = scalar_lea.vmem [#allocation1], 408
    %678 = vst [vmem:[%s677] sm:%s3] %v675
    %s679 = scalar_lea.vmem %s0, 200
    %s680 = sshrl.u32 %s3, 1
    %s681 = sor.u32 %s3, %s680
    %s682 = sand.u32 %s681, 85
    %s683 = sshrl.u32 %s682, 1
    %s684 = sor.u32 %s682, %s683
    %s685 = sand.u32 51, %s684
    %s686 = sshrl.u32 %s685, 2
    %s687 = sor.u32 %s685, %s686
    %s688 = sand.u32 15, %s687
    %v689 = vld [vmem:[%s679] sm:%s688]
    %v690 = vunpack.c.l.bf16 %v689
    %v691 = vunpack.c.h.bf16 %v689
    %s692 = scalar_lea.vmem [#allocation1], 400
    %693 = vst [vmem:[%s692] sm:%s3] %v690
    %s694 = scalar_lea.vmem %s0, 196
    %s695 = sshrl.u32 %s3, 1
    %s696 = sor.u32 %s3, %s695
    %s697 = sand.u32 %s696, 85
    %s698 = sshrl.u32 %s697, 1
    %s699 = sor.u32 %s697, %s698
    %s700 = sand.u32 51, %s699
    %s701 = sshrl.u32 %s700, 2
    %s702 = sor.u32 %s700, %s701
    %s703 = sand.u32 15, %s702
    %v704 = vld [vmem:[%s694] sm:%s703]
    %v705 = vunpack.c.l.bf16 %v704
    %v706 = vunpack.c.h.bf16 %v704
    %s707 = scalar_lea.vmem [#allocation1], 392
    %708 = vst [vmem:[%s707] sm:%s3] %v705
    %s709 = scalar_lea.vmem %s0, 192
    %s710 = sshrl.u32 %s3, 1
    %s711 = sor.u32 %s3, %s710
    %s712 = sand.u32 %s711, 85
    %s713 = sshrl.u32 %s712, 1
    %s714 = sor.u32 %s712, %s713
    %s715 = sand.u32 51, %s714
    %s716 = sshrl.u32 %s715, 2
    %s717 = sor.u32 %s715, %s716
    %s718 = sand.u32 15, %s717
    %v719 = vld [vmem:[%s709] sm:%s718]
    %v720 = vunpack.c.l.bf16 %v719
    %v721 = vunpack.c.h.bf16 %v719
    %s722 = scalar_lea.vmem [#allocation1], 384
    %723 = vst [vmem:[%s722] sm:%s3] %v720
    %s724 = scalar_lea.vmem %s0, 188
    %s725 = sshrl.u32 %s3, 1
    %s726 = sor.u32 %s3, %s725
    %s727 = sand.u32 %s726, 85
    %s728 = sshrl.u32 %s727, 1
    %s729 = sor.u32 %s727, %s728
    %s730 = sand.u32 51, %s729
    %s731 = sshrl.u32 %s730, 2
    %s732 = sor.u32 %s730, %s731
    %s733 = sand.u32 15, %s732
    %v734 = vld [vmem:[%s724] sm:%s733]
    %v735 = vunpack.c.l.bf16 %v734
    %v736 = vunpack.c.h.bf16 %v734
    %s737 = scalar_lea.vmem [#allocation1], 376
    %738 = vst [vmem:[%s737] sm:%s3] %v735
    %s739 = scalar_lea.vmem %s0, 184
    %s740 = sshrl.u32 %s3, 1
    %s741 = sor.u32 %s3, %s740
    %s742 = sand.u32 %s741, 85
    %s743 = sshrl.u32 %s742, 1
    %s744 = sor.u32 %s742, %s743
    %s745 = sand.u32 51, %s744
    %s746 = sshrl.u32 %s745, 2
    %s747 = sor.u32 %s745, %s746
    %s748 = sand.u32 15, %s747
    %v749 = vld [vmem:[%s739] sm:%s748]
    %v750 = vunpack.c.l.bf16 %v749
    %v751 = vunpack.c.h.bf16 %v749
    %s752 = scalar_lea.vmem [#allocation1], 368
    %753 = vst [vmem:[%s752] sm:%s3] %v750
    %s754 = scalar_lea.vmem %s0, 180
    %s755 = sshrl.u32 %s3, 1
    %s756 = sor.u32 %s3, %s755
    %s757 = sand.u32 %s756, 85
    %s758 = sshrl.u32 %s757, 1
    %s759 = sor.u32 %s757, %s758
    %s760 = sand.u32 51, %s759
    %s761 = sshrl.u32 %s760, 2
    %s762 = sor.u32 %s760, %s761
    %s763 = sand.u32 15, %s762
    %v764 = vld [vmem:[%s754] sm:%s763]
    %v765 = vunpack.c.l.bf16 %v764
    %v766 = vunpack.c.h.bf16 %v764
    %s767 = scalar_lea.vmem [#allocation1], 360
    %768 = vst [vmem:[%s767] sm:%s3] %v765
    %s769 = scalar_lea.vmem %s0, 176
    %s770 = sshrl.u32 %s3, 1
    %s771 = sor.u32 %s3, %s770
    %s772 = sand.u32 %s771, 85
    %s773 = sshrl.u32 %s772, 1
    %s774 = sor.u32 %s772, %s773
    %s775 = sand.u32 51, %s774
    %s776 = sshrl.u32 %s775, 2
    %s777 = sor.u32 %s775, %s776
    %s778 = sand.u32 15, %s777
    %v779 = vld [vmem:[%s769] sm:%s778]
    %v780 = vunpack.c.l.bf16 %v779
    %v781 = vunpack.c.h.bf16 %v779
    %s782 = scalar_lea.vmem [#allocation1], 352
    %783 = vst [vmem:[%s782] sm:%s3] %v780
    %s784 = scalar_lea.vmem %s0, 172
    %s785 = sshrl.u32 %s3, 1
    %s786 = sor.u32 %s3, %s785
    %s787 = sand.u32 %s786, 85
    %s788 = sshrl.u32 %s787, 1
    %s789 = sor.u32 %s787, %s788
    %s790 = sand.u32 51, %s789
    %s791 = sshrl.u32 %s790, 2
    %s792 = sor.u32 %s790, %s791
    %s793 = sand.u32 15, %s792
    %v794 = vld [vmem:[%s784] sm:%s793]
    %v795 = vunpack.c.l.bf16 %v794
    %v796 = vunpack.c.h.bf16 %v794
    %s797 = scalar_lea.vmem [#allocation1], 344
    %798 = vst [vmem:[%s797] sm:%s3] %v795
    %s799 = scalar_lea.vmem %s0, 168
    %s800 = sshrl.u32 %s3, 1
    %s801 = sor.u32 %s3, %s800
    %s802 = sand.u32 %s801, 85
    %s803 = sshrl.u32 %s802, 1
    %s804 = sor.u32 %s802, %s803
    %s805 = sand.u32 51, %s804
    %s806 = sshrl.u32 %s805, 2
    %s807 = sor.u32 %s805, %s806
    %s808 = sand.u32 15, %s807
    %v809 = vld [vmem:[%s799] sm:%s808]
    %v810 = vunpack.c.l.bf16 %v809
    %v811 = vunpack.c.h.bf16 %v809
    %s812 = scalar_lea.vmem [#allocation1], 336
    %813 = vst [vmem:[%s812] sm:%s3] %v810
    %s814 = scalar_lea.vmem %s0, 164
    %s815 = sshrl.u32 %s3, 1
    %s816 = sor.u32 %s3, %s815
    %s817 = sand.u32 %s816, 85
    %s818 = sshrl.u32 %s817, 1
    %s819 = sor.u32 %s817, %s818
    %s820 = sand.u32 51, %s819
    %s821 = sshrl.u32 %s820, 2
    %s822 = sor.u32 %s820, %s821
    %s823 = sand.u32 15, %s822
    %v824 = vld [vmem:[%s814] sm:%s823]
    %v825 = vunpack.c.l.bf16 %v824
    %v826 = vunpack.c.h.bf16 %v824
    %s827 = scalar_lea.vmem [#allocation1], 328
    %828 = vst [vmem:[%s827] sm:%s3] %v825
    %s829 = scalar_lea.vmem %s0, 160
    %s830 = sshrl.u32 %s3, 1
    %s831 = sor.u32 %s3, %s830
    %s832 = sand.u32 %s831, 85
    %s833 = sshrl.u32 %s832, 1
    %s834 = sor.u32 %s832, %s833
    %s835 = sand.u32 51, %s834
    %s836 = sshrl.u32 %s835, 2
    %s837 = sor.u32 %s835, %s836
    %s838 = sand.u32 15, %s837
    %v839 = vld [vmem:[%s829] sm:%s838]
    %v840 = vunpack.c.l.bf16 %v839
    %v841 = vunpack.c.h.bf16 %v839
    %s842 = scalar_lea.vmem [#allocation1], 320
    %843 = vst [vmem:[%s842] sm:%s3] %v840
    %s844 = scalar_lea.vmem %s0, 156
    %s845 = sshrl.u32 %s3, 1
    %s846 = sor.u32 %s3, %s845
    %s847 = sand.u32 %s846, 85
    %s848 = sshrl.u32 %s847, 1
    %s849 = sor.u32 %s847, %s848
    %s850 = sand.u32 51, %s849
    %s851 = sshrl.u32 %s850, 2
    %s852 = sor.u32 %s850, %s851
    %s853 = sand.u32 15, %s852
    %v854 = vld [vmem:[%s844] sm:%s853]
    %v855 = vunpack.c.l.bf16 %v854
    %v856 = vunpack.c.h.bf16 %v854
    %s857 = scalar_lea.vmem [#allocation1], 312
    %858 = vst [vmem:[%s857] sm:%s3] %v855
    %s859 = scalar_lea.vmem %s0, 152
    %s860 = sshrl.u32 %s3, 1
    %s861 = sor.u32 %s3, %s860
    %s862 = sand.u32 %s861, 85
    %s863 = sshrl.u32 %s862, 1
    %s864 = sor.u32 %s862, %s863
    %s865 = sand.u32 51, %s864
    %s866 = sshrl.u32 %s865, 2
    %s867 = sor.u32 %s865, %s866
    %s868 = sand.u32 15, %s867
    %v869 = vld [vmem:[%s859] sm:%s868]
    %v870 = vunpack.c.l.bf16 %v869
    %v871 = vunpack.c.h.bf16 %v869
    %s872 = scalar_lea.vmem [#allocation1], 304
    %873 = vst [vmem:[%s872] sm:%s3] %v870
    %s874 = scalar_lea.vmem %s0, 148
    %s875 = sshrl.u32 %s3, 1
    %s876 = sor.u32 %s3, %s875
    %s877 = sand.u32 %s876, 85
    %s878 = sshrl.u32 %s877, 1
    %s879 = sor.u32 %s877, %s878
    %s880 = sand.u32 51, %s879
    %s881 = sshrl.u32 %s880, 2
    %s882 = sor.u32 %s880, %s881
    %s883 = sand.u32 15, %s882
    %v884 = vld [vmem:[%s874] sm:%s883]
    %v885 = vunpack.c.l.bf16 %v884
    %v886 = vunpack.c.h.bf16 %v884
    %s887 = scalar_lea.vmem [#allocation1], 296
    %888 = vst [vmem:[%s887] sm:%s3] %v885
    %s889 = scalar_lea.vmem %s0, 144
    %s890 = sshrl.u32 %s3, 1
    %s891 = sor.u32 %s3, %s890
    %s892 = sand.u32 %s891, 85
    %s893 = sshrl.u32 %s892, 1
    %s894 = sor.u32 %s892, %s893
    %s895 = sand.u32 51, %s894
    %s896 = sshrl.u32 %s895, 2
    %s897 = sor.u32 %s895, %s896
    %s898 = sand.u32 15, %s897
    %v899 = vld [vmem:[%s889] sm:%s898]
    %v900 = vunpack.c.l.bf16 %v899
    %v901 = vunpack.c.h.bf16 %v899
    %s902 = scalar_lea.vmem [#allocation1], 288
    %903 = vst [vmem:[%s902] sm:%s3] %v900
    %s904 = scalar_lea.vmem %s0, 140
    %s905 = sshrl.u32 %s3, 1
    %s906 = sor.u32 %s3, %s905
    %s907 = sand.u32 %s906, 85
    %s908 = sshrl.u32 %s907, 1
    %s909 = sor.u32 %s907, %s908
    %s910 = sand.u32 51, %s909
    %s911 = sshrl.u32 %s910, 2
    %s912 = sor.u32 %s910, %s911
    %s913 = sand.u32 15, %s912
    %v914 = vld [vmem:[%s904] sm:%s913]
    %v915 = vunpack.c.l.bf16 %v914
    %v916 = vunpack.c.h.bf16 %v914
    %s917 = scalar_lea.vmem [#allocation1], 280
    %918 = vst [vmem:[%s917] sm:%s3] %v915
    %s919 = scalar_lea.vmem %s0, 136
    %s920 = sshrl.u32 %s3, 1
    %s921 = sor.u32 %s3, %s920
    %s922 = sand.u32 %s921, 85
    %s923 = sshrl.u32 %s922, 1
    %s924 = sor.u32 %s922, %s923
    %s925 = sand.u32 51, %s924
    %s926 = sshrl.u32 %s925, 2
    %s927 = sor.u32 %s925, %s926
    %s928 = sand.u32 15, %s927
    %v929 = vld [vmem:[%s919] sm:%s928]
    %v930 = vunpack.c.l.bf16 %v929
    %v931 = vunpack.c.h.bf16 %v929
    %s932 = scalar_lea.vmem [#allocation1], 272
    %933 = vst [vmem:[%s932] sm:%s3] %v930
    %s934 = scalar_lea.vmem %s0, 132
    %s935 = sshrl.u32 %s3, 1
    %s936 = sor.u32 %s3, %s935
    %s937 = sand.u32 %s936, 85
    %s938 = sshrl.u32 %s937, 1
    %s939 = sor.u32 %s937, %s938
    %s940 = sand.u32 51, %s939
    %s941 = sshrl.u32 %s940, 2
    %s942 = sor.u32 %s940, %s941
    %s943 = sand.u32 15, %s942
    %v944 = vld [vmem:[%s934] sm:%s943]
    %v945 = vunpack.c.l.bf16 %v944
    %v946 = vunpack.c.h.bf16 %v944
    %s947 = scalar_lea.vmem [#allocation1], 264
    %948 = vst [vmem:[%s947] sm:%s3] %v945
    %s949 = scalar_lea.vmem %s0, 128
    %s950 = sshrl.u32 %s3, 1
    %s951 = sor.u32 %s3, %s950
    %s952 = sand.u32 %s951, 85
    %s953 = sshrl.u32 %s952, 1
    %s954 = sor.u32 %s952, %s953
    %s955 = sand.u32 51, %s954
    %s956 = sshrl.u32 %s955, 2
    %s957 = sor.u32 %s955, %s956
    %s958 = sand.u32 15, %s957
    %v959 = vld [vmem:[%s949] sm:%s958]
    %v960 = vunpack.c.l.bf16 %v959
    %v961 = vunpack.c.h.bf16 %v959
    %s962 = scalar_lea.vmem [#allocation1], 256
    %963 = vst [vmem:[%s962] sm:%s3] %v960
    %s964 = scalar_lea.vmem %s0, 124
    %s965 = sshrl.u32 %s3, 1
    %s966 = sor.u32 %s3, %s965
    %s967 = sand.u32 %s966, 85
    %s968 = sshrl.u32 %s967, 1
    %s969 = sor.u32 %s967, %s968
    %s970 = sand.u32 51, %s969
    %s971 = sshrl.u32 %s970, 2
    %s972 = sor.u32 %s970, %s971
    %s973 = sand.u32 15, %s972
    %v974 = vld [vmem:[%s964] sm:%s973]
    %v975 = vunpack.c.l.bf16 %v974
    %v976 = vunpack.c.h.bf16 %v974
    %s977 = scalar_lea.vmem [#allocation1], 248
    %978 = vst [vmem:[%s977] sm:%s3] %v975
    %s979 = scalar_lea.vmem %s0, 120
    %s980 = sshrl.u32 %s3, 1
    %s981 = sor.u32 %s3, %s980
    %s982 = sand.u32 %s981, 85
    %s983 = sshrl.u32 %s982, 1
    %s984 = sor.u32 %s982, %s983
    %s985 = sand.u32 51, %s984
    %s986 = sshrl.u32 %s985, 2
    %s987 = sor.u32 %s985, %s986
    %s988 = sand.u32 15, %s987
    %v989 = vld [vmem:[%s979] sm:%s988]
    %v990 = vunpack.c.l.bf16 %v989
    %v991 = vunpack.c.h.bf16 %v989
    %s992 = scalar_lea.vmem [#allocation1], 240
    %993 = vst [vmem:[%s992] sm:%s3] %v990
    %s994 = scalar_lea.vmem %s0, 116
    %s995 = sshrl.u32 %s3, 1
    %s996 = sor.u32 %s3, %s995
    %s997 = sand.u32 %s996, 85
    %s998 = sshrl.u32 %s997, 1
    %s999 = sor.u32 %s997, %s998
    %s1000 = sand.u32 51, %s999
    %s1001 = sshrl.u32 %s1000, 2
    %s1002 = sor.u32 %s1000, %s1001
    %s1003 = sand.u32 15, %s1002
    %v1004 = vld [vmem:[%s994] sm:%s1003]
    %v1005 = vunpack.c.l.bf16 %v1004
    %v1006 = vunpack.c.h.bf16 %v1004
    %s1007 = scalar_lea.vmem [#allocation1], 232
    %1008 = vst [vmem:[%s1007] sm:%s3] %v1005
    %s1009 = scalar_lea.vmem %s0, 112
    %s1010 = sshrl.u32 %s3, 1
    %s1011 = sor.u32 %s3, %s1010
    %s1012 = sand.u32 %s1011, 85
    %s1013 = sshrl.u32 %s1012, 1
    %s1014 = sor.u32 %s1012, %s1013
    %s1015 = sand.u32 51, %s1014
    %s1016 = sshrl.u32 %s1015, 2
    %s1017 = sor.u32 %s1015, %s1016
    %s1018 = sand.u32 15, %s1017
    %v1019 = vld [vmem:[%s1009] sm:%s1018]
    %v1020 = vunpack.c.l.bf16 %v1019
    %v1021 = vunpack.c.h.bf16 %v1019
    %s1022 = scalar_lea.vmem [#allocation1], 224
    %1023 = vst [vmem:[%s1022] sm:%s3] %v1020
    %s1024 = scalar_lea.vmem %s0, 108
    %s1025 = sshrl.u32 %s3, 1
    %s1026 = sor.u32 %s3, %s1025
    %s1027 = sand.u32 %s1026, 85
    %s1028 = sshrl.u32 %s1027, 1
    %s1029 = sor.u32 %s1027, %s1028
    %s1030 = sand.u32 51, %s1029
    %s1031 = sshrl.u32 %s1030, 2
    %s1032 = sor.u32 %s1030, %s1031
    %s1033 = sand.u32 15, %s1032
    %v1034 = vld [vmem:[%s1024] sm:%s1033]
    %v1035 = vunpack.c.l.bf16 %v1034
    %v1036 = vunpack.c.h.bf16 %v1034
    %s1037 = scalar_lea.vmem [#allocation1], 216
    %1038 = vst [vmem:[%s1037] sm:%s3] %v1035
    %s1039 = scalar_lea.vmem %s0, 104
    %s1040 = sshrl.u32 %s3, 1
    %s1041 = sor.u32 %s3, %s1040
    %s1042 = sand.u32 %s1041, 85
    %s1043 = sshrl.u32 %s1042, 1
    %s1044 = sor.u32 %s1042, %s1043
    %s1045 = sand.u32 51, %s1044
    %s1046 = sshrl.u32 %s1045, 2
    %s1047 = sor.u32 %s1045, %s1046
    %s1048 = sand.u32 15, %s1047
    %v1049 = vld [vmem:[%s1039] sm:%s1048]
    %v1050 = vunpack.c.l.bf16 %v1049
    %v1051 = vunpack.c.h.bf16 %v1049
    %s1052 = scalar_lea.vmem [#allocation1], 208
    %1053 = vst [vmem:[%s1052] sm:%s3] %v1050
    %s1054 = scalar_lea.vmem %s0, 100
    %s1055 = sshrl.u32 %s3, 1
    %s1056 = sor.u32 %s3, %s1055
    %s1057 = sand.u32 %s1056, 85
    %s1058 = sshrl.u32 %s1057, 1
    %s1059 = sor.u32 %s1057, %s1058
    %s1060 = sand.u32 51, %s1059
    %s1061 = sshrl.u32 %s1060, 2
    %s1062 = sor.u32 %s1060, %s1061
    %s1063 = sand.u32 15, %s1062
    %v1064 = vld [vmem:[%s1054] sm:%s1063]
    %v1065 = vunpack.c.l.bf16 %v1064
    %v1066 = vunpack.c.h.bf16 %v1064
    %s1067 = scalar_lea.vmem [#allocation1], 200
    %1068 = vst [vmem:[%s1067] sm:%s3] %v1065
    %s1069 = scalar_lea.vmem %s0, 96
    %s1070 = sshrl.u32 %s3, 1
    %s1071 = sor.u32 %s3, %s1070
    %s1072 = sand.u32 %s1071, 85
    %s1073 = sshrl.u32 %s1072, 1
    %s1074 = sor.u32 %s1072, %s1073
    %s1075 = sand.u32 51, %s1074
    %s1076 = sshrl.u32 %s1075, 2
    %s1077 = sor.u32 %s1075, %s1076
    %s1078 = sand.u32 15, %s1077
    %v1079 = vld [vmem:[%s1069] sm:%s1078]
    %v1080 = vunpack.c.l.bf16 %v1079
    %v1081 = vunpack.c.h.bf16 %v1079
    %s1082 = scalar_lea.vmem [#allocation1], 192
    %1083 = vst [vmem:[%s1082] sm:%s3] %v1080
    %s1084 = scalar_lea.vmem %s0, 92
    %s1085 = sshrl.u32 %s3, 1
    %s1086 = sor.u32 %s3, %s1085
    %s1087 = sand.u32 %s1086, 85
    %s1088 = sshrl.u32 %s1087, 1
    %s1089 = sor.u32 %s1087, %s1088
    %s1090 = sand.u32 51, %s1089
    %s1091 = sshrl.u32 %s1090, 2
    %s1092 = sor.u32 %s1090, %s1091
    %s1093 = sand.u32 15, %s1092
    %v1094 = vld [vmem:[%s1084] sm:%s1093]
    %v1095 = vunpack.c.l.bf16 %v1094
    %v1096 = vunpack.c.h.bf16 %v1094
    %s1097 = scalar_lea.vmem [#allocation1], 184
    %1098 = vst [vmem:[%s1097] sm:%s3] %v1095
    %s1099 = scalar_lea.vmem %s0, 88
    %s1100 = sshrl.u32 %s3, 1
    %s1101 = sor.u32 %s3, %s1100
    %s1102 = sand.u32 %s1101, 85
    %s1103 = sshrl.u32 %s1102, 1
    %s1104 = sor.u32 %s1102, %s1103
    %s1105 = sand.u32 51, %s1104
    %s1106 = sshrl.u32 %s1105, 2
    %s1107 = sor.u32 %s1105, %s1106
    %s1108 = sand.u32 15, %s1107
    %v1109 = vld [vmem:[%s1099] sm:%s1108]
    %v1110 = vunpack.c.l.bf16 %v1109
    %v1111 = vunpack.c.h.bf16 %v1109
    %s1112 = scalar_lea.vmem [#allocation1], 176
    %1113 = vst [vmem:[%s1112] sm:%s3] %v1110
    %s1114 = scalar_lea.vmem %s0, 84
    %s1115 = sshrl.u32 %s3, 1
    %s1116 = sor.u32 %s3, %s1115
    %s1117 = sand.u32 %s1116, 85
    %s1118 = sshrl.u32 %s1117, 1
    %s1119 = sor.u32 %s1117, %s1118
    %s1120 = sand.u32 51, %s1119
    %s1121 = sshrl.u32 %s1120, 2
    %s1122 = sor.u32 %s1120, %s1121
    %s1123 = sand.u32 15, %s1122
    %v1124 = vld [vmem:[%s1114] sm:%s1123]
    %v1125 = vunpack.c.l.bf16 %v1124
    %v1126 = vunpack.c.h.bf16 %v1124
    %s1127 = scalar_lea.vmem [#allocation1], 168
    %1128 = vst [vmem:[%s1127] sm:%s3] %v1125
    %s1129 = scalar_lea.vmem %s0, 80
    %s1130 = sshrl.u32 %s3, 1
    %s1131 = sor.u32 %s3, %s1130
    %s1132 = sand.u32 %s1131, 85
    %s1133 = sshrl.u32 %s1132, 1
    %s1134 = sor.u32 %s1132, %s1133
    %s1135 = sand.u32 51, %s1134
    %s1136 = sshrl.u32 %s1135, 2
    %s1137 = sor.u32 %s1135, %s1136
    %s1138 = sand.u32 15, %s1137
    %v1139 = vld [vmem:[%s1129] sm:%s1138]
    %v1140 = vunpack.c.l.bf16 %v1139
    %v1141 = vunpack.c.h.bf16 %v1139
    %s1142 = scalar_lea.vmem [#allocation1], 160
    %1143 = vst [vmem:[%s1142] sm:%s3] %v1140
    %s1144 = scalar_lea.vmem %s0, 76
    %s1145 = sshrl.u32 %s3, 1
    %s1146 = sor.u32 %s3, %s1145
    %s1147 = sand.u32 %s1146, 85
    %s1148 = sshrl.u32 %s1147, 1
    %s1149 = sor.u32 %s1147, %s1148
    %s1150 = sand.u32 51, %s1149
    %s1151 = sshrl.u32 %s1150, 2
    %s1152 = sor.u32 %s1150, %s1151
    %s1153 = sand.u32 15, %s1152
    %v1154 = vld [vmem:[%s1144] sm:%s1153]
    %v1155 = vunpack.c.l.bf16 %v1154
    %v1156 = vunpack.c.h.bf16 %v1154
    %s1157 = scalar_lea.vmem [#allocation1], 152
    %1158 = vst [vmem:[%s1157] sm:%s3] %v1155
    %s1159 = scalar_lea.vmem %s0, 72
    %s1160 = sshrl.u32 %s3, 1
    %s1161 = sor.u32 %s3, %s1160
    %s1162 = sand.u32 %s1161, 85
    %s1163 = sshrl.u32 %s1162, 1
    %s1164 = sor.u32 %s1162, %s1163
    %s1165 = sand.u32 51, %s1164
    %s1166 = sshrl.u32 %s1165, 2
    %s1167 = sor.u32 %s1165, %s1166
    %s1168 = sand.u32 15, %s1167
    %v1169 = vld [vmem:[%s1159] sm:%s1168]
    %v1170 = vunpack.c.l.bf16 %v1169
    %v1171 = vunpack.c.h.bf16 %v1169
    %s1172 = scalar_lea.vmem [#allocation1], 144
    %1173 = vst [vmem:[%s1172] sm:%s3] %v1170
    %s1174 = scalar_lea.vmem %s0, 68
    %s1175 = sshrl.u32 %s3, 1
    %s1176 = sor.u32 %s3, %s1175
    %s1177 = sand.u32 %s1176, 85
    %s1178 = sshrl.u32 %s1177, 1
    %s1179 = sor.u32 %s1177, %s1178
    %s1180 = sand.u32 51, %s1179
    %s1181 = sshrl.u32 %s1180, 2
    %s1182 = sor.u32 %s1180, %s1181
    %s1183 = sand.u32 15, %s1182
    %v1184 = vld [vmem:[%s1174] sm:%s1183]
    %v1185 = vunpack.c.l.bf16 %v1184
    %v1186 = vunpack.c.h.bf16 %v1184
    %s1187 = scalar_lea.vmem [#allocation1], 136
    %1188 = vst [vmem:[%s1187] sm:%s3] %v1185
    %s1189 = scalar_lea.vmem %s0, 64
    %s1190 = sshrl.u32 %s3, 1
    %s1191 = sor.u32 %s3, %s1190
    %s1192 = sand.u32 %s1191, 85
    %s1193 = sshrl.u32 %s1192, 1
    %s1194 = sor.u32 %s1192, %s1193
    %s1195 = sand.u32 51, %s1194
    %s1196 = sshrl.u32 %s1195, 2
    %s1197 = sor.u32 %s1195, %s1196
    %s1198 = sand.u32 15, %s1197
    %v1199 = vld [vmem:[%s1189] sm:%s1198]
    %v1200 = vunpack.c.l.bf16 %v1199
    %v1201 = vunpack.c.h.bf16 %v1199
    %s1202 = scalar_lea.vmem [#allocation1], 128
    %1203 = vst [vmem:[%s1202] sm:%s3] %v1200
    %s1204 = scalar_lea.vmem %s0, 60
    %s1205 = sshrl.u32 %s3, 1
    %s1206 = sor.u32 %s3, %s1205
    %s1207 = sand.u32 %s1206, 85
    %s1208 = sshrl.u32 %s1207, 1
    %s1209 = sor.u32 %s1207, %s1208
    %s1210 = sand.u32 51, %s1209
    %s1211 = sshrl.u32 %s1210, 2
    %s1212 = sor.u32 %s1210, %s1211
    %s1213 = sand.u32 15, %s1212
    %v1214 = vld [vmem:[%s1204] sm:%s1213]
    %v1215 = vunpack.c.l.bf16 %v1214
    %v1216 = vunpack.c.h.bf16 %v1214
    %s1217 = scalar_lea.vmem [#allocation1], 120
    %1218 = vst [vmem:[%s1217] sm:%s3] %v1215
    %s1219 = scalar_lea.vmem %s0, 56
    %s1220 = sshrl.u32 %s3, 1
    %s1221 = sor.u32 %s3, %s1220
    %s1222 = sand.u32 %s1221, 85
    %s1223 = sshrl.u32 %s1222, 1
    %s1224 = sor.u32 %s1222, %s1223
    %s1225 = sand.u32 51, %s1224
    %s1226 = sshrl.u32 %s1225, 2
    %s1227 = sor.u32 %s1225, %s1226
    %s1228 = sand.u32 15, %s1227
    %v1229 = vld [vmem:[%s1219] sm:%s1228]
    %v1230 = vunpack.c.l.bf16 %v1229
    %v1231 = vunpack.c.h.bf16 %v1229
    %s1232 = scalar_lea.vmem [#allocation1], 112
    %1233 = vst [vmem:[%s1232] sm:%s3] %v1230
    %s1234 = scalar_lea.vmem %s0, 52
    %s1235 = sshrl.u32 %s3, 1
    %s1236 = sor.u32 %s3, %s1235
    %s1237 = sand.u32 %s1236, 85
    %s1238 = sshrl.u32 %s1237, 1
    %s1239 = sor.u32 %s1237, %s1238
    %s1240 = sand.u32 51, %s1239
    %s1241 = sshrl.u32 %s1240, 2
    %s1242 = sor.u32 %s1240, %s1241
    %s1243 = sand.u32 15, %s1242
    %v1244 = vld [vmem:[%s1234] sm:%s1243]
    %v1245 = vunpack.c.l.bf16 %v1244
    %v1246 = vunpack.c.h.bf16 %v1244
    %s1247 = scalar_lea.vmem [#allocation1], 104
    %1248 = vst [vmem:[%s1247] sm:%s3] %v1245
    %s1249 = scalar_lea.vmem %s0, 48
    %s1250 = sshrl.u32 %s3, 1
    %s1251 = sor.u32 %s3, %s1250
    %s1252 = sand.u32 %s1251, 85
    %s1253 = sshrl.u32 %s1252, 1
    %s1254 = sor.u32 %s1252, %s1253
    %s1255 = sand.u32 51, %s1254
    %s1256 = sshrl.u32 %s1255, 2
    %s1257 = sor.u32 %s1255, %s1256
    %s1258 = sand.u32 15, %s1257
    %v1259 = vld [vmem:[%s1249] sm:%s1258]
    %v1260 = vunpack.c.l.bf16 %v1259
    %v1261 = vunpack.c.h.bf16 %v1259
    %s1262 = scalar_lea.vmem [#allocation1], 96
    %1263 = vst [vmem:[%s1262] sm:%s3] %v1260
    %s1264 = scalar_lea.vmem %s0, 44
    %s1265 = sshrl.u32 %s3, 1
    %s1266 = sor.u32 %s3, %s1265
    %s1267 = sand.u32 %s1266, 85
    %s1268 = sshrl.u32 %s1267, 1
    %s1269 = sor.u32 %s1267, %s1268
    %s1270 = sand.u32 51, %s1269
    %s1271 = sshrl.u32 %s1270, 2
    %s1272 = sor.u32 %s1270, %s1271
    %s1273 = sand.u32 15, %s1272
    %v1274 = vld [vmem:[%s1264] sm:%s1273]
    %v1275 = vunpack.c.l.bf16 %v1274
    %v1276 = vunpack.c.h.bf16 %v1274
    %s1277 = scalar_lea.vmem [#allocation1], 88
    %1278 = vst [vmem:[%s1277] sm:%s3] %v1275
    %s1279 = scalar_lea.vmem %s0, 40
    %s1280 = sshrl.u32 %s3, 1
    %s1281 = sor.u32 %s3, %s1280
    %s1282 = sand.u32 %s1281, 85
    %s1283 = sshrl.u32 %s1282, 1
    %s1284 = sor.u32 %s1282, %s1283
    %s1285 = sand.u32 51, %s1284
    %s1286 = sshrl.u32 %s1285, 2
    %s1287 = sor.u32 %s1285, %s1286
    %s1288 = sand.u32 15, %s1287
    %v1289 = vld [vmem:[%s1279] sm:%s1288]
    %v1290 = vunpack.c.l.bf16 %v1289
    %v1291 = vunpack.c.h.bf16 %v1289
    %s1292 = scalar_lea.vmem [#allocation1], 80
    %1293 = vst [vmem:[%s1292] sm:%s3] %v1290
    %s1294 = scalar_lea.vmem %s0, 36
    %s1295 = sshrl.u32 %s3, 1
    %s1296 = sor.u32 %s3, %s1295
    %s1297 = sand.u32 %s1296, 85
    %s1298 = sshrl.u32 %s1297, 1
    %s1299 = sor.u32 %s1297, %s1298
    %s1300 = sand.u32 51, %s1299
    %s1301 = sshrl.u32 %s1300, 2
    %s1302 = sor.u32 %s1300, %s1301
    %s1303 = sand.u32 15, %s1302
    %v1304 = vld [vmem:[%s1294] sm:%s1303]
    %v1305 = vunpack.c.l.bf16 %v1304
    %v1306 = vunpack.c.h.bf16 %v1304
    %s1307 = scalar_lea.vmem [#allocation1], 72
    %1308 = vst [vmem:[%s1307] sm:%s3] %v1305
    %s1309 = scalar_lea.vmem %s0, 32
    %s1310 = sshrl.u32 %s3, 1
    %s1311 = sor.u32 %s3, %s1310
    %s1312 = sand.u32 %s1311, 85
    %s1313 = sshrl.u32 %s1312, 1
    %s1314 = sor.u32 %s1312, %s1313
    %s1315 = sand.u32 51, %s1314
    %s1316 = sshrl.u32 %s1315, 2
    %s1317 = sor.u32 %s1315, %s1316
    %s1318 = sand.u32 15, %s1317
    %v1319 = vld [vmem:[%s1309] sm:%s1318]
    %v1320 = vunpack.c.l.bf16 %v1319
    %v1321 = vunpack.c.h.bf16 %v1319
    %s1322 = scalar_lea.vmem [#allocation1], 64
    %1323 = vst [vmem:[%s1322] sm:%s3] %v1320
    %s1324 = scalar_lea.vmem %s0, 28
    %s1325 = sshrl.u32 %s3, 1
    %s1326 = sor.u32 %s3, %s1325
    %s1327 = sand.u32 %s1326, 85
    %s1328 = sshrl.u32 %s1327, 1
    %s1329 = sor.u32 %s1327, %s1328
    %s1330 = sand.u32 51, %s1329
    %s1331 = sshrl.u32 %s1330, 2
    %s1332 = sor.u32 %s1330, %s1331
    %s1333 = sand.u32 15, %s1332
    %v1334 = vld [vmem:[%s1324] sm:%s1333]
    %v1335 = vunpack.c.l.bf16 %v1334
    %v1336 = vunpack.c.h.bf16 %v1334
    %s1337 = scalar_lea.vmem [#allocation1], 56
    %1338 = vst [vmem:[%s1337] sm:%s3] %v1335
    %s1339 = scalar_lea.vmem %s0, 24
    %s1340 = sshrl.u32 %s3, 1
    %s1341 = sor.u32 %s3, %s1340
    %s1342 = sand.u32 %s1341, 85
    %s1343 = sshrl.u32 %s1342, 1
    %s1344 = sor.u32 %s1342, %s1343
    %s1345 = sand.u32 51, %s1344
    %s1346 = sshrl.u32 %s1345, 2
    %s1347 = sor.u32 %s1345, %s1346
    %s1348 = sand.u32 15, %s1347
    %v1349 = vld [vmem:[%s1339] sm:%s1348]
    %v1350 = vunpack.c.l.bf16 %v1349
    %v1351 = vunpack.c.h.bf16 %v1349
    %s1352 = scalar_lea.vmem [#allocation1], 48
    %1353 = vst [vmem:[%s1352] sm:%s3] %v1350
    %s1354 = scalar_lea.vmem %s0, 20
    %s1355 = sshrl.u32 %s3, 1
    %s1356 = sor.u32 %s3, %s1355
    %s1357 = sand.u32 %s1356, 85
    %s1358 = sshrl.u32 %s1357, 1
    %s1359 = sor.u32 %s1357, %s1358
    %s1360 = sand.u32 51, %s1359
    %s1361 = sshrl.u32 %s1360, 2
    %s1362 = sor.u32 %s1360, %s1361
    %s1363 = sand.u32 15, %s1362
    %v1364 = vld [vmem:[%s1354] sm:%s1363]
    %v1365 = vunpack.c.l.bf16 %v1364
    %v1366 = vunpack.c.h.bf16 %v1364
    %s1367 = scalar_lea.vmem [#allocation1], 40
    %1368 = vst [vmem:[%s1367] sm:%s3] %v1365
    %s1369 = scalar_lea.vmem %s0, 16
    %s1370 = sshrl.u32 %s3, 1
    %s1371 = sor.u32 %s3, %s1370
    %s1372 = sand.u32 %s1371, 85
    %s1373 = sshrl.u32 %s1372, 1
    %s1374 = sor.u32 %s1372, %s1373
    %s1375 = sand.u32 51, %s1374
    %s1376 = sshrl.u32 %s1375, 2
    %s1377 = sor.u32 %s1375, %s1376
    %s1378 = sand.u32 15, %s1377
    %v1379 = vld [vmem:[%s1369] sm:%s1378]
    %v1380 = vunpack.c.l.bf16 %v1379
    %v1381 = vunpack.c.h.bf16 %v1379
    %s1382 = scalar_lea.vmem [#allocation1], 32
    %1383 = vst [vmem:[%s1382] sm:%s3] %v1380
    %s1384 = scalar_lea.vmem %s0, 12
    %s1385 = sshrl.u32 %s3, 1
    %s1386 = sor.u32 %s3, %s1385
    %s1387 = sand.u32 %s1386, 85
    %s1388 = sshrl.u32 %s1387, 1
    %s1389 = sor.u32 %s1387, %s1388
    %s1390 = sand.u32 51, %s1389
    %s1391 = sshrl.u32 %s1390, 2
    %s1392 = sor.u32 %s1390, %s1391
    %s1393 = sand.u32 15, %s1392
    %v1394 = vld [vmem:[%s1384] sm:%s1393]
    %v1395 = vunpack.c.l.bf16 %v1394
    %v1396 = vunpack.c.h.bf16 %v1394
    %s1397 = scalar_lea.vmem [#allocation1], 24
    %1398 = vst [vmem:[%s1397] sm:%s3] %v1395
    %s1399 = scalar_lea.vmem %s0, 8
    %s1400 = sshrl.u32 %s3, 1
    %s1401 = sor.u32 %s3, %s1400
    %s1402 = sand.u32 %s1401, 85
    %s1403 = sshrl.u32 %s1402, 1
    %s1404 = sor.u32 %s1402, %s1403
    %s1405 = sand.u32 51, %s1404
    %s1406 = sshrl.u32 %s1405, 2
    %s1407 = sor.u32 %s1405, %s1406
    %s1408 = sand.u32 15, %s1407
    %v1409 = vld [vmem:[%s1399] sm:%s1408]
    %v1410 = vunpack.c.l.bf16 %v1409
    %v1411 = vunpack.c.h.bf16 %v1409
    %s1412 = scalar_lea.vmem [#allocation1], 16
    %1413 = vst [vmem:[%s1412] sm:%s3] %v1410
    %s1414 = scalar_lea.vmem %s0, 4
    %s1415 = sshrl.u32 %s3, 1
    %s1416 = sor.u32 %s3, %s1415
    %s1417 = sand.u32 %s1416, 85
    %s1418 = sshrl.u32 %s1417, 1
    %s1419 = sor.u32 %s1417, %s1418
    %s1420 = sand.u32 51, %s1419
    %s1421 = sshrl.u32 %s1420, 2
    %s1422 = sor.u32 %s1420, %s1421
    %s1423 = sand.u32 15, %s1422
    %v1424 = vld [vmem:[%s1414] sm:%s1423]
    %v1425 = vunpack.c.l.bf16 %v1424
    %v1426 = vunpack.c.h.bf16 %v1424
    %s1427 = scalar_lea.vmem [#allocation1], 8
    %1428 = vst [vmem:[%s1427] sm:%s3] %v1425
    %s1429 = sshrl.u32 %s3, 1
    %s1430 = sor.u32 %s3, %s1429
    %s1431 = sand.u32 %s1430, 85
    %s1432 = sshrl.u32 %s1431, 1
    %s1433 = sor.u32 %s1431, %s1432
    %s1434 = sand.u32 51, %s1433
    %s1435 = sshrl.u32 %s1434, 2
    %s1436 = sor.u32 %s1434, %s1435
    %s1437 = sand.u32 15, %s1436
    %v1438 = vld [vmem:[%s0] sm:%s1437]
    %v1439 = vunpack.c.l.bf16 %v1438
    %v1440 = vunpack.c.h.bf16 %v1438
    %1441 = vst [vmem:[#allocation1] sm:%s3] %v1439
    %v1442 = vld [vmem:[#allocation1] ss:$4 sm:$0xff]
    %vm1443 = vcmask 261120
    %1444 = vst.msk [vmem:[#allocation0] ss:$8 sm:$0x3] %vm1443, %v1442
    %s1445 = scalar_lea.vmem [#allocation0], 4294967281
    %1446 = vst.msk [vmem:[%s1445] ss:$8 sm:$0xc] %vm1443, %v1442
    %s1447 = scalar_lea.vmem [#allocation0], 4294967266
    %1448 = vst.msk [vmem:[%s1447] ss:$8 sm:$0x30] %vm1443, %v1442
    %s1449 = scalar_lea.vmem [#allocation0], 4294967251
    %1450 = vst.msk [vmem:[%s1449] ss:$8 sm:$0xc0] %vm1443, %v1442
    %s1451 = scalar_lea.vmem [#allocation1], 32
    %v1452 = vld [vmem:[%s1451] ss:$4 sm:$0xff]
    %vm1453 = vcmask 261120
    %s1454 = scalar_lea.vmem [#allocation0], 4
    %1455 = vst.msk [vmem:[%s1454] ss:$8 sm:$0x3] %vm1453, %v1452
    %s1456 = scalar_lea.vmem [#allocation0], 4294967285
    %1457 = vst.msk [vmem:[%s1456] ss:$8 sm:$0xc] %vm1453, %v1452
    %s1458 = scalar_lea.vmem [#allocation0], 4294967270
    %1459 = vst.msk [vmem:[%s1458] ss:$8 sm:$0x30] %vm1453, %v1452
    %s1460 = scalar_lea.vmem [#allocation0], 4294967255
    %1461 = vst.msk [vmem:[%s1460] ss:$8 sm:$0xc0] %vm1453, %v1452
    %s1462 = scalar_lea.vmem [#allocation1], 64
    %v1463 = vld [vmem:[%s1462] ss:$4 sm:$0xff]
    %vm1464 = vcmask 261120
    %s1465 = scalar_lea.vmem [#allocation0], 16
    %1466 = vst.msk [vmem:[%s1465] ss:$8 sm:$0x3] %vm1464, %v1463
    %s1467 = scalar_lea.vmem [#allocation0], 1
    %1468 = vst.msk [vmem:[%s1467] ss:$8 sm:$0xc] %vm1464, %v1463
    %s1469 = scalar_lea.vmem [#allocation0], 4294967282
    %1470 = vst.msk [vmem:[%s1469] ss:$8 sm:$0x30] %vm1464, %v1463
    %s1471 = scalar_lea.vmem [#allocation0], 4294967267
    %1472 = vst.msk [vmem:[%s1471] ss:$8 sm:$0xc0] %vm1464, %v1463
    %s1473 = scalar_lea.vmem [#allocation1], 96
    %v1474 = vld [vmem:[%s1473] ss:$4 sm:$0xff]
    %vm1475 = vcmask 261120
    %s1476 = scalar_lea.vmem [#allocation0], 20
    %1477 = vst.msk [vmem:[%s1476] ss:$8 sm:$0x3] %vm1475, %v1474
    %s1478 = scalar_lea.vmem [#allocation0], 5
    %1479 = vst.msk [vmem:[%s1478] ss:$8 sm:$0xc] %vm1475, %v1474
    %s1480 = scalar_lea.vmem [#allocation0], 4294967286
    %1481 = vst.msk [vmem:[%s1480] ss:$8 sm:$0x30] %vm1475, %v1474
    %s1482 = scalar_lea.vmem [#allocation0], 4294967271
    %1483 = vst.msk [vmem:[%s1482] ss:$8 sm:$0xc0] %vm1475, %v1474
    %s1484 = scalar_lea.vmem [#allocation1], 128
    %v1485 = vld [vmem:[%s1484] ss:$4 sm:$0xff]
    %vm1486 = vcmask 261120
    %s1487 = scalar_lea.vmem [#allocation0], 32
    %1488 = vst.msk [vmem:[%s1487] ss:$8 sm:$0x3] %vm1486, %v1485
    %s1489 = scalar_lea.vmem [#allocation0], 17
    %1490 = vst.msk [vmem:[%s1489] ss:$8 sm:$0xc] %vm1486, %v1485
    %s1491 = scalar_lea.vmem [#allocation0], 2
    %1492 = vst.msk [vmem:[%s1491] ss:$8 sm:$0x30] %vm1486, %v1485
    %s1493 = scalar_lea.vmem [#allocation0], 4294967283
    %1494 = vst.msk [vmem:[%s1493] ss:$8 sm:$0xc0] %vm1486, %v1485
    %s1495 = scalar_lea.vmem [#allocation1], 160
    %v1496 = vld [vmem:[%s1495] ss:$4 sm:$0xff]
    %vm1497 = vcmask 261120
    %s1498 = scalar_lea.vmem [#allocation0], 36
    %1499 = vst.msk [vmem:[%s1498] ss:$8 sm:$0x3] %vm1497, %v1496
    %s1500 = scalar_lea.vmem [#allocation0], 21
    %1501 = vst.msk [vmem:[%s1500] ss:$8 sm:$0xc] %vm1497, %v1496
    %s1502 = scalar_lea.vmem [#allocation0], 6
    %1503 = vst.msk [vmem:[%s1502] ss:$8 sm:$0x30] %vm1497, %v1496
    %s1504 = scalar_lea.vmem [#allocation0], 4294967287
    %1505 = vst.msk [vmem:[%s1504] ss:$8 sm:$0xc0] %vm1497, %v1496
    %s1506 = scalar_lea.vmem [#allocation1], 192
    %v1507 = vld [vmem:[%s1506] ss:$4 sm:$0xff]
    %vm1508 = vcmask 261120
    %s1509 = scalar_lea.vmem [#allocation0], 48
    %1510 = vst.msk [vmem:[%s1509] ss:$8 sm:$0x3] %vm1508, %v1507
    %s1511 = scalar_lea.vmem [#allocation0], 33
    %1512 = vst.msk [vmem:[%s1511] ss:$8 sm:$0xc] %vm1508, %v1507
    %s1513 = scalar_lea.vmem [#allocation0], 18
    %1514 = vst.msk [vmem:[%s1513] ss:$8 sm:$0x30] %vm1508, %v1507
    %s1515 = scalar_lea.vmem [#allocation0], 3
    %1516 = vst.msk [vmem:[%s1515] ss:$8 sm:$0xc0] %vm1508, %v1507
    %s1517 = scalar_lea.vmem [#allocation1], 224
    %v1518 = vld [vmem:[%s1517] ss:$4 sm:$0xff]
    %vm1519 = vcmask 261120
    %s1520 = scalar_lea.vmem [#allocation0], 52
    %1521 = vst.msk [vmem:[%s1520] ss:$8 sm:$0x3] %vm1519, %v1518
    %s1522 = scalar_lea.vmem [#allocation0], 37
    %1523 = vst.msk [vmem:[%s1522] ss:$8 sm:$0xc] %vm1519, %v1518
    %s1524 = scalar_lea.vmem [#allocation0], 22
    %1525 = vst.msk [vmem:[%s1524] ss:$8 sm:$0x30] %vm1519, %v1518
    %s1526 = scalar_lea.vmem [#allocation0], 7
    %1527 = vst.msk [vmem:[%s1526] ss:$8 sm:$0xc0] %vm1519, %v1518
    %s1528 = scalar_lea.vmem [#allocation1], 256
    %v1529 = vld [vmem:[%s1528] ss:$4 sm:$0xff]
    %vm1530 = vcmask 261120
    %s1531 = scalar_lea.vmem [#allocation0], 64
    %1532 = vst.msk [vmem:[%s1531] ss:$8 sm:$0x3] %vm1530, %v1529
    %s1533 = scalar_lea.vmem [#allocation0], 49
    %1534 = vst.msk [vmem:[%s1533] ss:$8 sm:$0xc] %vm1530, %v1529
    %s1535 = scalar_lea.vmem [#allocation0], 34
    %1536 = vst.msk [vmem:[%s1535] ss:$8 sm:$0x30] %vm1530, %v1529
    %s1537 = scalar_lea.vmem [#allocation0], 19
    %1538 = vst.msk [vmem:[%s1537] ss:$8 sm:$0xc0] %vm1530, %v1529
    %s1539 = scalar_lea.vmem [#allocation1], 288
    %v1540 = vld [vmem:[%s1539] ss:$4 sm:$0xff]
    %vm1541 = vcmask 261120
    %s1542 = scalar_lea.vmem [#allocation0], 68
    %1543 = vst.msk [vmem:[%s1542] ss:$8 sm:$0x3] %vm1541, %v1540
    %s1544 = scalar_lea.vmem [#allocation0], 53
    %1545 = vst.msk [vmem:[%s1544] ss:$8 sm:$0xc] %vm1541, %v1540
    %s1546 = scalar_lea.vmem [#allocation0], 38
    %1547 = vst.msk [vmem:[%s1546] ss:$8 sm:$0x30] %vm1541, %v1540
    %s1548 = scalar_lea.vmem [#allocation0], 23
    %1549 = vst.msk [vmem:[%s1548] ss:$8 sm:$0xc0] %vm1541, %v1540
    %s1550 = scalar_lea.vmem [#allocation1], 320
    %v1551 = vld [vmem:[%s1550] ss:$4 sm:$0xff]
    %vm1552 = vcmask 261120
    %s1553 = scalar_lea.vmem [#allocation0], 80
    %1554 = vst.msk [vmem:[%s1553] ss:$8 sm:$0x3] %vm1552, %v1551
    %s1555 = scalar_lea.vmem [#allocation0], 65
    %1556 = vst.msk [vmem:[%s1555] ss:$8 sm:$0xc] %vm1552, %v1551
    %s1557 = scalar_lea.vmem [#allocation0], 50
    %1558 = vst.msk [vmem:[%s1557] ss:$8 sm:$0x30] %vm1552, %v1551
    %s1559 = scalar_lea.vmem [#allocation0], 35
    %1560 = vst.msk [vmem:[%s1559] ss:$8 sm:$0xc0] %vm1552, %v1551
    %s1561 = scalar_lea.vmem [#allocation1], 352
    %v1562 = vld [vmem:[%s1561] ss:$4 sm:$0xff]
    %vm1563 = vcmask 261120
    %s1564 = scalar_lea.vmem [#allocation0], 84
    %1565 = vst.msk [vmem:[%s1564] ss:$8 sm:$0x3] %vm1563, %v1562
    %s1566 = scalar_lea.vmem [#allocation0], 69
    %1567 = vst.msk [vmem:[%s1566] ss:$8 sm:$0xc] %vm1563, %v1562
    %s1568 = scalar_lea.vmem [#allocation0], 54
    %1569 = vst.msk [vmem:[%s1568] ss:$8 sm:$0x30] %vm1563, %v1562
    %s1570 = scalar_lea.vmem [#allocation0], 39
    %1571 = vst.msk [vmem:[%s1570] ss:$8 sm:$0xc0] %vm1563, %v1562
    %s1572 = scalar_lea.vmem [#allocation1], 384
    %v1573 = vld [vmem:[%s1572] ss:$4 sm:$0xff]
    %vm1574 = vcmask 261120
    %s1575 = scalar_lea.vmem [#allocation0], 96
    %1576 = vst.msk [vmem:[%s1575] ss:$8 sm:$0x3] %vm1574, %v1573
    %s1577 = scalar_lea.vmem [#allocation0], 81
    %1578 = vst.msk [vmem:[%s1577] ss:$8 sm:$0xc] %vm1574, %v1573
    %s1579 = scalar_lea.vmem [#allocation0], 66
    %1580 = vst.msk [vmem:[%s1579] ss:$8 sm:$0x30] %vm1574, %v1573
    %s1581 = scalar_lea.vmem [#allocation0], 51
    %1582 = vst.msk [vmem:[%s1581] ss:$8 sm:$0xc0] %vm1574, %v1573
    %s1583 = scalar_lea.vmem [#allocation1], 416
    %v1584 = vld [vmem:[%s1583] ss:$4 sm:$0xff]
    %vm1585 = vcmask 261120
    %s1586 = scalar_lea.vmem [#allocation0], 100
    %1587 = vst.msk [vmem:[%s1586] ss:$8 sm:$0x3] %vm1585, %v1584
    %s1588 = scalar_lea.vmem [#allocation0], 85
    %1589 = vst.msk [vmem:[%s1588] ss:$8 sm:$0xc] %vm1585, %v1584
    %s1590 = scalar_lea.vmem [#allocation0], 70
    %1591 = vst.msk [vmem:[%s1590] ss:$8 sm:$0x30] %vm1585, %v1584
    %s1592 = scalar_lea.vmem [#allocation0], 55
    %1593 = vst.msk [vmem:[%s1592] ss:$8 sm:$0xc0] %vm1585, %v1584
    %s1594 = scalar_lea.vmem [#allocation1], 448
    %v1595 = vld [vmem:[%s1594] ss:$4 sm:$0xff]
    %vm1596 = vcmask 261120
    %s1597 = scalar_lea.vmem [#allocation0], 112
    %1598 = vst.msk [vmem:[%s1597] ss:$8 sm:$0x3] %vm1596, %v1595
    %s1599 = scalar_lea.vmem [#allocation0], 97
    %1600 = vst.msk [vmem:[%s1599] ss:$8 sm:$0xc] %vm1596, %v1595
    %s1601 = scalar_lea.vmem [#allocation0], 82
    %1602 = vst.msk [vmem:[%s1601] ss:$8 sm:$0x30] %vm1596, %v1595
    %s1603 = scalar_lea.vmem [#allocation0], 67
    %1604 = vst.msk [vmem:[%s1603] ss:$8 sm:$0xc0] %vm1596, %v1595
    %s1605 = scalar_lea.vmem [#allocation1], 480
    %v1606 = vld [vmem:[%s1605] ss:$4 sm:$0xff]
    %vm1607 = vcmask 261120
    %s1608 = scalar_lea.vmem [#allocation0], 116
    %1609 = vst.msk [vmem:[%s1608] ss:$8 sm:$0x3] %vm1607, %v1606
    %s1610 = scalar_lea.vmem [#allocation0], 101
    %1611 = vst.msk [vmem:[%s1610] ss:$8 sm:$0xc] %vm1607, %v1606
    %s1612 = scalar_lea.vmem [#allocation0], 86
    %1613 = vst.msk [vmem:[%s1612] ss:$8 sm:$0x30] %vm1607, %v1606
    %s1614 = scalar_lea.vmem [#allocation0], 71
    %1615 = vst.msk [vmem:[%s1614] ss:$8 sm:$0xc0] %vm1607, %v1606
    %s1616 = scalar_lea.vmem [#allocation1], 512
    %v1617 = vld [vmem:[%s1616] ss:$4 sm:$0xff]
    %vm1618 = vcmask 261120
    %s1619 = scalar_lea.vmem [#allocation0], 128
    %1620 = vst.msk [vmem:[%s1619] ss:$8 sm:$0x3] %vm1618, %v1617
    %s1621 = scalar_lea.vmem [#allocation0], 113
    %1622 = vst.msk [vmem:[%s1621] ss:$8 sm:$0xc] %vm1618, %v1617
    %s1623 = scalar_lea.vmem [#allocation0], 98
    %1624 = vst.msk [vmem:[%s1623] ss:$8 sm:$0x30] %vm1618, %v1617
    %s1625 = scalar_lea.vmem [#allocation0], 83
    %1626 = vst.msk [vmem:[%s1625] ss:$8 sm:$0xc0] %vm1618, %v1617
    %s1627 = scalar_lea.vmem [#allocation1], 544
    %v1628 = vld [vmem:[%s1627] ss:$4 sm:$0xff]
    %vm1629 = vcmask 261120
    %s1630 = scalar_lea.vmem [#allocation0], 132
    %1631 = vst.msk [vmem:[%s1630] ss:$8 sm:$0x3] %vm1629, %v1628
    %s1632 = scalar_lea.vmem [#allocation0], 117
    %1633 = vst.msk [vmem:[%s1632] ss:$8 sm:$0xc] %vm1629, %v1628
    %s1634 = scalar_lea.vmem [#allocation0], 102
    %1635 = vst.msk [vmem:[%s1634] ss:$8 sm:$0x30] %vm1629, %v1628
    %s1636 = scalar_lea.vmem [#allocation0], 87
    %1637 = vst.msk [vmem:[%s1636] ss:$8 sm:$0xc0] %vm1629, %v1628
    %s1638 = scalar_lea.vmem [#allocation1], 576
    %v1639 = vld [vmem:[%s1638] ss:$4 sm:$0xff]
    %vm1640 = vcmask 261120
    %s1641 = scalar_lea.vmem [#allocation0], 144
    %1642 = vst.msk [vmem:[%s1641] ss:$8 sm:$0x3] %vm1640, %v1639
    %s1643 = scalar_lea.vmem [#allocation0], 129
    %1644 = vst.msk [vmem:[%s1643] ss:$8 sm:$0xc] %vm1640, %v1639
    %s1645 = scalar_lea.vmem [#allocation0], 114
    %1646 = vst.msk [vmem:[%s1645] ss:$8 sm:$0x30] %vm1640, %v1639
    %s1647 = scalar_lea.vmem [#allocation0], 99
    %1648 = vst.msk [vmem:[%s1647] ss:$8 sm:$0xc0] %vm1640, %v1639
    %s1649 = scalar_lea.vmem [#allocation1], 608
    %v1650 = vld [vmem:[%s1649] ss:$4 sm:$0xff]
    %vm1651 = vcmask 261120
    %s1652 = scalar_lea.vmem [#allocation0], 148
    %1653 = vst.msk [vmem:[%s1652] ss:$8 sm:$0x3] %vm1651, %v1650
    %s1654 = scalar_lea.vmem [#allocation0], 133
    %1655 = vst.msk [vmem:[%s1654] ss:$8 sm:$0xc] %vm1651, %v1650
    %s1656 = scalar_lea.vmem [#allocation0], 118
    %1657 = vst.msk [vmem:[%s1656] ss:$8 sm:$0x30] %vm1651, %v1650
    %s1658 = scalar_lea.vmem [#allocation0], 103
    %1659 = vst.msk [vmem:[%s1658] ss:$8 sm:$0xc0] %vm1651, %v1650
    %s1660 = scalar_lea.vmem [#allocation1], 640
    %v1661 = vld [vmem:[%s1660] ss:$4 sm:$0xff]
    %vm1662 = vcmask 261120
    %s1663 = scalar_lea.vmem [#allocation0], 160
    %1664 = vst.msk [vmem:[%s1663] ss:$8 sm:$0x3] %vm1662, %v1661
    %s1665 = scalar_lea.vmem [#allocation0], 145
    %1666 = vst.msk [vmem:[%s1665] ss:$8 sm:$0xc] %vm1662, %v1661
    %s1667 = scalar_lea.vmem [#allocation0], 130
    %1668 = vst.msk [vmem:[%s1667] ss:$8 sm:$0x30] %vm1662, %v1661
    %s1669 = scalar_lea.vmem [#allocation0], 115
    %1670 = vst.msk [vmem:[%s1669] ss:$8 sm:$0xc0] %vm1662, %v1661
    %s1671 = scalar_lea.vmem [#allocation1], 672
    %v1672 = vld [vmem:[%s1671] ss:$4 sm:$0xff]
    %vm1673 = vcmask 261120
    %s1674 = scalar_lea.vmem [#allocation0], 164
    %1675 = vst.msk [vmem:[%s1674] ss:$8 sm:$0x3] %vm1673, %v1672
    %s1676 = scalar_lea.vmem [#allocation0], 149
    %1677 = vst.msk [vmem:[%s1676] ss:$8 sm:$0xc] %vm1673, %v1672
    %s1678 = scalar_lea.vmem [#allocation0], 134
    %1679 = vst.msk [vmem:[%s1678] ss:$8 sm:$0x30] %vm1673, %v1672
    %s1680 = scalar_lea.vmem [#allocation0], 119
    %1681 = vst.msk [vmem:[%s1680] ss:$8 sm:$0xc0] %vm1673, %v1672
    %s1682 = scalar_lea.vmem [#allocation1], 704
    %v1683 = vld [vmem:[%s1682] ss:$4 sm:$0xff]
    %vm1684 = vcmask 261120
    %s1685 = scalar_lea.vmem [#allocation0], 176
    %1686 = vst.msk [vmem:[%s1685] ss:$8 sm:$0x3] %vm1684, %v1683
    %s1687 = scalar_lea.vmem [#allocation0], 161
    %1688 = vst.msk [vmem:[%s1687] ss:$8 sm:$0xc] %vm1684, %v1683
    %s1689 = scalar_lea.vmem [#allocation0], 146
    %1690 = vst.msk [vmem:[%s1689] ss:$8 sm:$0x30] %vm1684, %v1683
    %s1691 = scalar_lea.vmem [#allocation0], 131
    %1692 = vst.msk [vmem:[%s1691] ss:$8 sm:$0xc0] %vm1684, %v1683
    %s1693 = scalar_lea.vmem [#allocation1], 736
    %v1694 = vld [vmem:[%s1693] ss:$4 sm:$0xff]
    %vm1695 = vcmask 261120
    %s1696 = scalar_lea.vmem [#allocation0], 180
    %1697 = vst.msk [vmem:[%s1696] ss:$8 sm:$0x3] %vm1695, %v1694
    %s1698 = scalar_lea.vmem [#allocation0], 165
    %1699 = vst.msk [vmem:[%s1698] ss:$8 sm:$0xc] %vm1695, %v1694
    %s1700 = scalar_lea.vmem [#allocation0], 150
    %1701 = vst.msk [vmem:[%s1700] ss:$8 sm:$0x30] %vm1695, %v1694
    %s1702 = scalar_lea.vmem [#allocation0], 135
    %1703 = vst.msk [vmem:[%s1702] ss:$8 sm:$0xc0] %vm1695, %v1694
    %s1704 = scalar_lea.vmem [#allocation1], 3
    %v1705 = vld [vmem:[%s1704] ss:$8 sm:$0xf]
    %s1706 = scalar_lea.vmem [#allocation1], 3
    %v1707 = vld [vmem:[%s1706] ss:$8 sm:$0xf0]
    %vm1708 = vcmask 1047556
    %v1709 = vsel %vm1708, %v1707, %v1705
    %1710 = vrot.lane.b32.xlu0 %v1709, 96
    %v1711 = vpop.permute.xlu0 %1710
    %vm1712 = vcmask 1048320
    %1713 = vst.msk [vmem:[#allocation0] sm:$0xff] %vm1712, %v1711
    %s1714 = scalar_lea.vmem [#allocation1], 131
    %v1715 = vld [vmem:[%s1714] ss:$8 sm:$0xf]
    %s1716 = scalar_lea.vmem [#allocation1], 131
    %v1717 = vld [vmem:[%s1716] ss:$8 sm:$0xf0]
    %vm1718 = vcmask 1047556
    %v1719 = vsel %vm1718, %v1717, %v1715
    %1720 = vrot.lane.b32.xlu0 %v1719, 96
    %v1721 = vpop.permute.xlu0 %1720
    %vm1722 = vcmask 1048320
    %s1723 = scalar_lea.vmem [#allocation0], 32
    %1724 = vst.msk [vmem:[%s1723] sm:$0xff] %vm1722, %v1721
    %s1725 = scalar_lea.vmem [#allocation1], 259
    %v1726 = vld [vmem:[%s1725] ss:$8 sm:$0xf]
    %s1727 = scalar_lea.vmem [#allocation1], 259
    %v1728 = vld [vmem:[%s1727] ss:$8 sm:$0xf0]
    %vm1729 = vcmask 1047556
    %v1730 = vsel %vm1729, %v1728, %v1726
    %1731 = vrot.lane.b32.xlu0 %v1730, 96
    %v1732 = vpop.permute.xlu0 %1731
    %vm1733 = vcmask 1048320
    %s1734 = scalar_lea.vmem [#allocation0], 64
    %1735 = vst.msk [vmem:[%s1734] sm:$0xff] %vm1733, %v1732
    %s1736 = scalar_lea.vmem [#allocation1], 387
    %v1737 = vld [vmem:[%s1736] ss:$8 sm:$0xf]
    %s1738 = scalar_lea.vmem [#allocation1], 387
    %v1739 = vld [vmem:[%s1738] ss:$8 sm:$0xf0]
    %vm1740 = vcmask 1047556
    %v1741 = vsel %vm1740, %v1739, %v1737
    %1742 = vrot.lane.b32.xlu0 %v1741, 96
    %v1743 = vpop.permute.xlu0 %1742
    %vm1744 = vcmask 1048320
    %s1745 = scalar_lea.vmem [#allocation0], 96
    %1746 = vst.msk [vmem:[%s1745] sm:$0xff] %vm1744, %v1743
    %s1747 = scalar_lea.vmem [#allocation1], 515
    %v1748 = vld [vmem:[%s1747] ss:$8 sm:$0xf]
    %s1749 = scalar_lea.vmem [#allocation1], 515
    %v1750 = vld [vmem:[%s1749] ss:$8 sm:$0xf0]
    %vm1751 = vcmask 1047556
    %v1752 = vsel %vm1751, %v1750, %v1748
    %1753 = vrot.lane.b32.xlu0 %v1752, 96
    %v1754 = vpop.permute.xlu0 %1753
    %vm1755 = vcmask 1048320
    %s1756 = scalar_lea.vmem [#allocation0], 128
    %1757 = vst.msk [vmem:[%s1756] sm:$0xff] %vm1755, %v1754
    %s1758 = scalar_lea.vmem [#allocation1], 643
    %v1759 = vld [vmem:[%s1758] ss:$8 sm:$0xf]
    %s1760 = scalar_lea.vmem [#allocation1], 643
    %v1761 = vld [vmem:[%s1760] ss:$8 sm:$0xf0]
    %vm1762 = vcmask 1047556
    %v1763 = vsel %vm1762, %v1761, %v1759
    %1764 = vrot.lane.b32.xlu0 %v1763, 96
    %v1765 = vpop.permute.xlu0 %1764
    %vm1766 = vcmask 1048320
    %s1767 = scalar_lea.vmem [#allocation0], 160
    %1768 = vst.msk [vmem:[%s1767] sm:$0xff] %vm1766, %v1765
    %s1769 = scalar_lea.vmem [#allocation1], 7
    %v1770 = vld [vmem:[%s1769] ss:$8 sm:$0xf]
    %s1771 = scalar_lea.vmem [#allocation1], 7
    %v1772 = vld [vmem:[%s1771] ss:$8 sm:$0xf0]
    %vm1773 = vcmask 1047556
    %v1774 = vsel %vm1773, %v1772, %v1770
    %1775 = vrot.lane.b32.xlu0 %v1774, 96
    %v1776 = vpop.permute.xlu0 %1775
    %vm1777 = vcmask 1048320
    %s1778 = scalar_lea.vmem [#allocation0], 8
    %1779 = vst.msk [vmem:[%s1778] sm:$0xff] %vm1777, %v1776
    %s1780 = scalar_lea.vmem [#allocation1], 135
    %v1781 = vld [vmem:[%s1780] ss:$8 sm:$0xf]
    %s1782 = scalar_lea.vmem [#allocation1], 135
    %v1783 = vld [vmem:[%s1782] ss:$8 sm:$0xf0]
    %vm1784 = vcmask 1047556
    %v1785 = vsel %vm1784, %v1783, %v1781
    %1786 = vrot.lane.b32.xlu0 %v1785, 96
    %v1787 = vpop.permute.xlu0 %1786
    %vm1788 = vcmask 1048320
    %s1789 = scalar_lea.vmem [#allocation0], 40
    %1790 = vst.msk [vmem:[%s1789] sm:$0xff] %vm1788, %v1787
    %s1791 = scalar_lea.vmem [#allocation1], 263
    %v1792 = vld [vmem:[%s1791] ss:$8 sm:$0xf]
    %s1793 = scalar_lea.vmem [#allocation1], 263
    %v1794 = vld [vmem:[%s1793] ss:$8 sm:$0xf0]
    %vm1795 = vcmask 1047556
    %v1796 = vsel %vm1795, %v1794, %v1792
    %1797 = vrot.lane.b32.xlu0 %v1796, 96
    %v1798 = vpop.permute.xlu0 %1797
    %vm1799 = vcmask 1048320
    %s1800 = scalar_lea.vmem [#allocation0], 72
    %1801 = vst.msk [vmem:[%s1800] sm:$0xff] %vm1799, %v1798
    %s1802 = scalar_lea.vmem [#allocation1], 391
    %v1803 = vld [vmem:[%s1802] ss:$8 sm:$0xf]
    %s1804 = scalar_lea.vmem [#allocation1], 391
    %v1805 = vld [vmem:[%s1804] ss:$8 sm:$0xf0]
    %vm1806 = vcmask 1047556
    %v1807 = vsel %vm1806, %v1805, %v1803
    %1808 = vrot.lane.b32.xlu0 %v1807, 96
    %v1809 = vpop.permute.xlu0 %1808
    %vm1810 = vcmask 1048320
    %s1811 = scalar_lea.vmem [#allocation0], 104
    %1812 = vst.msk [vmem:[%s1811] sm:$0xff] %vm1810, %v1809
    %s1813 = scalar_lea.vmem [#allocation1], 519
    %v1814 = vld [vmem:[%s1813] ss:$8 sm:$0xf]
    %s1815 = scalar_lea.vmem [#allocation1], 519
    %v1816 = vld [vmem:[%s1815] ss:$8 sm:$0xf0]
    %vm1817 = vcmask 1047556
    %v1818 = vsel %vm1817, %v1816, %v1814
    %1819 = vrot.lane.b32.xlu0 %v1818, 96
    %v1820 = vpop.permute.xlu0 %1819
    %vm1821 = vcmask 1048320
    %s1822 = scalar_lea.vmem [#allocation0], 136
    %1823 = vst.msk [vmem:[%s1822] sm:$0xff] %vm1821, %v1820
    %s1824 = scalar_lea.vmem [#allocation1], 647
    %v1825 = vld [vmem:[%s1824] ss:$8 sm:$0xf]
    %s1826 = scalar_lea.vmem [#allocation1], 647
    %v1827 = vld [vmem:[%s1826] ss:$8 sm:$0xf0]
    %vm1828 = vcmask 1047556
    %v1829 = vsel %vm1828, %v1827, %v1825
    %1830 = vrot.lane.b32.xlu0 %v1829, 96
    %v1831 = vpop.permute.xlu0 %1830
    %vm1832 = vcmask 1048320
    %s1833 = scalar_lea.vmem [#allocation0], 168
    %1834 = vst.msk [vmem:[%s1833] sm:$0xff] %vm1832, %v1831
    %s1835 = scalar_lea.vmem [#allocation1], 67
    %v1836 = vld [vmem:[%s1835] ss:$8 sm:$0xf]
    %s1837 = scalar_lea.vmem [#allocation1], 67
    %v1838 = vld [vmem:[%s1837] ss:$8 sm:$0xf0]
    %vm1839 = vcmask 1047556
    %v1840 = vsel %vm1839, %v1838, %v1836
    %1841 = vrot.lane.b32.xlu0 %v1840, 96
    %v1842 = vpop.permute.xlu0 %1841
    %vm1843 = vcmask 1048320
    %s1844 = scalar_lea.vmem [#allocation0], 16
    %1845 = vst.msk [vmem:[%s1844] sm:$0xff] %vm1843, %v1842
    %s1846 = scalar_lea.vmem [#allocation1], 195
    %v1847 = vld [vmem:[%s1846] ss:$8 sm:$0xf]
    %s1848 = scalar_lea.vmem [#allocation1], 195
    %v1849 = vld [vmem:[%s1848] ss:$8 sm:$0xf0]
    %vm1850 = vcmask 1047556
    %v1851 = vsel %vm1850, %v1849, %v1847
    %1852 = vrot.lane.b32.xlu0 %v1851, 96
    %v1853 = vpop.permute.xlu0 %1852
    %vm1854 = vcmask 1048320
    %s1855 = scalar_lea.vmem [#allocation0], 48
    %1856 = vst.msk [vmem:[%s1855] sm:$0xff] %vm1854, %v1853
    %s1857 = scalar_lea.vmem [#allocation1], 323
    %v1858 = vld [vmem:[%s1857] ss:$8 sm:$0xf]
    %s1859 = scalar_lea.vmem [#allocation1], 323
    %v1860 = vld [vmem:[%s1859] ss:$8 sm:$0xf0]
    %vm1861 = vcmask 1047556
    %v1862 = vsel %vm1861, %v1860, %v1858
    %1863 = vrot.lane.b32.xlu0 %v1862, 96
    %v1864 = vpop.permute.xlu0 %1863
    %vm1865 = vcmask 1048320
    %s1866 = scalar_lea.vmem [#allocation0], 80
    %1867 = vst.msk [vmem:[%s1866] sm:$0xff] %vm1865, %v1864
    %s1868 = scalar_lea.vmem [#allocation1], 451
    %v1869 = vld [vmem:[%s1868] ss:$8 sm:$0xf]
    %s1870 = scalar_lea.vmem [#allocation1], 451
    %v1871 = vld [vmem:[%s1870] ss:$8 sm:$0xf0]
    %vm1872 = vcmask 1047556
    %v1873 = vsel %vm1872, %v1871, %v1869
    %1874 = vrot.lane.b32.xlu0 %v1873, 96
    %v1875 = vpop.permute.xlu0 %1874
    %vm1876 = vcmask 1048320
    %s1877 = scalar_lea.vmem [#allocation0], 112
    %1878 = vst.msk [vmem:[%s1877] sm:$0xff] %vm1876, %v1875
    %s1879 = scalar_lea.vmem [#allocation1], 579
    %v1880 = vld [vmem:[%s1879] ss:$8 sm:$0xf]
    %s1881 = scalar_lea.vmem [#allocation1], 579
    %v1882 = vld [vmem:[%s1881] ss:$8 sm:$0xf0]
    %vm1883 = vcmask 1047556
    %v1884 = vsel %vm1883, %v1882, %v1880
    %1885 = vrot.lane.b32.xlu0 %v1884, 96
    %v1886 = vpop.permute.xlu0 %1885
    %vm1887 = vcmask 1048320
    %s1888 = scalar_lea.vmem [#allocation0], 144
    %1889 = vst.msk [vmem:[%s1888] sm:$0xff] %vm1887, %v1886
    %s1890 = scalar_lea.vmem [#allocation1], 707
    %v1891 = vld [vmem:[%s1890] ss:$8 sm:$0xf]
    %s1892 = scalar_lea.vmem [#allocation1], 707
    %v1893 = vld [vmem:[%s1892] ss:$8 sm:$0xf0]
    %vm1894 = vcmask 1047556
    %v1895 = vsel %vm1894, %v1893, %v1891
    %1896 = vrot.lane.b32.xlu0 %v1895, 96
    %v1897 = vpop.permute.xlu0 %1896
    %vm1898 = vcmask 1048320
    %s1899 = scalar_lea.vmem [#allocation0], 176
    %1900 = vst.msk [vmem:[%s1899] sm:$0xff] %vm1898, %v1897
    %s1901 = scalar_lea.vmem [#allocation1], 71
    %v1902 = vld [vmem:[%s1901] ss:$8 sm:$0xf]
    %s1903 = scalar_lea.vmem [#allocation1], 71
    %v1904 = vld [vmem:[%s1903] ss:$8 sm:$0xf0]
    %vm1905 = vcmask 1047556
    %v1906 = vsel %vm1905, %v1904, %v1902
    %1907 = vrot.lane.b32.xlu0 %v1906, 96
    %v1908 = vpop.permute.xlu0 %1907
    %vm1909 = vcmask 1048320
    %s1910 = scalar_lea.vmem [#allocation0], 24
    %1911 = vst.msk [vmem:[%s1910] sm:$0xff] %vm1909, %v1908
    %s1912 = scalar_lea.vmem [#allocation1], 199
    %v1913 = vld [vmem:[%s1912] ss:$8 sm:$0xf]
    %s1914 = scalar_lea.vmem [#allocation1], 199
    %v1915 = vld [vmem:[%s1914] ss:$8 sm:$0xf0]
    %vm1916 = vcmask 1047556
    %v1917 = vsel %vm1916, %v1915, %v1913
    %1918 = vrot.lane.b32.xlu0 %v1917, 96
    %v1919 = vpop.permute.xlu0 %1918
    %vm1920 = vcmask 1048320
    %s1921 = scalar_lea.vmem [#allocation0], 56
    %1922 = vst.msk [vmem:[%s1921] sm:$0xff] %vm1920, %v1919
    %s1923 = scalar_lea.vmem [#allocation1], 327
    %v1924 = vld [vmem:[%s1923] ss:$8 sm:$0xf]
    %s1925 = scalar_lea.vmem [#allocation1], 327
    %v1926 = vld [vmem:[%s1925] ss:$8 sm:$0xf0]
    %vm1927 = vcmask 1047556
    %v1928 = vsel %vm1927, %v1926, %v1924
    %1929 = vrot.lane.b32.xlu0 %v1928, 96
    %v1930 = vpop.permute.xlu0 %1929
    %vm1931 = vcmask 1048320
    %s1932 = scalar_lea.vmem [#allocation0], 88
    %1933 = vst.msk [vmem:[%s1932] sm:$0xff] %vm1931, %v1930
    %s1934 = scalar_lea.vmem [#allocation1], 455
    %v1935 = vld [vmem:[%s1934] ss:$8 sm:$0xf]
    %s1936 = scalar_lea.vmem [#allocation1], 455
    %v1937 = vld [vmem:[%s1936] ss:$8 sm:$0xf0]
    %vm1938 = vcmask 1047556
    %v1939 = vsel %vm1938, %v1937, %v1935
    %1940 = vrot.lane.b32.xlu0 %v1939, 96
    %v1941 = vpop.permute.xlu0 %1940
    %vm1942 = vcmask 1048320
    %s1943 = scalar_lea.vmem [#allocation0], 120
    %1944 = vst.msk [vmem:[%s1943] sm:$0xff] %vm1942, %v1941
    %s1945 = scalar_lea.vmem [#allocation1], 583
    %v1946 = vld [vmem:[%s1945] ss:$8 sm:$0xf]
    %s1947 = scalar_lea.vmem [#allocation1], 583
    %v1948 = vld [vmem:[%s1947] ss:$8 sm:$0xf0]
    %vm1949 = vcmask 1047556
    %v1950 = vsel %vm1949, %v1948, %v1946
    %1951 = vrot.lane.b32.xlu0 %v1950, 96
    %v1952 = vpop.permute.xlu0 %1951
    %vm1953 = vcmask 1048320
    %s1954 = scalar_lea.vmem [#allocation0], 152
    %1955 = vst.msk [vmem:[%s1954] sm:$0xff] %vm1953, %v1952
    %s1956 = scalar_lea.vmem [#allocation1], 711
    %v1957 = vld [vmem:[%s1956] ss:$8 sm:$0xf]
    %s1958 = scalar_lea.vmem [#allocation1], 711
    %v1959 = vld [vmem:[%s1958] ss:$8 sm:$0xf0]
    %vm1960 = vcmask 1047556
    %v1961 = vsel %vm1960, %v1959, %v1957
    %1962 = vrot.lane.b32.xlu0 %v1961, 96
    %v1963 = vpop.permute.xlu0 %1962
    %vm1964 = vcmask 1048320
    %s1965 = scalar_lea.vmem [#allocation0], 184
    %1966 = vst.msk [vmem:[%s1965] sm:$0xff] %vm1964, %v1963
    %s1967 = scalar_lea.vmem [#allocation1], 2
    %v1968 = vld [vmem:[%s1967] ss:$8 sm:$0xf]
    %s1969 = scalar_lea.vmem [#allocation1], 2
    %v1970 = vld [vmem:[%s1969] ss:$8 sm:$0xf0]
    %vm1971 = vcmask 1047556
    %v1972 = vsel %vm1971, %v1970, %v1968
    %1973 = vrot.lane.b32.xlu0 %v1972, 64
    %v1974 = vpop.permute.xlu0 %1973
    %vm1975 = vcmask 785920
    %1976 = vst.msk [vmem:[#allocation0] sm:$0xff] %vm1975, %v1974
    %s1977 = scalar_lea.vmem [#allocation1], 130
    %v1978 = vld [vmem:[%s1977] ss:$8 sm:$0xf]
    %s1979 = scalar_lea.vmem [#allocation1], 130
    %v1980 = vld [vmem:[%s1979] ss:$8 sm:$0xf0]
    %vm1981 = vcmask 1047556
    %v1982 = vsel %vm1981, %v1980, %v1978
    %1983 = vrot.lane.b32.xlu0 %v1982, 64
    %v1984 = vpop.permute.xlu0 %1983
    %vm1985 = vcmask 785920
    %s1986 = scalar_lea.vmem [#allocation0], 32
    %1987 = vst.msk [vmem:[%s1986] sm:$0xff] %vm1985, %v1984
    %s1988 = scalar_lea.vmem [#allocation1], 258
    %v1989 = vld [vmem:[%s1988] ss:$8 sm:$0xf]
    %s1990 = scalar_lea.vmem [#allocation1], 258
    %v1991 = vld [vmem:[%s1990] ss:$8 sm:$0xf0]
    %vm1992 = vcmask 1047556
    %v1993 = vsel %vm1992, %v1991, %v1989
    %1994 = vrot.lane.b32.xlu0 %v1993, 64
    %v1995 = vpop.permute.xlu0 %1994
    %vm1996 = vcmask 785920
    %s1997 = scalar_lea.vmem [#allocation0], 64
    %1998 = vst.msk [vmem:[%s1997] sm:$0xff] %vm1996, %v1995
    %s1999 = scalar_lea.vmem [#allocation1], 386
    %v2000 = vld [vmem:[%s1999] ss:$8 sm:$0xf]
    %s2001 = scalar_lea.vmem [#allocation1], 386
    %v2002 = vld [vmem:[%s2001] ss:$8 sm:$0xf0]
    %vm2003 = vcmask 1047556
    %v2004 = vsel %vm2003, %v2002, %v2000
    %2005 = vrot.lane.b32.xlu0 %v2004, 64
    %v2006 = vpop.permute.xlu0 %2005
    %vm2007 = vcmask 785920
    %s2008 = scalar_lea.vmem [#allocation0], 96
    %2009 = vst.msk [vmem:[%s2008] sm:$0xff] %vm2007, %v2006
    %s2010 = scalar_lea.vmem [#allocation1], 514
    %v2011 = vld [vmem:[%s2010] ss:$8 sm:$0xf]
    %s2012 = scalar_lea.vmem [#allocation1], 514
    %v2013 = vld [vmem:[%s2012] ss:$8 sm:$0xf0]
    %vm2014 = vcmask 1047556
    %v2015 = vsel %vm2014, %v2013, %v2011
    %2016 = vrot.lane.b32.xlu0 %v2015, 64
    %v2017 = vpop.permute.xlu0 %2016
    %vm2018 = vcmask 785920
    %s2019 = scalar_lea.vmem [#allocation0], 128
    %2020 = vst.msk [vmem:[%s2019] sm:$0xff] %vm2018, %v2017
    %s2021 = scalar_lea.vmem [#allocation1], 642
    %v2022 = vld [vmem:[%s2021] ss:$8 sm:$0xf]
    %s2023 = scalar_lea.vmem [#allocation1], 642
    %v2024 = vld [vmem:[%s2023] ss:$8 sm:$0xf0]
    %vm2025 = vcmask 1047556
    %v2026 = vsel %vm2025, %v2024, %v2022
    %2027 = vrot.lane.b32.xlu0 %v2026, 64
    %v2028 = vpop.permute.xlu0 %2027
    %vm2029 = vcmask 785920
    %s2030 = scalar_lea.vmem [#allocation0], 160
    %2031 = vst.msk [vmem:[%s2030] sm:$0xff] %vm2029, %v2028
    %s2032 = scalar_lea.vmem [#allocation1], 6
    %v2033 = vld [vmem:[%s2032] ss:$8 sm:$0xf]
    %s2034 = scalar_lea.vmem [#allocation1], 6
    %v2035 = vld [vmem:[%s2034] ss:$8 sm:$0xf0]
    %vm2036 = vcmask 1047556
    %v2037 = vsel %vm2036, %v2035, %v2033
    %2038 = vrot.lane.b32.xlu0 %v2037, 64
    %v2039 = vpop.permute.xlu0 %2038
    %vm2040 = vcmask 785920
    %s2041 = scalar_lea.vmem [#allocation0], 8
    %2042 = vst.msk [vmem:[%s2041] sm:$0xff] %vm2040, %v2039
    %s2043 = scalar_lea.vmem [#allocation1], 134
    %v2044 = vld [vmem:[%s2043] ss:$8 sm:$0xf]
    %s2045 = scalar_lea.vmem [#allocation1], 134
    %v2046 = vld [vmem:[%s2045] ss:$8 sm:$0xf0]
    %vm2047 = vcmask 1047556
    %v2048 = vsel %vm2047, %v2046, %v2044
    %2049 = vrot.lane.b32.xlu0 %v2048, 64
    %v2050 = vpop.permute.xlu0 %2049
    %vm2051 = vcmask 785920
    %s2052 = scalar_lea.vmem [#allocation0], 40
    %2053 = vst.msk [vmem:[%s2052] sm:$0xff] %vm2051, %v2050
    %s2054 = scalar_lea.vmem [#allocation1], 262
    %v2055 = vld [vmem:[%s2054] ss:$8 sm:$0xf]
    %s2056 = scalar_lea.vmem [#allocation1], 262
    %v2057 = vld [vmem:[%s2056] ss:$8 sm:$0xf0]
    %vm2058 = vcmask 1047556
    %v2059 = vsel %vm2058, %v2057, %v2055
    %2060 = vrot.lane.b32.xlu0 %v2059, 64
    %v2061 = vpop.permute.xlu0 %2060
    %vm2062 = vcmask 785920
    %s2063 = scalar_lea.vmem [#allocation0], 72
    %2064 = vst.msk [vmem:[%s2063] sm:$0xff] %vm2062, %v2061
    %s2065 = scalar_lea.vmem [#allocation1], 390
    %v2066 = vld [vmem:[%s2065] ss:$8 sm:$0xf]
    %s2067 = scalar_lea.vmem [#allocation1], 390
    %v2068 = vld [vmem:[%s2067] ss:$8 sm:$0xf0]
    %vm2069 = vcmask 1047556
    %v2070 = vsel %vm2069, %v2068, %v2066
    %2071 = vrot.lane.b32.xlu0 %v2070, 64
    %v2072 = vpop.permute.xlu0 %2071
    %vm2073 = vcmask 785920
    %s2074 = scalar_lea.vmem [#allocation0], 104
    %2075 = vst.msk [vmem:[%s2074] sm:$0xff] %vm2073, %v2072
    %s2076 = scalar_lea.vmem [#allocation1], 518
    %v2077 = vld [vmem:[%s2076] ss:$8 sm:$0xf]
    %s2078 = scalar_lea.vmem [#allocation1], 518
    %v2079 = vld [vmem:[%s2078] ss:$8 sm:$0xf0]
    %vm2080 = vcmask 1047556
    %v2081 = vsel %vm2080, %v2079, %v2077
    %2082 = vrot.lane.b32.xlu0 %v2081, 64
    %v2083 = vpop.permute.xlu0 %2082
    %vm2084 = vcmask 785920
    %s2085 = scalar_lea.vmem [#allocation0], 136
    %2086 = vst.msk [vmem:[%s2085] sm:$0xff] %vm2084, %v2083
    %s2087 = scalar_lea.vmem [#allocation1], 646
    %v2088 = vld [vmem:[%s2087] ss:$8 sm:$0xf]
    %s2089 = scalar_lea.vmem [#allocation1], 646
    %v2090 = vld [vmem:[%s2089] ss:$8 sm:$0xf0]
    %vm2091 = vcmask 1047556
    %v2092 = vsel %vm2091, %v2090, %v2088
    %2093 = vrot.lane.b32.xlu0 %v2092, 64
    %v2094 = vpop.permute.xlu0 %2093
    %vm2095 = vcmask 785920
    %s2096 = scalar_lea.vmem [#allocation0], 168
    %2097 = vst.msk [vmem:[%s2096] sm:$0xff] %vm2095, %v2094
    %s2098 = scalar_lea.vmem [#allocation1], 66
    %v2099 = vld [vmem:[%s2098] ss:$8 sm:$0xf]
    %s2100 = scalar_lea.vmem [#allocation1], 66
    %v2101 = vld [vmem:[%s2100] ss:$8 sm:$0xf0]
    %vm2102 = vcmask 1047556
    %v2103 = vsel %vm2102, %v2101, %v2099
    %2104 = vrot.lane.b32.xlu0 %v2103, 64
    %v2105 = vpop.permute.xlu0 %2104
    %vm2106 = vcmask 785920
    %s2107 = scalar_lea.vmem [#allocation0], 16
    %2108 = vst.msk [vmem:[%s2107] sm:$0xff] %vm2106, %v2105
    %s2109 = scalar_lea.vmem [#allocation1], 194
    %v2110 = vld [vmem:[%s2109] ss:$8 sm:$0xf]
    %s2111 = scalar_lea.vmem [#allocation1], 194
    %v2112 = vld [vmem:[%s2111] ss:$8 sm:$0xf0]
    %vm2113 = vcmask 1047556
    %v2114 = vsel %vm2113, %v2112, %v2110
    %2115 = vrot.lane.b32.xlu0 %v2114, 64
    %v2116 = vpop.permute.xlu0 %2115
    %vm2117 = vcmask 785920
    %s2118 = scalar_lea.vmem [#allocation0], 48
    %2119 = vst.msk [vmem:[%s2118] sm:$0xff] %vm2117, %v2116
    %s2120 = scalar_lea.vmem [#allocation1], 322
    %v2121 = vld [vmem:[%s2120] ss:$8 sm:$0xf]
    %s2122 = scalar_lea.vmem [#allocation1], 322
    %v2123 = vld [vmem:[%s2122] ss:$8 sm:$0xf0]
    %vm2124 = vcmask 1047556
    %v2125 = vsel %vm2124, %v2123, %v2121
    %2126 = vrot.lane.b32.xlu0 %v2125, 64
    %v2127 = vpop.permute.xlu0 %2126
    %vm2128 = vcmask 785920
    %s2129 = scalar_lea.vmem [#allocation0], 80
    %2130 = vst.msk [vmem:[%s2129] sm:$0xff] %vm2128, %v2127
    %s2131 = scalar_lea.vmem [#allocation1], 450
    %v2132 = vld [vmem:[%s2131] ss:$8 sm:$0xf]
    %s2133 = scalar_lea.vmem [#allocation1], 450
    %v2134 = vld [vmem:[%s2133] ss:$8 sm:$0xf0]
    %vm2135 = vcmask 1047556
    %v2136 = vsel %vm2135, %v2134, %v2132
    %2137 = vrot.lane.b32.xlu0 %v2136, 64
    %v2138 = vpop.permute.xlu0 %2137
    %vm2139 = vcmask 785920
    %s2140 = scalar_lea.vmem [#allocation0], 112
    %2141 = vst.msk [vmem:[%s2140] sm:$0xff] %vm2139, %v2138
    %s2142 = scalar_lea.vmem [#allocation1], 578
    %v2143 = vld [vmem:[%s2142] ss:$8 sm:$0xf]
    %s2144 = scalar_lea.vmem [#allocation1], 578
    %v2145 = vld [vmem:[%s2144] ss:$8 sm:$0xf0]
    %vm2146 = vcmask 1047556
    %v2147 = vsel %vm2146, %v2145, %v2143
    %2148 = vrot.lane.b32.xlu0 %v2147, 64
    %v2149 = vpop.permute.xlu0 %2148
    %vm2150 = vcmask 785920
    %s2151 = scalar_lea.vmem [#allocation0], 144
    %2152 = vst.msk [vmem:[%s2151] sm:$0xff] %vm2150, %v2149
    %s2153 = scalar_lea.vmem [#allocation1], 706
    %v2154 = vld [vmem:[%s2153] ss:$8 sm:$0xf]
    %s2155 = scalar_lea.vmem [#allocation1], 706
    %v2156 = vld [vmem:[%s2155] ss:$8 sm:$0xf0]
    %vm2157 = vcmask 1047556
    %v2158 = vsel %vm2157, %v2156, %v2154
    %2159 = vrot.lane.b32.xlu0 %v2158, 64
    %v2160 = vpop.permute.xlu0 %2159
    %vm2161 = vcmask 785920
    %s2162 = scalar_lea.vmem [#allocation0], 176
    %2163 = vst.msk [vmem:[%s2162] sm:$0xff] %vm2161, %v2160
    %s2164 = scalar_lea.vmem [#allocation1], 70
    %v2165 = vld [vmem:[%s2164] ss:$8 sm:$0xf]
    %s2166 = scalar_lea.vmem [#allocation1], 70
    %v2167 = vld [vmem:[%s2166] ss:$8 sm:$0xf0]
    %vm2168 = vcmask 1047556
    %v2169 = vsel %vm2168, %v2167, %v2165
    %2170 = vrot.lane.b32.xlu0 %v2169, 64
    %v2171 = vpop.permute.xlu0 %2170
    %vm2172 = vcmask 785920
    %s2173 = scalar_lea.vmem [#allocation0], 24
    %2174 = vst.msk [vmem:[%s2173] sm:$0xff] %vm2172, %v2171
    %s2175 = scalar_lea.vmem [#allocation1], 198
    %v2176 = vld [vmem:[%s2175] ss:$8 sm:$0xf]
    %s2177 = scalar_lea.vmem [#allocation1], 198
    %v2178 = vld [vmem:[%s2177] ss:$8 sm:$0xf0]
    %vm2179 = vcmask 1047556
    %v2180 = vsel %vm2179, %v2178, %v2176
    %2181 = vrot.lane.b32.xlu0 %v2180, 64
    %v2182 = vpop.permute.xlu0 %2181
    %vm2183 = vcmask 785920
    %s2184 = scalar_lea.vmem [#allocation0], 56
    %2185 = vst.msk [vmem:[%s2184] sm:$0xff] %vm2183, %v2182
    %s2186 = scalar_lea.vmem [#allocation1], 326
    %v2187 = vld [vmem:[%s2186] ss:$8 sm:$0xf]
    %s2188 = scalar_lea.vmem [#allocation1], 326
    %v2189 = vld [vmem:[%s2188] ss:$8 sm:$0xf0]
    %vm2190 = vcmask 1047556
    %v2191 = vsel %vm2190, %v2189, %v2187
    %2192 = vrot.lane.b32.xlu0 %v2191, 64
    %v2193 = vpop.permute.xlu0 %2192
    %vm2194 = vcmask 785920
    %s2195 = scalar_lea.vmem [#allocation0], 88
    %2196 = vst.msk [vmem:[%s2195] sm:$0xff] %vm2194, %v2193
    %s2197 = scalar_lea.vmem [#allocation1], 454
    %v2198 = vld [vmem:[%s2197] ss:$8 sm:$0xf]
    %s2199 = scalar_lea.vmem [#allocation1], 454
    %v2200 = vld [vmem:[%s2199] ss:$8 sm:$0xf0]
    %vm2201 = vcmask 1047556
    %v2202 = vsel %vm2201, %v2200, %v2198
    %2203 = vrot.lane.b32.xlu0 %v2202, 64
    %v2204 = vpop.permute.xlu0 %2203
    %vm2205 = vcmask 785920
    %s2206 = scalar_lea.vmem [#allocation0], 120
    %2207 = vst.msk [vmem:[%s2206] sm:$0xff] %vm2205, %v2204
    %s2208 = scalar_lea.vmem [#allocation1], 582
    %v2209 = vld [vmem:[%s2208] ss:$8 sm:$0xf]
    %s2210 = scalar_lea.vmem [#allocation1], 582
    %v2211 = vld [vmem:[%s2210] ss:$8 sm:$0xf0]
    %vm2212 = vcmask 1047556
    %v2213 = vsel %vm2212, %v2211, %v2209
    %2214 = vrot.lane.b32.xlu0 %v2213, 64
    %v2215 = vpop.permute.xlu0 %2214
    %vm2216 = vcmask 785920
    %s2217 = scalar_lea.vmem [#allocation0], 152
    %2218 = vst.msk [vmem:[%s2217] sm:$0xff] %vm2216, %v2215
    %s2219 = scalar_lea.vmem [#allocation1], 710
    %v2220 = vld [vmem:[%s2219] ss:$8 sm:$0xf]
    %s2221 = scalar_lea.vmem [#allocation1], 710
    %v2222 = vld [vmem:[%s2221] ss:$8 sm:$0xf0]
    %vm2223 = vcmask 1047556
    %v2224 = vsel %vm2223, %v2222, %v2220
    %2225 = vrot.lane.b32.xlu0 %v2224, 64
    %v2226 = vpop.permute.xlu0 %2225
    %vm2227 = vcmask 785920
    %s2228 = scalar_lea.vmem [#allocation0], 184
    %2229 = vst.msk [vmem:[%s2228] sm:$0xff] %vm2227, %v2226
    %s2230 = scalar_lea.vmem [#allocation1], 1
    %v2231 = vld [vmem:[%s2230] ss:$8 sm:$0xf]
    %s2232 = scalar_lea.vmem [#allocation1], 1
    %v2233 = vld [vmem:[%s2232] ss:$8 sm:$0xf0]
    %vm2234 = vcmask 1047556
    %v2235 = vsel %vm2234, %v2233, %v2231
    %2236 = vrot.lane.b32.xlu0 %v2235, 32
    %v2237 = vpop.permute.xlu0 %2236
    %vm2238 = vcmask 523520
    %2239 = vst.msk [vmem:[#allocation0] sm:$0xff] %vm2238, %v2237
    %s2240 = scalar_lea.vmem [#allocation1], 129
    %v2241 = vld [vmem:[%s2240] ss:$8 sm:$0xf]
    %s2242 = scalar_lea.vmem [#allocation1], 129
    %v2243 = vld [vmem:[%s2242] ss:$8 sm:$0xf0]
    %vm2244 = vcmask 1047556
    %v2245 = vsel %vm2244, %v2243, %v2241
    %2246 = vrot.lane.b32.xlu0 %v2245, 32
    %v2247 = vpop.permute.xlu0 %2246
    %vm2248 = vcmask 523520
    %s2249 = scalar_lea.vmem [#allocation0], 32
    %2250 = vst.msk [vmem:[%s2249] sm:$0xff] %vm2248, %v2247
    %s2251 = scalar_lea.vmem [#allocation1], 257
    %v2252 = vld [vmem:[%s2251] ss:$8 sm:$0xf]
    %s2253 = scalar_lea.vmem [#allocation1], 257
    %v2254 = vld [vmem:[%s2253] ss:$8 sm:$0xf0]
    %vm2255 = vcmask 1047556
    %v2256 = vsel %vm2255, %v2254, %v2252
    %2257 = vrot.lane.b32.xlu0 %v2256, 32
    %v2258 = vpop.permute.xlu0 %2257
    %vm2259 = vcmask 523520
    %s2260 = scalar_lea.vmem [#allocation0], 64
    %2261 = vst.msk [vmem:[%s2260] sm:$0xff] %vm2259, %v2258
    %s2262 = scalar_lea.vmem [#allocation1], 385
    %v2263 = vld [vmem:[%s2262] ss:$8 sm:$0xf]
    %s2264 = scalar_lea.vmem [#allocation1], 385
    %v2265 = vld [vmem:[%s2264] ss:$8 sm:$0xf0]
    %vm2266 = vcmask 1047556
    %v2267 = vsel %vm2266, %v2265, %v2263
    %2268 = vrot.lane.b32.xlu0 %v2267, 32
    %v2269 = vpop.permute.xlu0 %2268
    %vm2270 = vcmask 523520
    %s2271 = scalar_lea.vmem [#allocation0], 96
    %2272 = vst.msk [vmem:[%s2271] sm:$0xff] %vm2270, %v2269
    %s2273 = scalar_lea.vmem [#allocation1], 513
    %v2274 = vld [vmem:[%s2273] ss:$8 sm:$0xf]
    %s2275 = scalar_lea.vmem [#allocation1], 513
    %v2276 = vld [vmem:[%s2275] ss:$8 sm:$0xf0]
    %vm2277 = vcmask 1047556
    %v2278 = vsel %vm2277, %v2276, %v2274
    %2279 = vrot.lane.b32.xlu0 %v2278, 32
    %v2280 = vpop.permute.xlu0 %2279
    %vm2281 = vcmask 523520
    %s2282 = scalar_lea.vmem [#allocation0], 128
    %2283 = vst.msk [vmem:[%s2282] sm:$0xff] %vm2281, %v2280
    %s2284 = scalar_lea.vmem [#allocation1], 641
    %v2285 = vld [vmem:[%s2284] ss:$8 sm:$0xf]
    %s2286 = scalar_lea.vmem [#allocation1], 641
    %v2287 = vld [vmem:[%s2286] ss:$8 sm:$0xf0]
    %vm2288 = vcmask 1047556
    %v2289 = vsel %vm2288, %v2287, %v2285
    %2290 = vrot.lane.b32.xlu0 %v2289, 32
    %v2291 = vpop.permute.xlu0 %2290
    %vm2292 = vcmask 523520
    %s2293 = scalar_lea.vmem [#allocation0], 160
    %2294 = vst.msk [vmem:[%s2293] sm:$0xff] %vm2292, %v2291
    %s2295 = scalar_lea.vmem [#allocation1], 5
    %v2296 = vld [vmem:[%s2295] ss:$8 sm:$0xf]
    %s2297 = scalar_lea.vmem [#allocation1], 5
    %v2298 = vld [vmem:[%s2297] ss:$8 sm:$0xf0]
    %vm2299 = vcmask 1047556
    %v2300 = vsel %vm2299, %v2298, %v2296
    %2301 = vrot.lane.b32.xlu0 %v2300, 32
    %v2302 = vpop.permute.xlu0 %2301
    %vm2303 = vcmask 523520
    %s2304 = scalar_lea.vmem [#allocation0], 8
    %2305 = vst.msk [vmem:[%s2304] sm:$0xff] %vm2303, %v2302
    %s2306 = scalar_lea.vmem [#allocation1], 133
    %v2307 = vld [vmem:[%s2306] ss:$8 sm:$0xf]
    %s2308 = scalar_lea.vmem [#allocation1], 133
    %v2309 = vld [vmem:[%s2308] ss:$8 sm:$0xf0]
    %vm2310 = vcmask 1047556
    %v2311 = vsel %vm2310, %v2309, %v2307
    %2312 = vrot.lane.b32.xlu0 %v2311, 32
    %v2313 = vpop.permute.xlu0 %2312
    %vm2314 = vcmask 523520
    %s2315 = scalar_lea.vmem [#allocation0], 40
    %2316 = vst.msk [vmem:[%s2315] sm:$0xff] %vm2314, %v2313
    %s2317 = scalar_lea.vmem [#allocation1], 261
    %v2318 = vld [vmem:[%s2317] ss:$8 sm:$0xf]
    %s2319 = scalar_lea.vmem [#allocation1], 261
    %v2320 = vld [vmem:[%s2319] ss:$8 sm:$0xf0]
    %vm2321 = vcmask 1047556
    %v2322 = vsel %vm2321, %v2320, %v2318
    %2323 = vrot.lane.b32.xlu0 %v2322, 32
    %v2324 = vpop.permute.xlu0 %2323
    %vm2325 = vcmask 523520
    %s2326 = scalar_lea.vmem [#allocation0], 72
    %2327 = vst.msk [vmem:[%s2326] sm:$0xff] %vm2325, %v2324
    %s2328 = scalar_lea.vmem [#allocation1], 389
    %v2329 = vld [vmem:[%s2328] ss:$8 sm:$0xf]
    %s2330 = scalar_lea.vmem [#allocation1], 389
    %v2331 = vld [vmem:[%s2330] ss:$8 sm:$0xf0]
    %vm2332 = vcmask 1047556
    %v2333 = vsel %vm2332, %v2331, %v2329
    %2334 = vrot.lane.b32.xlu0 %v2333, 32
    %v2335 = vpop.permute.xlu0 %2334
    %vm2336 = vcmask 523520
    %s2337 = scalar_lea.vmem [#allocation0], 104
    %2338 = vst.msk [vmem:[%s2337] sm:$0xff] %vm2336, %v2335
    %s2339 = scalar_lea.vmem [#allocation1], 517
    %v2340 = vld [vmem:[%s2339] ss:$8 sm:$0xf]
    %s2341 = scalar_lea.vmem [#allocation1], 517
    %v2342 = vld [vmem:[%s2341] ss:$8 sm:$0xf0]
    %vm2343 = vcmask 1047556
    %v2344 = vsel %vm2343, %v2342, %v2340
    %2345 = vrot.lane.b32.xlu0 %v2344, 32
    %v2346 = vpop.permute.xlu0 %2345
    %vm2347 = vcmask 523520
    %s2348 = scalar_lea.vmem [#allocation0], 136
    %2349 = vst.msk [vmem:[%s2348] sm:$0xff] %vm2347, %v2346
    %s2350 = scalar_lea.vmem [#allocation1], 645
    %v2351 = vld [vmem:[%s2350] ss:$8 sm:$0xf]
    %s2352 = scalar_lea.vmem [#allocation1], 645
    %v2353 = vld [vmem:[%s2352] ss:$8 sm:$0xf0]
    %vm2354 = vcmask 1047556
    %v2355 = vsel %vm2354, %v2353, %v2351
    %2356 = vrot.lane.b32.xlu0 %v2355, 32
    %v2357 = vpop.permute.xlu0 %2356
    %vm2358 = vcmask 523520
    %s2359 = scalar_lea.vmem [#allocation0], 168
    %2360 = vst.msk [vmem:[%s2359] sm:$0xff] %vm2358, %v2357
    %s2361 = scalar_lea.vmem [#allocation1], 65
    %v2362 = vld [vmem:[%s2361] ss:$8 sm:$0xf]
    %s2363 = scalar_lea.vmem [#allocation1], 65
    %v2364 = vld [vmem:[%s2363] ss:$8 sm:$0xf0]
    %vm2365 = vcmask 1047556
    %v2366 = vsel %vm2365, %v2364, %v2362
    %2367 = vrot.lane.b32.xlu0 %v2366, 32
    %v2368 = vpop.permute.xlu0 %2367
    %vm2369 = vcmask 523520
    %s2370 = scalar_lea.vmem [#allocation0], 16
    %2371 = vst.msk [vmem:[%s2370] sm:$0xff] %vm2369, %v2368
    %s2372 = scalar_lea.vmem [#allocation1], 193
    %v2373 = vld [vmem:[%s2372] ss:$8 sm:$0xf]
    %s2374 = scalar_lea.vmem [#allocation1], 193
    %v2375 = vld [vmem:[%s2374] ss:$8 sm:$0xf0]
    %vm2376 = vcmask 1047556
    %v2377 = vsel %vm2376, %v2375, %v2373
    %2378 = vrot.lane.b32.xlu0 %v2377, 32
    %v2379 = vpop.permute.xlu0 %2378
    %vm2380 = vcmask 523520
    %s2381 = scalar_lea.vmem [#allocation0], 48
    %2382 = vst.msk [vmem:[%s2381] sm:$0xff] %vm2380, %v2379
    %s2383 = scalar_lea.vmem [#allocation1], 321
    %v2384 = vld [vmem:[%s2383] ss:$8 sm:$0xf]
    %s2385 = scalar_lea.vmem [#allocation1], 321
    %v2386 = vld [vmem:[%s2385] ss:$8 sm:$0xf0]
    %vm2387 = vcmask 1047556
    %v2388 = vsel %vm2387, %v2386, %v2384
    %2389 = vrot.lane.b32.xlu0 %v2388, 32
    %v2390 = vpop.permute.xlu0 %2389
    %vm2391 = vcmask 523520
    %s2392 = scalar_lea.vmem [#allocation0], 80
    %2393 = vst.msk [vmem:[%s2392] sm:$0xff] %vm2391, %v2390
    %s2394 = scalar_lea.vmem [#allocation1], 449
    %v2395 = vld [vmem:[%s2394] ss:$8 sm:$0xf]
    %s2396 = scalar_lea.vmem [#allocation1], 449
    %v2397 = vld [vmem:[%s2396] ss:$8 sm:$0xf0]
    %vm2398 = vcmask 1047556
    %v2399 = vsel %vm2398, %v2397, %v2395
    %2400 = vrot.lane.b32.xlu0 %v2399, 32
    %v2401 = vpop.permute.xlu0 %2400
    %vm2402 = vcmask 523520
    %s2403 = scalar_lea.vmem [#allocation0], 112
    %2404 = vst.msk [vmem:[%s2403] sm:$0xff] %vm2402, %v2401
    %s2405 = scalar_lea.vmem [#allocation1], 577
    %v2406 = vld [vmem:[%s2405] ss:$8 sm:$0xf]
    %s2407 = scalar_lea.vmem [#allocation1], 577
    %v2408 = vld [vmem:[%s2407] ss:$8 sm:$0xf0]
    %vm2409 = vcmask 1047556
    %v2410 = vsel %vm2409, %v2408, %v2406
    %2411 = vrot.lane.b32.xlu0 %v2410, 32
    %v2412 = vpop.permute.xlu0 %2411
    %vm2413 = vcmask 523520
    %s2414 = scalar_lea.vmem [#allocation0], 144
    %2415 = vst.msk [vmem:[%s2414] sm:$0xff] %vm2413, %v2412
    %s2416 = scalar_lea.vmem [#allocation1], 705
    %v2417 = vld [vmem:[%s2416] ss:$8 sm:$0xf]
    %s2418 = scalar_lea.vmem [#allocation1], 705
    %v2419 = vld [vmem:[%s2418] ss:$8 sm:$0xf0]
    %vm2420 = vcmask 1047556
    %v2421 = vsel %vm2420, %v2419, %v2417
    %2422 = vrot.lane.b32.xlu0 %v2421, 32
    %v2423 = vpop.permute.xlu0 %2422
    %vm2424 = vcmask 523520
    %s2425 = scalar_lea.vmem [#allocation0], 176
    %2426 = vst.msk [vmem:[%s2425] sm:$0xff] %vm2424, %v2423
    %s2427 = scalar_lea.vmem [#allocation1], 69
    %v2428 = vld [vmem:[%s2427] ss:$8 sm:$0xf]
    %s2429 = scalar_lea.vmem [#allocation1], 69
    %v2430 = vld [vmem:[%s2429] ss:$8 sm:$0xf0]
    %vm2431 = vcmask 1047556
    %v2432 = vsel %vm2431, %v2430, %v2428
    %2433 = vrot.lane.b32.xlu0 %v2432, 32
    %v2434 = vpop.permute.xlu0 %2433
    %vm2435 = vcmask 523520
    %s2436 = scalar_lea.vmem [#allocation0], 24
    %2437 = vst.msk [vmem:[%s2436] sm:$0xff] %vm2435, %v2434
    %s2438 = scalar_lea.vmem [#allocation1], 197
    %v2439 = vld [vmem:[%s2438] ss:$8 sm:$0xf]
    %s2440 = scalar_lea.vmem [#allocation1], 197
    %v2441 = vld [vmem:[%s2440] ss:$8 sm:$0xf0]
    %vm2442 = vcmask 1047556
    %v2443 = vsel %vm2442, %v2441, %v2439
    %2444 = vrot.lane.b32.xlu0 %v2443, 32
    %v2445 = vpop.permute.xlu0 %2444
    %vm2446 = vcmask 523520
    %s2447 = scalar_lea.vmem [#allocation0], 56
    %2448 = vst.msk [vmem:[%s2447] sm:$0xff] %vm2446, %v2445
    %s2449 = scalar_lea.vmem [#allocation1], 325
    %v2450 = vld [vmem:[%s2449] ss:$8 sm:$0xf]
    %s2451 = scalar_lea.vmem [#allocation1], 325
    %v2452 = vld [vmem:[%s2451] ss:$8 sm:$0xf0]
    %vm2453 = vcmask 1047556
    %v2454 = vsel %vm2453, %v2452, %v2450
    %2455 = vrot.lane.b32.xlu0 %v2454, 32
    %v2456 = vpop.permute.xlu0 %2455
    %vm2457 = vcmask 523520
    %s2458 = scalar_lea.vmem [#allocation0], 88
    %2459 = vst.msk [vmem:[%s2458] sm:$0xff] %vm2457, %v2456
    %s2460 = scalar_lea.vmem [#allocation1], 453
    %v2461 = vld [vmem:[%s2460] ss:$8 sm:$0xf]
    %s2462 = scalar_lea.vmem [#allocation1], 453
    %v2463 = vld [vmem:[%s2462] ss:$8 sm:$0xf0]
    %vm2464 = vcmask 1047556
    %v2465 = vsel %vm2464, %v2463, %v2461
    %2466 = vrot.lane.b32.xlu0 %v2465, 32
    %v2467 = vpop.permute.xlu0 %2466
    %vm2468 = vcmask 523520
    %s2469 = scalar_lea.vmem [#allocation0], 120
    %2470 = vst.msk [vmem:[%s2469] sm:$0xff] %vm2468, %v2467
    %s2471 = scalar_lea.vmem [#allocation1], 581
    %v2472 = vld [vmem:[%s2471] ss:$8 sm:$0xf]
    %s2473 = scalar_lea.vmem [#allocation1], 581
    %v2474 = vld [vmem:[%s2473] ss:$8 sm:$0xf0]
    %vm2475 = vcmask 1047556
    %v2476 = vsel %vm2475, %v2474, %v2472
    %2477 = vrot.lane.b32.xlu0 %v2476, 32
    %v2478 = vpop.permute.xlu0 %2477
    %vm2479 = vcmask 523520
    %s2480 = scalar_lea.vmem [#allocation0], 152
    %2481 = vst.msk [vmem:[%s2480] sm:$0xff] %vm2479, %v2478
    %s2482 = scalar_lea.vmem [#allocation1], 709
    %v2483 = vld [vmem:[%s2482] ss:$8 sm:$0xf]
    %s2484 = scalar_lea.vmem [#allocation1], 709
    %v2485 = vld [vmem:[%s2484] ss:$8 sm:$0xf0]
    %vm2486 = vcmask 1047556
    %v2487 = vsel %vm2486, %v2485, %v2483
    %2488 = vrot.lane.b32.xlu0 %v2487, 32
    %v2489 = vpop.permute.xlu0 %2488
    %vm2490 = vcmask 523520
    %s2491 = scalar_lea.vmem [#allocation0], 184
    %2492 = vst.msk [vmem:[%s2491] sm:$0xff] %vm2490, %v2489
    %s2494 = ssub.s32 256, 1
    %v2495 = vld [vmem:[#allocation0] sm:%s2494]
    %v2496 = vpack.c.bf16 0.0, %v2495
    %s2498 = ssub.s32 16, 1
    %2499 = vst [vmem:[%s1] sm:%s2498] %v2496
    %s2500 = scalar_lea.vmem [#allocation0], 8
    %v2501 = vld [vmem:[%s2500] sm:%s2494]
    %v2502 = vpack.c.bf16 0.0, %v2501
    %s2504 = ssub.s32 16, 1
    %s2505 = scalar_lea.vmem %s1, 4
    %2506 = vst [vmem:[%s2505] sm:%s2504] %v2502
    %s2507 = scalar_lea.vmem [#allocation0], 16
    %v2508 = vld [vmem:[%s2507] sm:%s2494]
    %v2509 = vpack.c.bf16 0.0, %v2508
    %s2511 = ssub.s32 16, 1
    %s2512 = scalar_lea.vmem %s1, 8
    %2513 = vst [vmem:[%s2512] sm:%s2511] %v2509
    %s2514 = scalar_lea.vmem [#allocation0], 24
    %v2515 = vld [vmem:[%s2514] sm:%s2494]
    %v2516 = vpack.c.bf16 0.0, %v2515
    %s2518 = ssub.s32 16, 1
    %s2519 = scalar_lea.vmem %s1, 12
    %2520 = vst [vmem:[%s2519] sm:%s2518] %v2516
    %s2521 = scalar_lea.vmem [#allocation0], 32
    %v2522 = vld [vmem:[%s2521] sm:%s2494]
    %v2523 = vpack.c.bf16 0.0, %v2522
    %s2525 = ssub.s32 16, 1
    %s2526 = scalar_lea.vmem %s1, 16
    %2527 = vst [vmem:[%s2526] sm:%s2525] %v2523
    %s2528 = scalar_lea.vmem [#allocation0], 40
    %v2529 = vld [vmem:[%s2528] sm:%s2494]
    %v2530 = vpack.c.bf16 0.0, %v2529
    %s2532 = ssub.s32 16, 1
    %s2533 = scalar_lea.vmem %s1, 20
    %2534 = vst [vmem:[%s2533] sm:%s2532] %v2530
    %s2535 = scalar_lea.vmem [#allocation0], 48
    %v2536 = vld [vmem:[%s2535] sm:%s2494]
    %v2537 = vpack.c.bf16 0.0, %v2536
    %s2539 = ssub.s32 16, 1
    %s2540 = scalar_lea.vmem %s1, 24
    %2541 = vst [vmem:[%s2540] sm:%s2539] %v2537
    %s2542 = scalar_lea.vmem [#allocation0], 56
    %v2543 = vld [vmem:[%s2542] sm:%s2494]
    %v2544 = vpack.c.bf16 0.0, %v2543
    %s2546 = ssub.s32 16, 1
    %s2547 = scalar_lea.vmem %s1, 28
    %2548 = vst [vmem:[%s2547] sm:%s2546] %v2544
    %s2549 = scalar_lea.vmem [#allocation0], 64
    %v2550 = vld [vmem:[%s2549] sm:%s2494]
    %v2551 = vpack.c.bf16 0.0, %v2550
    %s2553 = ssub.s32 16, 1
    %s2554 = scalar_lea.vmem %s1, 32
    %2555 = vst [vmem:[%s2554] sm:%s2553] %v2551
    %s2556 = scalar_lea.vmem [#allocation0], 72
    %v2557 = vld [vmem:[%s2556] sm:%s2494]
    %v2558 = vpack.c.bf16 0.0, %v2557
    %s2560 = ssub.s32 16, 1
    %s2561 = scalar_lea.vmem %s1, 36
    %2562 = vst [vmem:[%s2561] sm:%s2560] %v2558
    %s2563 = scalar_lea.vmem [#allocation0], 80
    %v2564 = vld [vmem:[%s2563] sm:%s2494]
    %v2565 = vpack.c.bf16 0.0, %v2564
    %s2567 = ssub.s32 16, 1
    %s2568 = scalar_lea.vmem %s1, 40
    %2569 = vst [vmem:[%s2568] sm:%s2567] %v2565
    %s2570 = scalar_lea.vmem [#allocation0], 88
    %v2571 = vld [vmem:[%s2570] sm:%s2494]
    %v2572 = vpack.c.bf16 0.0, %v2571
    %s2574 = ssub.s32 16, 1
    %s2575 = scalar_lea.vmem %s1, 44
    %2576 = vst [vmem:[%s2575] sm:%s2574] %v2572
    %s2577 = scalar_lea.vmem [#allocation0], 96
    %v2578 = vld [vmem:[%s2577] sm:%s2494]
    %v2579 = vpack.c.bf16 0.0, %v2578
    %s2581 = ssub.s32 16, 1
    %s2582 = scalar_lea.vmem %s1, 48
    %2583 = vst [vmem:[%s2582] sm:%s2581] %v2579
    %s2584 = scalar_lea.vmem [#allocation0], 104
    %v2585 = vld [vmem:[%s2584] sm:%s2494]
    %v2586 = vpack.c.bf16 0.0, %v2585
    %s2588 = ssub.s32 16, 1
    %s2589 = scalar_lea.vmem %s1, 52
    %2590 = vst [vmem:[%s2589] sm:%s2588] %v2586
    %s2591 = scalar_lea.vmem [#allocation0], 112
    %v2592 = vld [vmem:[%s2591] sm:%s2494]
    %v2593 = vpack.c.bf16 0.0, %v2592
    %s2595 = ssub.s32 16, 1
    %s2596 = scalar_lea.vmem %s1, 56
    %2597 = vst [vmem:[%s2596] sm:%s2595] %v2593
    %s2598 = scalar_lea.vmem [#allocation0], 120
    %v2599 = vld [vmem:[%s2598] sm:%s2494]
    %v2600 = vpack.c.bf16 0.0, %v2599
    %s2602 = ssub.s32 16, 1
    %s2603 = scalar_lea.vmem %s1, 60
    %2604 = vst [vmem:[%s2603] sm:%s2602] %v2600
    %s2605 = scalar_lea.vmem [#allocation0], 128
    %v2606 = vld [vmem:[%s2605] sm:%s2494]
    %v2607 = vpack.c.bf16 0.0, %v2606
    %s2609 = ssub.s32 16, 1
    %s2610 = scalar_lea.vmem %s1, 64
    %2611 = vst [vmem:[%s2610] sm:%s2609] %v2607
    %s2612 = scalar_lea.vmem [#allocation0], 136
    %v2613 = vld [vmem:[%s2612] sm:%s2494]
    %v2614 = vpack.c.bf16 0.0, %v2613
    %s2616 = ssub.s32 16, 1
    %s2617 = scalar_lea.vmem %s1, 68
    %2618 = vst [vmem:[%s2617] sm:%s2616] %v2614
    %s2619 = scalar_lea.vmem [#allocation0], 144
    %v2620 = vld [vmem:[%s2619] sm:%s2494]
    %v2621 = vpack.c.bf16 0.0, %v2620
    %s2623 = ssub.s32 16, 1
    %s2624 = scalar_lea.vmem %s1, 72
    %2625 = vst [vmem:[%s2624] sm:%s2623] %v2621
    %s2626 = scalar_lea.vmem [#allocation0], 152
    %v2627 = vld [vmem:[%s2626] sm:%s2494]
    %v2628 = vpack.c.bf16 0.0, %v2627
    %s2630 = ssub.s32 16, 1
    %s2631 = scalar_lea.vmem %s1, 76
    %2632 = vst [vmem:[%s2631] sm:%s2630] %v2628
    %s2633 = scalar_lea.vmem [#allocation0], 160
    %v2634 = vld [vmem:[%s2633] sm:%s2494]
    %v2635 = vpack.c.bf16 0.0, %v2634
    %s2637 = ssub.s32 16, 1
    %s2638 = scalar_lea.vmem %s1, 80
    %2639 = vst [vmem:[%s2638] sm:%s2637] %v2635
    %s2640 = scalar_lea.vmem [#allocation0], 168
    %v2641 = vld [vmem:[%s2640] sm:%s2494]
    %v2642 = vpack.c.bf16 0.0, %v2641
    %s2644 = ssub.s32 16, 1
    %s2645 = scalar_lea.vmem %s1, 84
    %2646 = vst [vmem:[%s2645] sm:%s2644] %v2642
    %s2647 = scalar_lea.vmem [#allocation0], 176
    %v2648 = vld [vmem:[%s2647] sm:%s2494]
    %v2649 = vpack.c.bf16 0.0, %v2648
    %s2651 = ssub.s32 16, 1
    %s2652 = scalar_lea.vmem %s1, 88
    %2653 = vst [vmem:[%s2652] sm:%s2651] %v2649
    %s2654 = scalar_lea.vmem [#allocation0], 184
    %v2655 = vld [vmem:[%s2654] sm:%s2494]
    %v2656 = vpack.c.bf16 0.0, %v2655
    %s2658 = ssub.s32 16, 1
    %s2659 = scalar_lea.vmem %s1, 92
    %2660 = vst [vmem:[%s2659] sm:%s2658] %v2656

// kernel: a_call__.1
$region0: #{a_call__.1}
  #allocation0 [shape = 'u32[]', space=smem, size = 0x4, offset = 0x4, fixed_abs, tag = 'smem constant byte address 0x4 - core index']
  #allocation1 [shape = 'u32[72,128]{1,0:T(1,128)}', space=vmem, size = 0x9000, scoped, tag = 'internal scratch']
  %s0 = inlined_call_operand.vmem [shape: bf16[12,72], index: 0, kind: input, shape index: {}]
  %s1 = inlined_call_operand.vmem [shape: bf16[72,96], index: 1, kind: input, shape index: {}]
  %s2 = inlined_call_operand.vmem [shape: bf16[16,12], index: 2, kind: input, shape index: {}]
  %s3 = inlined_call_operand.vmem [shape: f32[1,96], index: 3, kind: input, shape index: {}]
  %s4 = inlined_call_operand.vmem [shape: bf16[96,768], index: 4, kind: input, shape index: {}]
  %s5 = inlined_call_operand.vmem [shape: bf16[3,12,16], index: 5, kind: input, shape index: {}]
  %s6 = inlined_call_operand.vmem [shape: f32[1,256], index: 6, kind: input, shape index: {}]
  %s7 = inlined_call_operand.vmem [shape: f32[32,24], index: 7, kind: input, shape index: {}]
  %s8 = inlined_call_operand.hbm [shape: s32[12,24], index: 8, kind: output, shape index: {}]
  %s9 = sld [smem:[#allocation0]]
  $region42: #{a_call__.1} parent=0
    _
  %s11 = ssub.s32 1, %s9
  %s12 = scalar_select 0, %s11, %s9
  $region1: #{a_call__.1} parent=0
    #allocation2 [shape = 'u8[8192]{0}', space=vmem, size = 0x2000, scoped, tag = 'output window, operand 0, single buffered']
    #allocation3 [shape = 's32[1]{0}', space=sflag, size = 0x4, scoped, tag = 'scoped memory for a_call__.1']
    %13 = vsyncpa [#allocation3], 0
    // Predicated region
    $region2: #{a_call__.1} parent=1 // pred_check
      _
    $region3: #{a_call__.1} parent=1 // pred_check_branch
      %15 = sbr.rel (0) target = $region5
    $region4: #{a_call__.1} parent=1 // pred_region
      _
    $region5: #{a_call__.1} parent=1 // pred_fallthru
      _
    // Predicated region
    $region6: #{a_call__.1} parent=1 // pred_check
      _
    $region7: #{a_call__.1} parent=1 // pred_check_branch
      %17 = sbr.rel (0) target = $region9
    $region8: #{a_call__.1} parent=1 // pred_region
      _
    $region9: #{a_call__.1} parent=1 // pred_fallthru
      _
    // Predicated region
    $region10: #{a_call__.1} parent=1 // pred_check
      _
    $region11: #{a_call__.1} parent=1 // pred_check_branch
      %19 = sbr.rel (0) target = $region13
    $region12: #{a_call__.1} parent=1 // pred_region
      _
    $region13: #{a_call__.1} parent=1 // pred_fallthru
      _
    // Predicated region
    $region14: #{a_call__.1} parent=1 // pred_check
      _
    $region15: #{a_call__.1} parent=1 // pred_check_branch
      %21 = sbr.rel (0) target = $region17
    $region16: #{a_call__.1} parent=1 // pred_region
      _
    $region17: #{a_call__.1} parent=1 // pred_fallthru
      _
    // Predicated region
    $region18: #{a_call__.1} parent=1 // pred_check
      _
    $region19: #{a_call__.1} parent=1 // pred_check_branch
      %23 = sbr.rel (0) target = $region21
    $region20: #{a_call__.1} parent=1 // pred_region
      _
    $region21: #{a_call__.1} parent=1 // pred_fallthru
      _
    // Predicated region
    $region22: #{a_call__.1} parent=1 // pred_check
      _
    $region23: #{a_call__.1} parent=1 // pred_check_branch
      %25 = sbr.rel (0) target = $region25
    $region24: #{a_call__.1} parent=1 // pred_region
      _
    $region25: #{a_call__.1} parent=1 // pred_fallthru
      _
    // Predicated region
    $region26: #{a_call__.1} parent=1 // pred_check
      _
    $region27: #{a_call__.1} parent=1 // pred_check_branch
      %27 = sbr.rel (0) target = $region29
    $region28: #{a_call__.1} parent=1 // pred_region
      _
    $region29: #{a_call__.1} parent=1 // pred_fallthru
      _
    // Predicated region
    $region30: #{a_call__.1} parent=1 // pred_check
      _
    $region31: #{a_call__.1} parent=1 // pred_check_branch
      %29 = sbr.rel (0) target = $region33
    $region32: #{a_call__.1} parent=1 // pred_region
      _
    $region33: #{a_call__.1} parent=1 // pred_fallthru
      _
    %v31 = vld [vmem:[%s0] sm:$0xf]
    %v32 = vld [vmem:[%s0 + $0x4] sm:$0x3]
    %v33 = vld [vmem:[%s1] sm:$0xf]
    %v34 = vld [vmem:[%s1 + $0x4] sm:$0xf]
    %v35 = vld [vmem:[%s1 + $0x8] sm:$0xf]
    %v36 = vld [vmem:[%s1 + $0xc] sm:$0xf]
    %v37 = vld [vmem:[%s1 + $0x10] sm:$0xf]
    %v38 = vld [vmem:[%s1 + $0x14] sm:$0xf]
    %v39 = vld [vmem:[%s1 + $0x18] sm:$0xf]
    %v40 = vld [vmem:[%s1 + $0x1c] sm:$0xf]
    %v41 = vld [vmem:[%s1 + $0x20] sm:$0xf]
    %v44 = vunpack.c.l.b16 %v31
    %v45 = vunpack.c.l.b16 %v32
    %v46 = vpack.c.b16 %v45, %v44
    %v56 = vunpack.c.l.b16 %v33
    %v57 = vunpack.c.l.b16 %v34
    %v58 = vunpack.c.l.b16 %v35
    %v59 = vunpack.c.l.b16 %v36
    %v60 = vunpack.c.l.b16 %v37
    %v61 = vunpack.c.l.b16 %v38
    %v62 = vunpack.c.l.b16 %v39
    %v63 = vunpack.c.l.b16 %v40
    %v64 = vunpack.c.l.b16 %v41
    %v65 = vpack.c.b16 %v57, %v56
    %v66 = vpack.c.b16 %v59, %v58
    %v67 = vpack.c.b16 %v61, %v60
    %v68 = vpack.c.b16 %v63, %v62
    %v69 = vpack.c.b16 %v64, %v64
    %vm74 = vcmask 588800
    %v76 = vsel %vm74, %v46, 0
    %vm78 = vcmask 1043456
    %v80 = vsel %vm78, %v69, 0
    %82 = vmatpush.bf16.msra.mxu0 0
    %83 = vmatpush.bf16.msra.mxu0 0
    %84 = vmatpush.bf16.msra.mxu0 0
    %85 = vmatpush.bf16.msra.mxu0 %v80
    %86 = vmatpush.bf16.msra.mxu0 %v68
    %87 = vmatpush.bf16.msra.mxu0 %v67
    %88 = vmatpush.bf16.msra.mxu0 %v66
    %89 = vmatpush.bf16.msra.mxu0 %v65
    %90 = vmatmul.bf16.gmra.mxu0 %v76
    %v91 = vpop.f32.mrf.mxu0
    %v92 = vadd.f32 0.0, %v91
    %v93 = vpop.f32.mrf.mxu0
    %v94 = vadd.f32 0.0, %v93
    %95 = vdwg.mxu0
    %v96 = vld [vmem:[%s2] sm:$0xf]
    %v97 = vld [vmem:[%s2 + $0x4] sm:$0xf]
    %v98 = vpack.c.bf16 %v94, %v92
    %v99 = vld [vmem:[%s3] sm:$0x1]
    %v101 = vperm.slane %v99, 0
    %v105 = vunpack.c.l.b16 %v96
    %v106 = vunpack.c.l.b16 %v97
    %v107 = vpack.c.b16 %v106, %v105
    %vm108 = vcmask 97280
    %v110 = vsel %vm108, %v107, 0
    %vm112 = vcmask 1045504
    %v114 = vsel %vm112, %v98, 0
    %116 = vmatpush.bf16.msra.mxu0 0
    %117 = vmatpush.bf16.msra.mxu0 0
    %118 = vmatpush.bf16.msra.mxu0 0
    %119 = vmatpush.bf16.msra.mxu0 0
    %120 = vmatpush.bf16.msra.mxu0 0
    %121 = vmatpush.bf16.msra.mxu0 0
    %122 = vmatpush.bf16.msra.mxu0 0
    %123 = vmatpush.bf16.msra.mxu0 %v114
    %124 = vmatmul.bf16.gmra.mxu0 %v110
    %v125 = vpop.f32.mrf.mxu0
    %v126 = vadd.f32 %v101, %v125
    %v127 = vpop.f32.mrf.mxu0
    %v128 = vadd.f32 %v101, %v127
    %129 = vdwg.mxu0
    %v130 = vpack.c.bf16 %v128, %v126
    %v131 = vld [vmem:[%s4] sm:$0xff]
    %v132 = vld [vmem:[%s4 + $0x8] sm:$0xff]
    %v133 = vld [vmem:[%s4 + $0x10] sm:$0xff]
    %v134 = vld [vmem:[%s4 + $0x18] sm:$0xff]
    %v135 = vld [vmem:[%s4 + $0x20] sm:$0xff]
    %v136 = vld [vmem:[%s4 + $0x28] sm:$0xff]
    %v137 = vld [vmem:[%s4 + $0x30] sm:$0xff]
    %v138 = vld [vmem:[%s4 + $0x38] sm:$0xff]
    %v139 = vld [vmem:[%s4 + $0x40] sm:$0xff]
    %v140 = vld [vmem:[%s4 + $0x48] sm:$0xff]
    %v141 = vld [vmem:[%s4 + $0x50] sm:$0xff]
    %v142 = vld [vmem:[%s4 + $0x58] sm:$0xff]
    %v143 = vld [vmem:[%s4 + $0x60] sm:$0xff]
    %v144 = vld [vmem:[%s4 + $0x68] sm:$0xff]
    %v145 = vld [vmem:[%s4 + $0x70] sm:$0xff]
    %v146 = vld [vmem:[%s4 + $0x78] sm:$0xff]
    %v147 = vld [vmem:[%s4 + $0x80] sm:$0xff]
    %v148 = vld [vmem:[%s4 + $0x88] sm:$0xff]
    %v149 = vld [vmem:[%s4 + $0x90] sm:$0xff]
    %v150 = vld [vmem:[%s4 + $0x98] sm:$0xff]
    %v151 = vld [vmem:[%s4 + $0xa0] sm:$0xff]
    %v152 = vld [vmem:[%s4 + $0xa8] sm:$0xff]
    %v153 = vld [vmem:[%s4 + $0xb0] sm:$0xff]
    %v154 = vld [vmem:[%s4 + $0xb8] sm:$0xff]
    %v155 = vld [vmem:[%s4 + $0xc0] sm:$0xff]
    %v156 = vld [vmem:[%s4 + $0xc8] sm:$0xff]
    %v157 = vld [vmem:[%s4 + $0xd0] sm:$0xff]
    %v158 = vld [vmem:[%s4 + $0xd8] sm:$0xff]
    %v159 = vld [vmem:[%s4 + $0xe0] sm:$0xff]
    %v160 = vld [vmem:[%s4 + $0xe8] sm:$0xff]
    %v161 = vld [vmem:[%s4 + $0xf0] sm:$0xff]
    %v162 = vld [vmem:[%s4 + $0xf8] sm:$0xff]
    %v163 = vld [vmem:[%s4 + $0x100] sm:$0xff]
    %v164 = vld [vmem:[%s4 + $0x108] sm:$0xff]
    %v165 = vld [vmem:[%s4 + $0x110] sm:$0xff]
    %v166 = vld [vmem:[%s4 + $0x118] sm:$0xff]
    %v203 = vunpack.c.l.b16 %v131
    %v204 = vunpack.c.h.b16 %v131
    %v205 = vunpack.c.l.b16 %v132
    %v206 = vunpack.c.h.b16 %v132
    %v207 = vunpack.c.l.b16 %v133
    %v208 = vunpack.c.h.b16 %v133
    %v209 = vunpack.c.l.b16 %v134
    %v210 = vunpack.c.h.b16 %v134
    %v211 = vunpack.c.l.b16 %v135
    %v212 = vunpack.c.h.b16 %v135
    %v213 = vunpack.c.l.b16 %v136
    %v214 = vunpack.c.h.b16 %v136
    %v215 = vunpack.c.l.b16 %v137
    %v216 = vunpack.c.h.b16 %v137
    %v217 = vunpack.c.l.b16 %v138
    %v218 = vunpack.c.h.b16 %v138
    %v219 = vunpack.c.l.b16 %v139
    %v220 = vunpack.c.h.b16 %v139
    %v221 = vunpack.c.l.b16 %v140
    %v222 = vunpack.c.h.b16 %v140
    %v223 = vunpack.c.l.b16 %v141
    %v224 = vunpack.c.h.b16 %v141
    %v225 = vunpack.c.l.b16 %v142
    %v226 = vunpack.c.h.b16 %v142
    %v227 = vunpack.c.l.b16 %v143
    %v228 = vunpack.c.h.b16 %v143
    %v229 = vunpack.c.l.b16 %v144
    %v230 = vunpack.c.h.b16 %v144
    %v231 = vunpack.c.l.b16 %v145
    %v232 = vunpack.c.h.b16 %v145
    %v233 = vunpack.c.l.b16 %v146
    %v234 = vunpack.c.h.b16 %v146
    %v235 = vunpack.c.l.b16 %v147
    %v236 = vunpack.c.h.b16 %v147
    %v237 = vunpack.c.l.b16 %v148
    %v238 = vunpack.c.h.b16 %v148
    %v239 = vunpack.c.l.b16 %v149
    %v240 = vunpack.c.h.b16 %v149
    %v241 = vunpack.c.l.b16 %v150
    %v242 = vunpack.c.h.b16 %v150
    %v243 = vunpack.c.l.b16 %v151
    %v244 = vunpack.c.h.b16 %v151
    %v245 = vunpack.c.l.b16 %v152
    %v246 = vunpack.c.h.b16 %v152
    %v247 = vunpack.c.l.b16 %v153
    %v248 = vunpack.c.h.b16 %v153
    %v249 = vunpack.c.l.b16 %v154
    %v250 = vunpack.c.h.b16 %v154
    %v251 = vunpack.c.l.b16 %v155
    %v252 = vunpack.c.h.b16 %v155
    %v253 = vunpack.c.l.b16 %v156
    %v254 = vunpack.c.h.b16 %v156
    %v255 = vunpack.c.l.b16 %v157
    %v256 = vunpack.c.h.b16 %v157
    %v257 = vunpack.c.l.b16 %v158
    %v258 = vunpack.c.h.b16 %v158
    %v259 = vunpack.c.l.b16 %v159
    %v260 = vunpack.c.h.b16 %v159
    %v261 = vunpack.c.l.b16 %v160
    %v262 = vunpack.c.h.b16 %v160
    %v263 = vunpack.c.l.b16 %v161
    %v264 = vunpack.c.h.b16 %v161
    %v265 = vunpack.c.l.b16 %v162
    %v266 = vunpack.c.h.b16 %v162
    %v267 = vunpack.c.l.b16 %v163
    %v268 = vunpack.c.h.b16 %v163
    %v269 = vunpack.c.l.b16 %v164
    %v270 = vunpack.c.h.b16 %v164
    %v271 = vunpack.c.l.b16 %v165
    %v272 = vunpack.c.h.b16 %v165
    %v273 = vunpack.c.l.b16 %v166
    %v274 = vunpack.c.h.b16 %v166
    %v275 = vpack.c.b16 %v209, %v203
    %v276 = vpack.c.b16 %v210, %v204
    %v277 = vpack.c.b16 %v211, %v205
    %v278 = vpack.c.b16 %v212, %v206
    %v279 = vpack.c.b16 %v213, %v207
    %v280 = vpack.c.b16 %v214, %v208
    %v281 = vpack.c.b16 %v221, %v215
    %v282 = vpack.c.b16 %v222, %v216
    %v283 = vpack.c.b16 %v223, %v217
    %v284 = vpack.c.b16 %v224, %v218
    %v285 = vpack.c.b16 %v225, %v219
    %v286 = vpack.c.b16 %v226, %v220
    %v287 = vpack.c.b16 %v233, %v227
    %v288 = vpack.c.b16 %v234, %v228
    %v289 = vpack.c.b16 %v235, %v229
    %v290 = vpack.c.b16 %v236, %v230
    %v291 = vpack.c.b16 %v237, %v231
    %v292 = vpack.c.b16 %v238, %v232
    %v293 = vpack.c.b16 %v245, %v239
    %v294 = vpack.c.b16 %v246, %v240
    %v295 = vpack.c.b16 %v247, %v241
    %v296 = vpack.c.b16 %v248, %v242
    %v297 = vpack.c.b16 %v249, %v243
    %v298 = vpack.c.b16 %v250, %v244
    %v299 = vpack.c.b16 %v257, %v251
    %v300 = vpack.c.b16 %v258, %v252
    %v301 = vpack.c.b16 %v259, %v253
    %v302 = vpack.c.b16 %v260, %v254
    %v303 = vpack.c.b16 %v261, %v255
    %v304 = vpack.c.b16 %v262, %v256
    %v305 = vpack.c.b16 %v269, %v263
    %v306 = vpack.c.b16 %v270, %v264
    %v307 = vpack.c.b16 %v271, %v265
    %v308 = vpack.c.b16 %v272, %v266
    %v309 = vpack.c.b16 %v273, %v267
    %v310 = vpack.c.b16 %v274, %v268
    %vm347 = vcmask 785408
    %v349 = vsel %vm347, %v130, 0
    %351 = vmatpush.bf16.msra.mxu0 0
    %352 = vmatpush.bf16.msra.mxu0 0
    %353 = vmatpush.bf16.msra.mxu0 %v305
    %354 = vmatpush.bf16.msra.mxu0 %v299
    %355 = vmatpush.bf16.msra.mxu0 %v293
    %356 = vmatpush.bf16.msra.mxu0 %v287
    %357 = vmatpush.bf16.msra.mxu0 %v281
    %358 = vmatpush.bf16.msra.mxu0 %v275
    %359 = vmatmul.bf16.gmra.mxu0 %v349
    %v360 = vpop.f32.mrf.mxu0
    %v361 = vadd.f32 0.0, %v360
    %v362 = vpop.f32.mrf.mxu0
    %v363 = vadd.f32 0.0, %v362
    %364 = vdwg.mxu0
    %365 = vmatpush.bf16.msra.mxu0 0
    %366 = vmatpush.bf16.msra.mxu0 0
    %367 = vmatpush.bf16.msra.mxu0 %v306
    %368 = vmatpush.bf16.msra.mxu0 %v300
    %369 = vmatpush.bf16.msra.mxu0 %v294
    %370 = vmatpush.bf16.msra.mxu0 %v288
    %371 = vmatpush.bf16.msra.mxu0 %v282
    %372 = vmatpush.bf16.msra.mxu0 %v276
    %373 = vmatmul.bf16.gmra.mxu0 %v349
    %v374 = vpop.f32.mrf.mxu0
    %v375 = vadd.f32 0.0, %v374
    %v376 = vpop.f32.mrf.mxu0
    %v377 = vadd.f32 0.0, %v376
    %378 = vdwg.mxu0
    %379 = vmatpush.bf16.msra.mxu0 0
    %380 = vmatpush.bf16.msra.mxu0 0
    %381 = vmatpush.bf16.msra.mxu0 %v307
    %382 = vmatpush.bf16.msra.mxu0 %v301
    %383 = vmatpush.bf16.msra.mxu0 %v295
    %384 = vmatpush.bf16.msra.mxu0 %v289
    %385 = vmatpush.bf16.msra.mxu0 %v283
    %386 = vmatpush.bf16.msra.mxu0 %v277
    %387 = vmatmul.bf16.gmra.mxu0 %v349
    %v388 = vpop.f32.mrf.mxu0
    %v389 = vadd.f32 0.0, %v388
    %v390 = vpop.f32.mrf.mxu0
    %v391 = vadd.f32 0.0, %v390
    %392 = vdwg.mxu0
    %393 = vmatpush.bf16.msra.mxu0 0
    %394 = vmatpush.bf16.msra.mxu0 0
    %395 = vmatpush.bf16.msra.mxu0 %v308
    %396 = vmatpush.bf16.msra.mxu0 %v302
    %397 = vmatpush.bf16.msra.mxu0 %v296
    %398 = vmatpush.bf16.msra.mxu0 %v290
    %399 = vmatpush.bf16.msra.mxu0 %v284
    %400 = vmatpush.bf16.msra.mxu0 %v278
    %401 = vmatmul.bf16.gmra.mxu0 %v349
    %v402 = vpop.f32.mrf.mxu0
    %v403 = vadd.f32 0.0, %v402
    %v404 = vpop.f32.mrf.mxu0
    %v405 = vadd.f32 0.0, %v404
    %406 = vdwg.mxu0
    %407 = vmatpush.bf16.msra.mxu0 0
    %408 = vmatpush.bf16.msra.mxu0 0
    %409 = vmatpush.bf16.msra.mxu0 %v309
    %410 = vmatpush.bf16.msra.mxu0 %v303
    %411 = vmatpush.bf16.msra.mxu0 %v297
    %412 = vmatpush.bf16.msra.mxu0 %v291
    %413 = vmatpush.bf16.msra.mxu0 %v285
    %414 = vmatpush.bf16.msra.mxu0 %v279
    %415 = vmatmul.bf16.gmra.mxu0 %v349
    %v416 = vpop.f32.mrf.mxu0
    %v417 = vadd.f32 0.0, %v416
    %v418 = vpop.f32.mrf.mxu0
    %v419 = vadd.f32 0.0, %v418
    %420 = vdwg.mxu0
    %421 = vmatpush.bf16.msra.mxu0 0
    %422 = vmatpush.bf16.msra.mxu0 0
    %423 = vmatpush.bf16.msra.mxu0 %v310
    %424 = vmatpush.bf16.msra.mxu0 %v304
    %425 = vmatpush.bf16.msra.mxu0 %v298
    %426 = vmatpush.bf16.msra.mxu0 %v292
    %427 = vmatpush.bf16.msra.mxu0 %v286
    %428 = vmatpush.bf16.msra.mxu0 %v280
    %429 = vmatmul.bf16.gmra.mxu0 %v349
    %v430 = vpop.f32.mrf.mxu0
    %v431 = vadd.f32 0.0, %v430
    %v432 = vpop.f32.mrf.mxu0
    %v433 = vadd.f32 0.0, %v432
    %434 = vdwg.mxu0
    %v435 = vpack.c.bf16 %v375, %v361
    %v436 = vpack.c.bf16 %v403, %v389
    %v437 = vpack.c.bf16 %v431, %v417
    %v438 = vpack.c.bf16 %v377, %v363
    %v439 = vpack.c.bf16 %v405, %v391
    %v440 = vpack.c.bf16 %v433, %v419
    %v441 = vld [vmem:[%s5] sm:$0xf]
    %v442 = vld [vmem:[%s5 + $0x4] sm:$0x3]
    %s443 = scalar_lea.vmem %s5, 8
    %v444 = vld [vmem:[%s443] sm:$0xf]
    %v445 = vld [vmem:[%s443 + $0x4] sm:$0x3]
    %v448 = vunpack.c.l.b16 %v444
    %v449 = vunpack.c.l.b16 %v445
    %v450 = vpack.c.b16 %v449, %v448
    %v453 = vunpack.c.l.b16 %v436
    %v454 = vunpack.c.h.b16 %v436
    %v455 = vunpack.c.l.b16 %v439
    %v456 = vunpack.c.h.b16 %v439
    %v457 = vpack.c.b16 %v455, %v453
    %v458 = vpack.c.b16 %v456, %v454
    %vm461 = vcmask 130048
    %v463 = vsel %vm461, %v450, 0
    %465 = vmatpush.bf16.msra.mxu0 0
    %466 = vmatpush.bf16.msra.mxu0 0
    %467 = vmatpush.bf16.msra.mxu0 0
    %468 = vmatpush.bf16.msra.mxu0 0
    %469 = vmatpush.bf16.msra.mxu0 0
    %470 = vmatpush.bf16.msra.mxu0 0
    %471 = vmatpush.bf16.msra.mxu0 0
    %472 = vmatpush.bf16.msra.mxu0 %v457
    %473 = vmatmul.bf16.gmra.mxu0 %v463
    %v474 = vpop.f32.mrf.mxu0
    %v475 = vadd.f32 0.0, %v474
    %v476 = vpop.f32.mrf.mxu0
    %v477 = vadd.f32 0.0, %v476
    %478 = vdwg.mxu0
    %479 = vmatpush.bf16.msra.mxu0 0
    %480 = vmatpush.bf16.msra.mxu0 0
    %481 = vmatpush.bf16.msra.mxu0 0
    %482 = vmatpush.bf16.msra.mxu0 0
    %483 = vmatpush.bf16.msra.mxu0 0
    %484 = vmatpush.bf16.msra.mxu0 0
    %485 = vmatpush.bf16.msra.mxu0 0
    %486 = vmatpush.bf16.msra.mxu0 %v458
    %487 = vmatmul.bf16.gmra.mxu0 %v463
    %v488 = vpop.f32.mrf.mxu0
    %v489 = vadd.f32 0.0, %v488
    %v490 = vpop.f32.mrf.mxu0
    %v491 = vadd.f32 0.0, %v490
    %492 = vdwg.mxu0
    %v495 = vunpack.c.l.b16 %v441
    %v496 = vunpack.c.l.b16 %v442
    %v497 = vpack.c.b16 %v496, %v495
    %v500 = vunpack.c.l.b16 %v435
    %v501 = vunpack.c.h.b16 %v435
    %v502 = vunpack.c.l.b16 %v438
    %v503 = vunpack.c.h.b16 %v438
    %v504 = vpack.c.b16 %v502, %v500
    %v505 = vpack.c.b16 %v503, %v501
    %v509 = vsel %vm461, %v497, 0
    %511 = vmatpush.bf16.msra.mxu0 0
    %512 = vmatpush.bf16.msra.mxu0 0
    %513 = vmatpush.bf16.msra.mxu0 0
    %514 = vmatpush.bf16.msra.mxu0 0
    %515 = vmatpush.bf16.msra.mxu0 0
    %516 = vmatpush.bf16.msra.mxu0 0
    %517 = vmatpush.bf16.msra.mxu0 0
    %518 = vmatpush.bf16.msra.mxu0 %v504
    %519 = vmatmul.bf16.gmra.mxu0 %v509
    %v520 = vpop.f32.mrf.mxu0
    %v521 = vadd.f32 %v475, %v520
    %v522 = vpop.f32.mrf.mxu0
    %v523 = vadd.f32 %v477, %v522
    %524 = vdwg.mxu0
    %525 = vmatpush.bf16.msra.mxu0 0
    %526 = vmatpush.bf16.msra.mxu0 0
    %527 = vmatpush.bf16.msra.mxu0 0
    %528 = vmatpush.bf16.msra.mxu0 0
    %529 = vmatpush.bf16.msra.mxu0 0
    %530 = vmatpush.bf16.msra.mxu0 0
    %531 = vmatpush.bf16.msra.mxu0 0
    %532 = vmatpush.bf16.msra.mxu0 %v505
    %533 = vmatmul.bf16.gmra.mxu0 %v509
    %v534 = vpop.f32.mrf.mxu0
    %v535 = vadd.f32 %v489, %v534
    %v536 = vpop.f32.mrf.mxu0
    %v537 = vadd.f32 %v491, %v536
    %538 = vdwg.mxu0
    %s539 = scalar_lea.vmem %s5, 16
    %v540 = vld [vmem:[%s539] sm:$0xf]
    %v541 = vld [vmem:[%s539 + $0x4] sm:$0x3]
    %v544 = vunpack.c.l.b16 %v540
    %v545 = vunpack.c.l.b16 %v541
    %v546 = vpack.c.b16 %v545, %v544
    %v549 = vunpack.c.l.b16 %v437
    %v550 = vunpack.c.h.b16 %v437
    %v551 = vunpack.c.l.b16 %v440
    %v552 = vunpack.c.h.b16 %v440
    %v553 = vpack.c.b16 %v551, %v549
    %v554 = vpack.c.b16 %v552, %v550
    %v558 = vsel %vm461, %v546, 0
    %560 = vmatpush.bf16.msra.mxu0 0
    %561 = vmatpush.bf16.msra.mxu0 0
    %562 = vmatpush.bf16.msra.mxu0 0
    %563 = vmatpush.bf16.msra.mxu0 0
    %564 = vmatpush.bf16.msra.mxu0 0
    %565 = vmatpush.bf16.msra.mxu0 0
    %566 = vmatpush.bf16.msra.mxu0 0
    %567 = vmatpush.bf16.msra.mxu0 %v553
    %568 = vmatmul.bf16.gmra.mxu0 %v558
    %v569 = vpop.f32.mrf.mxu0
    %v570 = vadd.f32 0.0, %v569
    %v571 = vpop.f32.mrf.mxu0
    %v572 = vadd.f32 0.0, %v571
    %573 = vdwg.mxu0
    %574 = vmatpush.bf16.msra.mxu0 0
    %575 = vmatpush.bf16.msra.mxu0 0
    %576 = vmatpush.bf16.msra.mxu0 0
    %577 = vmatpush.bf16.msra.mxu0 0
    %578 = vmatpush.bf16.msra.mxu0 0
    %579 = vmatpush.bf16.msra.mxu0 0
    %580 = vmatpush.bf16.msra.mxu0 0
    %581 = vmatpush.bf16.msra.mxu0 %v554
    %582 = vmatmul.bf16.gmra.mxu0 %v558
    %v583 = vpop.f32.mrf.mxu0
    %v584 = vadd.f32 0.0, %v583
    %v585 = vpop.f32.mrf.mxu0
    %v586 = vadd.f32 0.0, %v585
    %587 = vdwg.mxu0
    %v588 = vadd.f32 %v521, %v570
    %v589 = vadd.f32 %v535, %v584
    %v590 = vadd.f32 %v523, %v572
    %v591 = vadd.f32 %v537, %v586
    %v592 = vld [vmem:[%s6] sm:$0x3]
    %v594 = vperm.slane %v592, 0
    %v595 = vperm.slane %v592, 1
    %v598 = vadd.f32 %v588, %v594
    %v599 = vadd.f32 %v589, %v595
    %v600 = vadd.f32 %v590, %v594
    %v601 = vadd.f32 %v591, %v595
    %v602 = vld [vmem:[%s7] sm:$0xff]
    %v603 = vld [vmem:[%s7 + $0x8] sm:$0xff]
    %v604 = vld [vmem:[%s7 + $0x10] sm:$0xff]
    %v605 = vld [vmem:[%s7 + $0x18] sm:$0xff]
    %vm606 = vcmask 261120
    %v608 = vsel %vm606, %v598, 0
    %v611 = vsel %vm606, %v600, 0
    %613 = vmatpush.msra.mxu0 0.0
    %614 = vmatpush.msra.mxu0 0.0
    %615 = vmatpush.msra.mxu0 0.0
    %616 = vmatpush.msra.mxu0 0.0
    %617 = vmatpush.msra.mxu0 0.0
    %618 = vmatpush.msra.mxu0 0.0
    %619 = vmatpush.msra.mxu0 0.0
    %620 = vmatpush.msra.mxu0 0.0
    %621 = vmatpush.msra.mxu0 0.0
    %622 = vmatpush.msra.mxu0 0.0
    %623 = vmatpush.msra.mxu0 0.0
    %624 = vmatpush.msra.mxu0 0.0
    %625 = vmatpush.msra.mxu0 %v605
    %626 = vmatpush.msra.mxu0 %v604
    %627 = vmatpush.msra.mxu0 %v603
    %628 = vmatpush.msra.mxu0 %v602
    %629 = vmatmul.f32.gmra.mxu0 %v608
    %v630 = vpop.f32.mrf.mxu0
    %v631 = vadd.f32 0.0, %v630
    %632 = vmatmul.f32.gmra.mxu0 %v611
    %v633 = vpop.f32.mrf.mxu0
    %v634 = vadd.f32 0.0, %v633
    %635 = vdwg.mxu0
    %636 = vrot.lane.b32.xlu0 %v598, 96
    %v637 = vpop.permute.xlu0 %636
    %638 = vrot.lane.b32.xlu0 %v600, 96
    %v639 = vpop.permute.xlu0 %638
    %v640 = vsel %vm606, %v637, 0
    %v642 = vsel %vm606, %v639, 0
    %644 = vmatpush.msra.mxu0 0.0
    %645 = vmatpush.msra.mxu0 0.0
    %646 = vmatpush.msra.mxu0 0.0
    %647 = vmatpush.msra.mxu0 0.0
    %648 = vmatpush.msra.mxu0 0.0
    %649 = vmatpush.msra.mxu0 0.0
    %650 = vmatpush.msra.mxu0 0.0
    %651 = vmatpush.msra.mxu0 0.0
    %652 = vmatpush.msra.mxu0 0.0
    %653 = vmatpush.msra.mxu0 0.0
    %654 = vmatpush.msra.mxu0 0.0
    %655 = vmatpush.msra.mxu0 0.0
    %656 = vmatpush.msra.mxu0 %v605
    %657 = vmatpush.msra.mxu0 %v604
    %658 = vmatpush.msra.mxu0 %v603
    %659 = vmatpush.msra.mxu0 %v602
    %660 = vmatmul.f32.gmra.mxu0 %v640
    %v661 = vpop.f32.mrf.mxu0
    %v662 = vadd.f32 0.0, %v661
    %663 = vmatmul.f32.gmra.mxu0 %v642
    %v664 = vpop.f32.mrf.mxu0
    %v665 = vadd.f32 0.0, %v664
    %666 = vdwg.mxu0
    %vm667 = vcmp.gt.f32.partialorder %v662, %v631
    %vm668 = vcmp.gt.f32.partialorder %v665, %v634
    %v669 = vsel %vm667, %v662, %v631
    %v670 = vsel %vm668, %v665, %v634
    %v671 = vsel %vm667, 1, 0
    %v672 = vsel %vm668, 1, 0
    %673 = vrot.lane.b32.xlu0 %v598, 64
    %v674 = vpop.permute.xlu0 %673
    %675 = vrot.lane.b32.xlu0 %v600, 64
    %v676 = vpop.permute.xlu0 %675
    %v677 = vsel %vm606, %v674, 0
    %v679 = vsel %vm606, %v676, 0
    %681 = vmatpush.msra.mxu0 0.0
    %682 = vmatpush.msra.mxu0 0.0
    %683 = vmatpush.msra.mxu0 0.0
    %684 = vmatpush.msra.mxu0 0.0
    %685 = vmatpush.msra.mxu0 0.0
    %686 = vmatpush.msra.mxu0 0.0
    %687 = vmatpush.msra.mxu0 0.0
    %688 = vmatpush.msra.mxu0 0.0
    %689 = vmatpush.msra.mxu0 0.0
    %690 = vmatpush.msra.mxu0 0.0
    %691 = vmatpush.msra.mxu0 0.0
    %692 = vmatpush.msra.mxu0 0.0
    %693 = vmatpush.msra.mxu0 %v605
    %694 = vmatpush.msra.mxu0 %v604
    %695 = vmatpush.msra.mxu0 %v603
    %696 = vmatpush.msra.mxu0 %v602
    %697 = vmatmul.f32.gmra.mxu0 %v677
    %v698 = vpop.f32.mrf.mxu0
    %v699 = vadd.f32 0.0, %v698
    %700 = vmatmul.f32.gmra.mxu0 %v679
    %v701 = vpop.f32.mrf.mxu0
    %v702 = vadd.f32 0.0, %v701
    %703 = vdwg.mxu0
    %vm704 = vcmp.gt.f32.partialorder %v699, %v669
    %vm705 = vcmp.gt.f32.partialorder %v702, %v670
    %v706 = vsel %vm704, %v699, %v669
    %v707 = vsel %vm705, %v702, %v670
    %v708 = vsel %vm704, 2, %v671
    %v709 = vsel %vm705, 2, %v672
    %710 = vrot.lane.b32.xlu0 %v598, 32
    %v711 = vpop.permute.xlu0 %710
    %712 = vrot.lane.b32.xlu0 %v600, 32
    %v713 = vpop.permute.xlu0 %712
    %v714 = vsel %vm606, %v711, 0
    %v716 = vsel %vm606, %v713, 0
    %718 = vmatpush.msra.mxu0 0.0
    %719 = vmatpush.msra.mxu0 0.0
    %720 = vmatpush.msra.mxu0 0.0
    %721 = vmatpush.msra.mxu0 0.0
    %722 = vmatpush.msra.mxu0 0.0
    %723 = vmatpush.msra.mxu0 0.0
    %724 = vmatpush.msra.mxu0 0.0
    %725 = vmatpush.msra.mxu0 0.0
    %726 = vmatpush.msra.mxu0 0.0
    %727 = vmatpush.msra.mxu0 0.0
    %728 = vmatpush.msra.mxu0 0.0
    %729 = vmatpush.msra.mxu0 0.0
    %730 = vmatpush.msra.mxu0 %v605
    %731 = vmatpush.msra.mxu0 %v604
    %732 = vmatpush.msra.mxu0 %v603
    %733 = vmatpush.msra.mxu0 %v602
    %734 = vmatmul.f32.gmra.mxu0 %v714
    %v735 = vpop.f32.mrf.mxu0
    %v736 = vadd.f32 0.0, %v735
    %737 = vmatmul.f32.gmra.mxu0 %v716
    %v738 = vpop.f32.mrf.mxu0
    %v739 = vadd.f32 0.0, %v738
    %740 = vdwg.mxu0
    %vm741 = vcmp.gt.f32.partialorder %v736, %v706
    %vm742 = vcmp.gt.f32.partialorder %v739, %v707
    %v743 = vsel %vm741, %v736, %v706
    %v744 = vsel %vm742, %v739, %v707
    %v745 = vsel %vm741, 3, %v708
    %v746 = vsel %vm742, 3, %v709
    %v748 = vsel %vm606, %v599, 0
    %v751 = vsel %vm606, %v601, 0
    %753 = vmatpush.msra.mxu0 0.0
    %754 = vmatpush.msra.mxu0 0.0
    %755 = vmatpush.msra.mxu0 0.0
    %756 = vmatpush.msra.mxu0 0.0
    %757 = vmatpush.msra.mxu0 0.0
    %758 = vmatpush.msra.mxu0 0.0
    %759 = vmatpush.msra.mxu0 0.0
    %760 = vmatpush.msra.mxu0 0.0
    %761 = vmatpush.msra.mxu0 0.0
    %762 = vmatpush.msra.mxu0 0.0
    %763 = vmatpush.msra.mxu0 0.0
    %764 = vmatpush.msra.mxu0 0.0
    %765 = vmatpush.msra.mxu0 %v605
    %766 = vmatpush.msra.mxu0 %v604
    %767 = vmatpush.msra.mxu0 %v603
    %768 = vmatpush.msra.mxu0 %v602
    %769 = vmatmul.f32.gmra.mxu0 %v748
    %v770 = vpop.f32.mrf.mxu0
    %v771 = vadd.f32 0.0, %v770
    %772 = vmatmul.f32.gmra.mxu0 %v751
    %v773 = vpop.f32.mrf.mxu0
    %v774 = vadd.f32 0.0, %v773
    %775 = vdwg.mxu0
    %vm776 = vcmp.gt.f32.partialorder %v771, %v743
    %vm777 = vcmp.gt.f32.partialorder %v774, %v744
    %v778 = vsel %vm776, %v771, %v743
    %v779 = vsel %vm777, %v774, %v744
    %v780 = vsel %vm776, 4, %v745
    %v781 = vsel %vm777, 4, %v746
    %782 = vrot.lane.b32.xlu0 %v599, 96
    %v783 = vpop.permute.xlu0 %782
    %784 = vrot.lane.b32.xlu0 %v601, 96
    %v785 = vpop.permute.xlu0 %784
    %v786 = vsel %vm606, %v783, 0
    %v788 = vsel %vm606, %v785, 0
    %790 = vmatpush.msra.mxu0 0.0
    %791 = vmatpush.msra.mxu0 0.0
    %792 = vmatpush.msra.mxu0 0.0
    %793 = vmatpush.msra.mxu0 0.0
    %794 = vmatpush.msra.mxu0 0.0
    %795 = vmatpush.msra.mxu0 0.0
    %796 = vmatpush.msra.mxu0 0.0
    %797 = vmatpush.msra.mxu0 0.0
    %798 = vmatpush.msra.mxu0 0.0
    %799 = vmatpush.msra.mxu0 0.0
    %800 = vmatpush.msra.mxu0 0.0
    %801 = vmatpush.msra.mxu0 0.0
    %802 = vmatpush.msra.mxu0 %v605
    %803 = vmatpush.msra.mxu0 %v604
    %804 = vmatpush.msra.mxu0 %v603
    %805 = vmatpush.msra.mxu0 %v602
    %806 = vmatmul.f32.gmra.mxu0 %v786
    %v807 = vpop.f32.mrf.mxu0
    %v808 = vadd.f32 0.0, %v807
    %809 = vmatmul.f32.gmra.mxu0 %v788
    %v810 = vpop.f32.mrf.mxu0
    %v811 = vadd.f32 0.0, %v810
    %812 = vdwg.mxu0
    %vm813 = vcmp.gt.f32.partialorder %v808, %v778
    %vm814 = vcmp.gt.f32.partialorder %v811, %v779
    %v815 = vsel %vm813, %v808, %v778
    %v816 = vsel %vm814, %v811, %v779
    %v817 = vsel %vm813, 5, %v780
    %v818 = vsel %vm814, 5, %v781
    %819 = vrot.lane.b32.xlu0 %v599, 64
    %v820 = vpop.permute.xlu0 %819
    %821 = vrot.lane.b32.xlu0 %v601, 64
    %v822 = vpop.permute.xlu0 %821
    %v823 = vsel %vm606, %v820, 0
    %v825 = vsel %vm606, %v822, 0
    %827 = vmatpush.msra.mxu0 0.0
    %828 = vmatpush.msra.mxu0 0.0
    %829 = vmatpush.msra.mxu0 0.0
    %830 = vmatpush.msra.mxu0 0.0
    %831 = vmatpush.msra.mxu0 0.0
    %832 = vmatpush.msra.mxu0 0.0
    %833 = vmatpush.msra.mxu0 0.0
    %834 = vmatpush.msra.mxu0 0.0
    %835 = vmatpush.msra.mxu0 0.0
    %836 = vmatpush.msra.mxu0 0.0
    %837 = vmatpush.msra.mxu0 0.0
    %838 = vmatpush.msra.mxu0 0.0
    %839 = vmatpush.msra.mxu0 %v605
    %840 = vmatpush.msra.mxu0 %v604
    %841 = vmatpush.msra.mxu0 %v603
    %842 = vmatpush.msra.mxu0 %v602
    %843 = vmatmul.f32.gmra.mxu0 %v823
    %v844 = vpop.f32.mrf.mxu0
    %v845 = vadd.f32 0.0, %v844
    %846 = vmatmul.f32.gmra.mxu0 %v825
    %v847 = vpop.f32.mrf.mxu0
    %v848 = vadd.f32 0.0, %v847
    %849 = vdwg.mxu0
    %vm850 = vcmp.gt.f32.partialorder %v845, %v815
    %vm851 = vcmp.gt.f32.partialorder %v848, %v816
    %v852 = vsel %vm850, %v845, %v815
    %v853 = vsel %vm851, %v848, %v816
    %v854 = vsel %vm850, 6, %v817
    %v855 = vsel %vm851, 6, %v818
    %856 = vrot.lane.b32.xlu0 %v599, 32
    %v857 = vpop.permute.xlu0 %856
    %858 = vrot.lane.b32.xlu0 %v601, 32
    %v859 = vpop.permute.xlu0 %858
    %v860 = vsel %vm606, %v857, 0
    %v862 = vsel %vm606, %v859, 0
    %864 = vmatpush.msra.mxu0 0.0
    %865 = vmatpush.msra.mxu0 0.0
    %866 = vmatpush.msra.mxu0 0.0
    %867 = vmatpush.msra.mxu0 0.0
    %868 = vmatpush.msra.mxu0 0.0
    %869 = vmatpush.msra.mxu0 0.0
    %870 = vmatpush.msra.mxu0 0.0
    %871 = vmatpush.msra.mxu0 0.0
    %872 = vmatpush.msra.mxu0 0.0
    %873 = vmatpush.msra.mxu0 0.0
    %874 = vmatpush.msra.mxu0 0.0
    %875 = vmatpush.msra.mxu0 0.0
    %876 = vmatpush.msra.mxu0 %v605
    %877 = vmatpush.msra.mxu0 %v604
    %878 = vmatpush.msra.mxu0 %v603
    %879 = vmatpush.msra.mxu0 %v602
    %880 = vmatmul.f32.gmra.mxu0 %v860
    %v881 = vpop.f32.mrf.mxu0
    %v882 = vadd.f32 0.0, %v881
    %883 = vmatmul.f32.gmra.mxu0 %v862
    %v884 = vpop.f32.mrf.mxu0
    %v885 = vadd.f32 0.0, %v884
    %886 = vdwg.mxu0
    %vm887 = vcmp.gt.f32.partialorder %v882, %v852
    %vm888 = vcmp.gt.f32.partialorder %v885, %v853
    %v889 = vsel %vm887, 7, %v854
    %v890 = vsel %vm888, 7, %v855
    %vm891 = vcmask 195584
    %892 = vst.msk [vmem:[#allocation2] sm:$0xff] %vm891, %v889
    %vm893 = vcmask 191488
    %894 = vst.msk [vmem:[#allocation2 + $0x8] sm:$0xf] %vm893, %v890
    // Predicated region
    $region34: #{a_call__.1} parent=1 // pred_check
      _
    $region35: #{a_call__.1} parent=1 // pred_check_branch
      %896 = sbr.rel (0) target = $region37
    $region36: #{a_call__.1} parent=1 // pred_region
      %898 = vsyncadd [#allocation3], 0
      %s899 = sshll.u32 [#allocation2], 4
      %s900 = int_to_ptr.vmem [resolvable:$true] %s899
      %s901 = sshll.u32 %s8, 4
      %s902 = int_to_ptr.hbm [resolvable:$true] %s901
      %907 = dma.vmem_to_hbm [thread:$0]  %s900, 256, %s902, [#allocation3], 128, 128, 8
    $region37: #{a_call__.1} parent=1 // pred_fallthru
      _
    // Predicated region
    $region38: #{a_call__.1} parent=1 // pred_check
      _
    $region39: #{a_call__.1} parent=1 // pred_check_branch
      %909 = sbr.rel (0) target = $region41
    $region40: #{a_call__.1} parent=1 // pred_region
      %911 = dma.done [#allocation3], 256
    $region41: #{a_call__.1} parent=1 // pred_fallthru
      _
    %912 = vsyncpa [#allocation3], 1

</llo_original>
